<compile_context>
chip_gen: v6e
topology: v6e:2x2x1
jax: 0.10.0
libtpu: 0.0.40
codegen_flags: <defaults>
</compile_context>

<pallas_src>
import jax
import jax.numpy as jnp
from jax.experimental import pallas as pl
from jax.experimental.pallas import tpu as pltpu


# ------------------------- Pallas kernel -------------------------

def decoder_rnn_kernel(x_ref, lens_ref,
                       wih_ref, whh_ref, bias_ref,
                       wfc1_ref, bfc1_ref, wfc2_ref, bfc2_ref,
                       feat_ref, out_ref,
                       h_scr, c_scr, xp_scr):
    # x_ref:    (Tc*Bp, D)   time-major chunk of the (padded) sequence
    # lens_ref: (Bp, 1)      int32 valid lengths (0 for padded batch rows)
    # wih_ref:  (D, 4H)      W_ih^T     whh_ref: (H, 4H)  W_hh^T
    # bias_ref: (1, 4H)      b_ih + b_hh (pre-summed, f32)
    # h_scr/c_scr: (Bp, H)   f32 LSTM state, persistent across grid steps
    # xp_scr:   (Tc*Bp, 4H)  f32 per-chunk hoisted input projection
    chunk = pl.program_id(0)
    n_chunks = pl.num_programs(0)
    Bp = lens_ref.shape[0]
    H = whh_ref.shape[0]
    Tc = x_ref.shape[0] // Bp

    @pl.when(chunk == 0)
    def _init():
        h_scr[...] = jnp.zeros_like(h_scr)
        c_scr[...] = jnp.zeros_like(c_scr)

    # (1) Hoisted input projection for the whole chunk: one MXU matmul
    #     (bf16/f32 inputs, f32 accumulation), biases pre-folded.
    xp_scr[...] = (jnp.dot(x_ref[...], wih_ref[...],
                           preferred_element_type=jnp.float32)
                   + bias_ref[...])

    lens = lens_ref[...]                                    # (Bp, 1), loaded once
    t0 = chunk * Tc
    rec_dtype = whh_ref.dtype

    # (2) Recurrence: only h @ W_hh per step; unrolled within the chunk
    #     (== partial unroll overall).
    def step(t, carry):
        h, c = carry
        off = pl.multiple_of(t * Bp, Bp)                    # sublane-aligned slice
        gates = (xp_scr[pl.ds(off, Bp), :]
                 + jnp.dot(h.astype(rec_dtype), whh_ref[...],
                           preferred_element_type=jnp.float32))   # (Bp, 4H)

        # PyTorch LSTM gate order [i, f, g, o]; H=128 -> lane-aligned slices.
        i_g = jax.nn.sigmoid(gates[:, 0 * H:1 * H])
        f_g = jax.nn.sigmoid(gates[:, 1 * H:2 * H])
        g_g = jnp.tanh(gates[:, 2 * H:3 * H])
        o_g = jax.nn.sigmoid(gates[:, 3 * H:4 * H])

        c_new = f_g * c + i_g * g_g
        h_new = o_g * jnp.tanh(c_new)

        # pack_padded_sequence: freeze state once t >= n_frames[b].
        # Broadcast the mask once, reuse for both selects.
        valid = jnp.broadcast_to((t0 + t) < lens, (Bp, H))
        h = jnp.where(valid, h_new, h)
        c = jnp.where(valid, c_new, c)
        return h, c

    h, c = jax.lax.fori_loop(0, Tc, step, (h_scr[...], c_scr[...]), unroll=True)
    h_scr[...] = h
    c_scr[...] = c

    # (3) Head on the last chunk: fc1 -> relu -> (dropout = identity, eval) -> fc2
    @pl.when(chunk == n_chunks - 1)
    def _head():
        x1 = jnp.maximum(
            jnp.dot(h.astype(wfc1_ref.dtype), wfc1_ref[...],
                    preferred_element_type=jnp.float32) + bfc1_ref[...], 0.0)
        feat_ref[...] = x1
        out_ref[...] = (jnp.dot(x1.astype(wfc2_ref.dtype), wfc2_ref[...],
                                preferred_element_type=jnp.float32)
                        + bfc2_ref[...])


# ------------------------- wrapper -------------------------

def decoder_rnn_forward(sequence_btd, n_frames, params, *,
                        chunk_t=8, mxu_dtype=jnp.bfloat16):
    """sequence_btd: (B, T, D) float32 (batch_first, like PyTorch).
       n_frames: (B,) int (sorted descending, as pack_padded_sequence requires)."""
    B, T, D = sequence_btd.shape
    wih_t, whh_t, bih, bhh, wfc1_t, bfc1, wfc2_t, bfc2 = params
    H = whh_t.shape[0]
    FC = wfc1_t.shape[1]
    NC = wfc2_t.shape[1]

    # Pad batch to a multiple of 8 sublanes (pad rows masked via lens=0) and
    # the class dim to 128 lanes for a lane-dense final store.  NOTE: for
    # throughput, batch toward the MXU height (128/256) at the call site —
    # per-step latency is nearly flat in Bp up to the MXU height.
    Bp = ((B + 7) // 8) * 8
    NCp = ((NC + 127) // 128) * 128
    Tc = min(chunk_t, T)
    Tp = ((T + Tc - 1) // Tc) * Tc           # padded time steps masked via lens

    seq_tbd = jnp.transpose(sequence_btd, (1, 0, 2))                 # (T, B, D)
    seq_tbd = jnp.pad(seq_tbd, ((0, Tp - T), (0, Bp - B), (0, 0)))   # (Tp, Bp, D)
    x_flat = seq_tbd.reshape(Tp * Bp, D).astype(mxu_dtype)

    lens = jnp.pad(n_frames.astype(jnp.int32), (0, Bp - B)).reshape(Bp, 1)

    bias = (bih + bhh).astype(jnp.float32)                           # (1, 4H)
    wfc2_p = jnp.pad(wfc2_t, ((0, 0), (0, NCp - NC)))
    bfc2_p = jnp.pad(bfc2, ((0, 0), (0, NCp - NC)))

    vmem = pl.BlockSpec(memory_space=pltpu.MemorySpace.VMEM)
    n_chunks = Tp // Tc

    feat_p, out_p = pl.pallas_call(
        decoder_rnn_kernel,
        out_shape=(jax.ShapeDtypeStruct((Bp, FC), jnp.float32),
                   jax.ShapeDtypeStruct((Bp, NCp), jnp.float32)),
        grid=(n_chunks,),
        in_specs=[
            pl.BlockSpec((Tc * Bp, D), lambda c: (c, 0)),   # streamed x chunks
            vmem,                                            # lens
            vmem, vmem, vmem,                                # W_ih^T, W_hh^T, bias
            vmem, vmem, vmem, vmem,                          # fc1/fc2 weights+biases
        ],
        out_specs=(pl.BlockSpec((Bp, FC), lambda c: (0, 0)),
                   pl.BlockSpec((Bp, NCp), lambda c: (0, 0))),
        scratch_shapes=[
            pltpu.VMEM((Bp, H), jnp.float32),           # h, carried across chunks
            pltpu.VMEM((Bp, H), jnp.float32),           # c
            pltpu.VMEM((Tc * Bp, 4 * H), jnp.float32),  # per-chunk input projection
        ],
        compiler_params=pltpu.CompilerParams(
            dimension_semantics=("arbitrary",),   # serial state carry across chunks
            allow_input_fusion=[True] + [False] * 8,
        ),
    )(x_flat, lens,
      wih_t.astype(mxu_dtype), whh_t.astype(mxu_dtype), bias,
      wfc1_t.astype(mxu_dtype), bfc1.astype(jnp.float32),
      wfc2_p.astype(mxu_dtype), bfc2_p.astype(jnp.float32))

    return feat_p[:B], out_p[:B, :NC]


# ------------------------- pure-JAX reference -------------------------

def decoder_rnn_reference(sequence_btd, n_frames, params):
    wih_t, whh_t, bih, bhh, wfc1_t, bfc1, wfc2_t, bfc2 = params
    B, T, D = sequence_btd.shape
    H = whh_t.shape[0]
    h = jnp.zeros((B, H), jnp.float32)
    c = jnp.zeros((B, H), jnp.float32)
    for t in range(T):
        x_t = sequence_btd[:, t, :]
        gates = x_t @ wih_t + h @ whh_t + bih + bhh
        i_g = jax.nn.sigmoid(gates[:, 0 * H:1 * H])
        f_g = jax.nn.sigmoid(gates[:, 1 * H:2 * H])
        g_g = jnp.tanh(gates[:, 2 * H:3 * H])
        o_g = jax.nn.sigmoid(gates[:, 3 * H:4 * H])
        c_new = f_g * c + i_g * g_g
        h_new = o_g * jnp.tanh(c_new)
        mask = (t < n_frames)[:, None]
        h = jnp.where(mask, h_new, h)
        c = jnp.where(mask, c_new, c)
    x = jnp.maximum(h @ wfc1_t + bfc1, 0.0)
    out = x @ wfc2_t + bfc2
    return x, out


# ------------------------- main -------------------------

if __name__ == "__main__":
    # Small shapes consistent with the module (CNN_embed_dim, h_RNN, h_FC, classes).
    # T=16 with chunk_t=8 exercises a 2-step time-chunk grid.
    B, T, D, H, FC, NC = 2, 16, 256, 128, 128, 11

    key = jax.random.PRNGKey(0)
    ks = jax.random.split(key, 10)
    s_lstm = 1.0 / jnp.sqrt(jnp.float32(H))
    s_fc1 = 1.0 / jnp.sqrt(jnp.float32(H))
    s_fc2 = 1.0 / jnp.sqrt(jnp.float32(FC))

    # PyTorch LSTM params: weight_ih (4H, D), weight_hh (4H, H) — stored transposed.
    wih_t = jax.random.uniform(ks[0], (D, 4 * H), jnp.float32, -s_lstm, s_lstm)
    whh_t = jax.random.uniform(ks[1], (H, 4 * H), jnp.float32, -s_lstm, s_lstm)
    bih = jax.random.uniform(ks[2], (1, 4 * H), jnp.float32, -s_lstm, s_lstm)
    bhh = jax.random.uniform(ks[3], (1, 4 * H), jnp.float32, -s_lstm, s_lstm)
    wfc1_t = jax.random.uniform(ks[4], (H, FC), jnp.float32, -s_fc1, s_fc1)
    bfc1 = jax.random.uniform(ks[5], (1, FC), jnp.float32, -s_fc1, s_fc1)
    wfc2_t = jax.random.uniform(ks[6], (FC, NC), jnp.float32, -s_fc2, s_fc2)
    bfc2 = jax.random.uniform(ks[7], (1, NC), jnp.float32, -s_fc2, s_fc2)
    params = (wih_t, whh_t, bih, bhh, wfc1_t, bfc1, wfc2_t, bfc2)

    sequence = jax.random.normal(ks[8], (B, T, D), jnp.float32)
    n_frames = jnp.array([13, 9], dtype=jnp.int32)   # sorted descending (packed seq)

    feat_ref_v, out_ref_v = decoder_rnn_reference(sequence, n_frames, params)

    # bf16-MXU path (default, the perf-relevant one on v6e/v7x): f32 accumulation
    # and f32 gate math, so errors stay well within a few 1e-3.
    feat, out = decoder_rnn_forward(sequence, n_frames, params)
    feat = jax.block_until_ready(feat)
    out = jax.block_until_ready(out)
    assert jnp.allclose(feat, feat_ref_v, atol=3e-2, rtol=3e-2)
    assert jnp.allclose(out, out_ref_v, atol=3e-2, rtol=3e-2)

    # f32-MXU path: tight check against the f32 reference.
    feat32, out32 = decoder_rnn_forward(sequence, n_frames, params,
                                        mxu_dtype=jnp.float32)
    feat32 = jax.block_until_ready(feat32)
    out32 = jax.block_until_ready(out32)
    assert jnp.allclose(feat32, feat_ref_v, atol=1e-4, rtol=1e-4)
    assert jnp.allclose(out32, out_ref_v, atol=1e-4, rtol=1e-4)

    print("KERNEL_OK")
</pallas_src>

<mosaic_0001>
module attributes {stable_mosaic.version = 11 : i64} {
  func.func @decoder_rnn_kernel(%arg0: i32, %arg1: memref<64x256xbf16, #tpu.memory_space<vmem>>, %arg2: memref<8x1xi32, #tpu.memory_space<vmem>>, %arg3: memref<256x512xbf16, #tpu.memory_space<vmem>>, %arg4: memref<128x512xbf16, #tpu.memory_space<vmem>>, %arg5: memref<1x512xf32, #tpu.memory_space<vmem>>, %arg6: memref<128x128xbf16, #tpu.memory_space<vmem>>, %arg7: memref<1x128xf32, #tpu.memory_space<vmem>>, %arg8: memref<128x128xbf16, #tpu.memory_space<vmem>>, %arg9: memref<1x128xf32, #tpu.memory_space<vmem>>, %arg10: memref<8x128xf32, #tpu.memory_space<vmem>>, %arg11: memref<8x128xf32, #tpu.memory_space<vmem>>, %arg12: memref<8x128xf32, #tpu.memory_space<vmem>>, %arg13: memref<8x128xf32, #tpu.memory_space<vmem>>, %arg14: memref<64x512xf32, #tpu.memory_space<vmem>>) attributes {dimension_semantics = [#tpu.dimension_semantics<arbitrary>], iteration_bounds = array<i64: 2>, scalar_prefetch = 0 : i64, scratch_operands = 3 : i64, tpu.core_type = #tpu.core_type<tc>, window_params = [{transform_indices = @transform_0, window_bounds = array<i64: 64, 256>}, {pipeline_mode = #tpu.pipeline_mode<synchronous>, transform_indices = @transform_1, window_bounds = array<i64: 8, 1>}, {pipeline_mode = #tpu.pipeline_mode<synchronous>, transform_indices = @transform_2, window_bounds = array<i64: 256, 512>}, {pipeline_mode = #tpu.pipeline_mode<synchronous>, transform_indices = @transform_3, window_bounds = array<i64: 128, 512>}, {pipeline_mode = #tpu.pipeline_mode<synchronous>, transform_indices = @transform_4, window_bounds = array<i64: 1, 512>}, {pipeline_mode = #tpu.pipeline_mode<synchronous>, transform_indices = @transform_5, window_bounds = array<i64: 128, 128>}, {pipeline_mode = #tpu.pipeline_mode<synchronous>, transform_indices = @transform_6, window_bounds = array<i64: 1, 128>}, {pipeline_mode = #tpu.pipeline_mode<synchronous>, transform_indices = @transform_7, window_bounds = array<i64: 128, 128>}, {pipeline_mode = #tpu.pipeline_mode<synchronous>, transform_indices = @transform_8, window_bounds = array<i64: 1, 128>}, {pipeline_mode = #tpu.pipeline_mode<synchronous>, transform_indices = @transform_9, window_bounds = array<i64: 8, 128>}, {pipeline_mode = #tpu.pipeline_mode<synchronous>, transform_indices = @transform_10, window_bounds = array<i64: 8, 128>}]} {
    %c0_i32 = arith.constant 0 : i32
    %0 = arith.cmpi eq, %arg0, %c0_i32 : i32
    %1 = arith.extui %0 : i1 to i32
    %c0_i32_0 = arith.constant 0 : i32
    %2 = arith.cmpi ne, %1, %c0_i32_0 : i32
    scf.if %2 {
      %cst_86 = arith.constant 0.000000e+00 : f32
      %339 = vector.broadcast %cst_86 : f32 to vector<8x128xf32>
      %c0_87 = arith.constant 0 : index
      %c0_88 = arith.constant 0 : index
      %340 = vector.load %arg12[%c0_87, %c0_88] : memref<8x128xf32, #tpu.memory_space<vmem>>, vector<8x128xf32>
      tpu.vector_store %arg12[%c0_87, %c0_88], %339 {strides = array<i32>} : memref<8x128xf32, #tpu.memory_space<vmem>>, vector<8x128xf32>,
      %cst_89 = arith.constant 0.000000e+00 : f32
      %341 = vector.broadcast %cst_89 : f32 to vector<8x128xf32>
      %c0_90 = arith.constant 0 : index
      %c0_91 = arith.constant 0 : index
      %342 = vector.load %arg13[%c0_90, %c0_91] : memref<8x128xf32, #tpu.memory_space<vmem>>, vector<8x128xf32>
      tpu.vector_store %arg13[%c0_90, %c0_91], %341 {strides = array<i32>} : memref<8x128xf32, #tpu.memory_space<vmem>>, vector<8x128xf32>,
    } else {
    }
    %c0 = arith.constant 0 : index
    %c0_1 = arith.constant 0 : index
    %3 = vector.load %arg1[%c0, %c0_1] : memref<64x256xbf16, #tpu.memory_space<vmem>>, vector<64x256xbf16>
    %c0_2 = arith.constant 0 : index
    %c0_3 = arith.constant 0 : index
    %4 = vector.load %arg3[%c0_2, %c0_3] : memref<256x512xbf16, #tpu.memory_space<vmem>>, vector<256x512xbf16>
    %cst = arith.constant dense<0.000000e+00> : vector<64x512xf32>
    %5 = tpu.matmul %3, %4, %cst {dimension_numbers = #tpu.dot_dimension_numbers<[1], [0], [0], [1], [0, 0, 1, 1], [], []>} : vector<64x256xbf16>, vector<256x512xbf16>, vector<64x512xf32> -> vector<64x512xf32>
    %c0_4 = arith.constant 0 : index
    %c0_5 = arith.constant 0 : index
    %6 = vector.load %arg5[%c0_4, %c0_5] : memref<1x512xf32, #tpu.memory_space<vmem>>, vector<1x512xf32>
    %7 = vector.broadcast %6 : vector<1x512xf32> to vector<64x512xf32>
    %8 = arith.addf %5, %7 : vector<64x512xf32>
    %c0_6 = arith.constant 0 : index
    %c0_7 = arith.constant 0 : index
    %9 = vector.load %arg14[%c0_6, %c0_7] : memref<64x512xf32, #tpu.memory_space<vmem>>, vector<64x512xf32>
    tpu.vector_store %arg14[%c0_6, %c0_7], %8 {strides = array<i32>} : memref<64x512xf32, #tpu.memory_space<vmem>>, vector<64x512xf32>,
    %c0_8 = arith.constant 0 : index
    %c0_9 = arith.constant 0 : index
    %10 = vector.load %arg2[%c0_8, %c0_9] : memref<8x1xi32, #tpu.memory_space<vmem>>, vector<8x1xi32>
    %c8_i32 = arith.constant 8 : i32
    %11 = arith.muli %arg0, %c8_i32 : i32
    %c0_10 = arith.constant 0 : index
    %c0_11 = arith.constant 0 : index
    %12 = vector.load %arg12[%c0_10, %c0_11] : memref<8x128xf32, #tpu.memory_space<vmem>>, vector<8x128xf32>
    %c0_12 = arith.constant 0 : index
    %c0_13 = arith.constant 0 : index
    %13 = vector.load %arg13[%c0_12, %c0_13] : memref<8x128xf32, #tpu.memory_space<vmem>>, vector<8x128xf32>
    %c0_i32_14 = arith.constant 0 : i32
    %c8_i32_15 = arith.constant 8 : i32
    %14 = arith.muli %c0_i32_14, %c8_i32_15 : i32
    %15 = tpu.assume_multiple %14, 8 : i32
    %16 = arith.index_cast %15 : i32 to index
    %c0_16 = arith.constant 0 : index
    %17 = vector.load %arg14[%16, %c0_16] : memref<64x512xf32, #tpu.memory_space<vmem>>, vector<8x512xf32>
    %18 = arith.truncf %12 : vector<8x128xf32> to vector<8x128xbf16>
    %c0_17 = arith.constant 0 : index
    %c0_18 = arith.constant 0 : index
    %19 = vector.load %arg4[%c0_17, %c0_18] : memref<128x512xbf16, #tpu.memory_space<vmem>>, vector<128x512xbf16>
    %cst_19 = arith.constant dense<0.000000e+00> : vector<8x512xf32>
    %20 = tpu.matmul %18, %19, %cst_19 {dimension_numbers = #tpu.dot_dimension_numbers<[1], [0], [0], [1], [0, 0, 1, 1], [], []>} : vector<8x128xbf16>, vector<128x512xbf16>, vector<8x512xf32> -> vector<8x512xf32>
    %21 = arith.addf %17, %20 : vector<8x512xf32>
    %22 = vector.extract_strided_slice %21 {offsets = [0, 0], sizes = [8, 128], strides = [1, 1]} : vector<8x512xf32> to vector<8x128xf32>
    %23 = arith.negf %22 : vector<8x128xf32>
    %24 = math.exp %23 : vector<8x128xf32>
    %cst_20 = arith.constant 1.000000e+00 : f32
    %25 = vector.broadcast %cst_20 : f32 to vector<8x128xf32>
    %26 = arith.addf %25, %24 : vector<8x128xf32>
    %27 = arith.divf %25, %26 : vector<8x128xf32>
    %28 = vector.extract_strided_slice %21 {offsets = [0, 128], sizes = [8, 128], strides = [1, 1]} : vector<8x512xf32> to vector<8x128xf32>
    %29 = arith.negf %28 : vector<8x128xf32>
    %30 = math.exp %29 : vector<8x128xf32>
    %cst_21 = arith.constant 1.000000e+00 : f32
    %31 = vector.broadcast %cst_21 : f32 to vector<8x128xf32>
    %32 = arith.addf %31, %30 : vector<8x128xf32>
    %33 = arith.divf %31, %32 : vector<8x128xf32>
    %34 = vector.extract_strided_slice %21 {offsets = [0, 256], sizes = [8, 128], strides = [1, 1]} : vector<8x512xf32> to vector<8x128xf32>
    %35 = math.tanh %34 : vector<8x128xf32>
    %36 = vector.extract_strided_slice %21 {offsets = [0, 384], sizes = [8, 128], strides = [1, 1]} : vector<8x512xf32> to vector<8x128xf32>
    %37 = arith.negf %36 : vector<8x128xf32>
    %38 = math.exp %37 : vector<8x128xf32>
    %cst_22 = arith.constant 1.000000e+00 : f32
    %39 = vector.broadcast %cst_22 : f32 to vector<8x128xf32>
    %40 = arith.addf %39, %38 : vector<8x128xf32>
    %41 = arith.divf %39, %40 : vector<8x128xf32>
    %42 = arith.mulf %33, %13 : vector<8x128xf32>
    %43 = arith.mulf %27, %35 : vector<8x128xf32>
    %44 = arith.addf %42, %43 : vector<8x128xf32>
    %45 = math.tanh %44 : vector<8x128xf32>
    %46 = arith.mulf %41, %45 : vector<8x128xf32>
    %47 = arith.addi %11, %c0_i32_14 : i32
    %48 = vector.broadcast %47 : i32 to vector<8x1xi32>
    %49 = arith.cmpi slt, %48, %10 : vector<8x1xi32>
    %50 = vector.shape_cast %49 : vector<8x1xi1> to vector<8x1xi1>
    %51 = vector.broadcast %50 : vector<8x1xi1> to vector<8x128xi1>
    %52 = arith.select %51, %46, %12 : vector<8x128xi1>, vector<8x128xf32>
    %53 = arith.select %51, %44, %13 : vector<8x128xi1>, vector<8x128xf32>
    %c1_i32 = arith.constant 1 : i32
    %c8_i32_23 = arith.constant 8 : i32
    %54 = arith.muli %c1_i32, %c8_i32_23 : i32
    %55 = tpu.assume_multiple %54, 8 : i32
    %56 = arith.index_cast %55 : i32 to index
    %c0_24 = arith.constant 0 : index
    %57 = vector.load %arg14[%56, %c0_24] : memref<64x512xf32, #tpu.memory_space<vmem>>, vector<8x512xf32>
    %58 = arith.truncf %52 : vector<8x128xf32> to vector<8x128xbf16>
    %c0_25 = arith.constant 0 : index
    %c0_26 = arith.constant 0 : index
    %59 = vector.load %arg4[%c0_25, %c0_26] : memref<128x512xbf16, #tpu.memory_space<vmem>>, vector<128x512xbf16>
    %cst_27 = arith.constant dense<0.000000e+00> : vector<8x512xf32>
    %60 = tpu.matmul %58, %59, %cst_27 {dimension_numbers = #tpu.dot_dimension_numbers<[1], [0], [0], [1], [0, 0, 1, 1], [], []>} : vector<8x128xbf16>, vector<128x512xbf16>, vector<8x512xf32> -> vector<8x512xf32>
    %61 = arith.addf %57, %60 : vector<8x512xf32>
    %62 = vector.extract_strided_slice %61 {offsets = [0, 0], sizes = [8, 128], strides = [1, 1]} : vector<8x512xf32> to vector<8x128xf32>
    %63 = arith.negf %62 : vector<8x128xf32>
    %64 = math.exp %63 : vector<8x128xf32>
    %cst_28 = arith.constant 1.000000e+00 : f32
    %65 = vector.broadcast %cst_28 : f32 to vector<8x128xf32>
    %66 = arith.addf %65, %64 : vector<8x128xf32>
    %67 = arith.divf %65, %66 : vector<8x128xf32>
    %68 = vector.extract_strided_slice %61 {offsets = [0, 128], sizes = [8, 128], strides = [1, 1]} : vector<8x512xf32> to vector<8x128xf32>
    %69 = arith.negf %68 : vector<8x128xf32>
    %70 = math.exp %69 : vector<8x128xf32>
    %cst_29 = arith.constant 1.000000e+00 : f32
    %71 = vector.broadcast %cst_29 : f32 to vector<8x128xf32>
    %72 = arith.addf %71, %70 : vector<8x128xf32>
    %73 = arith.divf %71, %72 : vector<8x128xf32>
    %74 = vector.extract_strided_slice %61 {offsets = [0, 256], sizes = [8, 128], strides = [1, 1]} : vector<8x512xf32> to vector<8x128xf32>
    %75 = math.tanh %74 : vector<8x128xf32>
    %76 = vector.extract_strided_slice %61 {offsets = [0, 384], sizes = [8, 128], strides = [1, 1]} : vector<8x512xf32> to vector<8x128xf32>
    %77 = arith.negf %76 : vector<8x128xf32>
    %78 = math.exp %77 : vector<8x128xf32>
    %cst_30 = arith.constant 1.000000e+00 : f32
    %79 = vector.broadcast %cst_30 : f32 to vector<8x128xf32>
    %80 = arith.addf %79, %78 : vector<8x128xf32>
    %81 = arith.divf %79, %80 : vector<8x128xf32>
    %82 = arith.mulf %73, %53 : vector<8x128xf32>
    %83 = arith.mulf %67, %75 : vector<8x128xf32>
    %84 = arith.addf %82, %83 : vector<8x128xf32>
    %85 = math.tanh %84 : vector<8x128xf32>
    %86 = arith.mulf %81, %85 : vector<8x128xf32>
    %87 = arith.addi %11, %c1_i32 : i32
    %88 = vector.broadcast %87 : i32 to vector<8x1xi32>
    %89 = arith.cmpi slt, %88, %10 : vector<8x1xi32>
    %90 = vector.shape_cast %89 : vector<8x1xi1> to vector<8x1xi1>
    %91 = vector.broadcast %90 : vector<8x1xi1> to vector<8x128xi1>
    %92 = arith.select %91, %86, %52 : vector<8x128xi1>, vector<8x128xf32>
    %93 = arith.select %91, %84, %53 : vector<8x128xi1>, vector<8x128xf32>
    %c2_i32 = arith.constant 2 : i32
    %c8_i32_31 = arith.constant 8 : i32
    %94 = arith.muli %c2_i32, %c8_i32_31 : i32
    %95 = tpu.assume_multiple %94, 8 : i32
    %96 = arith.index_cast %95 : i32 to index
    %c0_32 = arith.constant 0 : index
    %97 = vector.load %arg14[%96, %c0_32] : memref<64x512xf32, #tpu.memory_space<vmem>>, vector<8x512xf32>
    %98 = arith.truncf %92 : vector<8x128xf32> to vector<8x128xbf16>
    %c0_33 = arith.constant 0 : index
    %c0_34 = arith.constant 0 : index
    %99 = vector.load %arg4[%c0_33, %c0_34] : memref<128x512xbf16, #tpu.memory_space<vmem>>, vector<128x512xbf16>
    %cst_35 = arith.constant dense<0.000000e+00> : vector<8x512xf32>
    %100 = tpu.matmul %98, %99, %cst_35 {dimension_numbers = #tpu.dot_dimension_numbers<[1], [0], [0], [1], [0, 0, 1, 1], [], []>} : vector<8x128xbf16>, vector<128x512xbf16>, vector<8x512xf32> -> vector<8x512xf32>
    %101 = arith.addf %97, %100 : vector<8x512xf32>
    %102 = vector.extract_strided_slice %101 {offsets = [0, 0], sizes = [8, 128], strides = [1, 1]} : vector<8x512xf32> to vector<8x128xf32>
    %103 = arith.negf %102 : vector<8x128xf32>
    %104 = math.exp %103 : vector<8x128xf32>
    %cst_36 = arith.constant 1.000000e+00 : f32
    %105 = vector.broadcast %cst_36 : f32 to vector<8x128xf32>
    %106 = arith.addf %105, %104 : vector<8x128xf32>
    %107 = arith.divf %105, %106 : vector<8x128xf32>
    %108 = vector.extract_strided_slice %101 {offsets = [0, 128], sizes = [8, 128], strides = [1, 1]} : vector<8x512xf32> to vector<8x128xf32>
    %109 = arith.negf %108 : vector<8x128xf32>
    %110 = math.exp %109 : vector<8x128xf32>
    %cst_37 = arith.constant 1.000000e+00 : f32
    %111 = vector.broadcast %cst_37 : f32 to vector<8x128xf32>
    %112 = arith.addf %111, %110 : vector<8x128xf32>
    %113 = arith.divf %111, %112 : vector<8x128xf32>
    %114 = vector.extract_strided_slice %101 {offsets = [0, 256], sizes = [8, 128], strides = [1, 1]} : vector<8x512xf32> to vector<8x128xf32>
    %115 = math.tanh %114 : vector<8x128xf32>
    %116 = vector.extract_strided_slice %101 {offsets = [0, 384], sizes = [8, 128], strides = [1, 1]} : vector<8x512xf32> to vector<8x128xf32>
    %117 = arith.negf %116 : vector<8x128xf32>
    %118 = math.exp %117 : vector<8x128xf32>
    %cst_38 = arith.constant 1.000000e+00 : f32
    %119 = vector.broadcast %cst_38 : f32 to vector<8x128xf32>
    %120 = arith.addf %119, %118 : vector<8x128xf32>
    %121 = arith.divf %119, %120 : vector<8x128xf32>
    %122 = arith.mulf %113, %93 : vector<8x128xf32>
    %123 = arith.mulf %107, %115 : vector<8x128xf32>
    %124 = arith.addf %122, %123 : vector<8x128xf32>
    %125 = math.tanh %124 : vector<8x128xf32>
    %126 = arith.mulf %121, %125 : vector<8x128xf32>
    %127 = arith.addi %11, %c2_i32 : i32
    %128 = vector.broadcast %127 : i32 to vector<8x1xi32>
    %129 = arith.cmpi slt, %128, %10 : vector<8x1xi32>
    %130 = vector.shape_cast %129 : vector<8x1xi1> to vector<8x1xi1>
    %131 = vector.broadcast %130 : vector<8x1xi1> to vector<8x128xi1>
    %132 = arith.select %131, %126, %92 : vector<8x128xi1>, vector<8x128xf32>
    %133 = arith.select %131, %124, %93 : vector<8x128xi1>, vector<8x128xf32>
    %c3_i32 = arith.constant 3 : i32
    %c8_i32_39 = arith.constant 8 : i32
    %134 = arith.muli %c3_i32, %c8_i32_39 : i32
    %135 = tpu.assume_multiple %134, 8 : i32
    %136 = arith.index_cast %135 : i32 to index
    %c0_40 = arith.constant 0 : index
    %137 = vector.load %arg14[%136, %c0_40] : memref<64x512xf32, #tpu.memory_space<vmem>>, vector<8x512xf32>
    %138 = arith.truncf %132 : vector<8x128xf32> to vector<8x128xbf16>
    %c0_41 = arith.constant 0 : index
    %c0_42 = arith.constant 0 : index
    %139 = vector.load %arg4[%c0_41, %c0_42] : memref<128x512xbf16, #tpu.memory_space<vmem>>, vector<128x512xbf16>
    %cst_43 = arith.constant dense<0.000000e+00> : vector<8x512xf32>
    %140 = tpu.matmul %138, %139, %cst_43 {dimension_numbers = #tpu.dot_dimension_numbers<[1], [0], [0], [1], [0, 0, 1, 1], [], []>} : vector<8x128xbf16>, vector<128x512xbf16>, vector<8x512xf32> -> vector<8x512xf32>
    %141 = arith.addf %137, %140 : vector<8x512xf32>
    %142 = vector.extract_strided_slice %141 {offsets = [0, 0], sizes = [8, 128], strides = [1, 1]} : vector<8x512xf32> to vector<8x128xf32>
    %143 = arith.negf %142 : vector<8x128xf32>
    %144 = math.exp %143 : vector<8x128xf32>
    %cst_44 = arith.constant 1.000000e+00 : f32
    %145 = vector.broadcast %cst_44 : f32 to vector<8x128xf32>
    %146 = arith.addf %145, %144 : vector<8x128xf32>
    %147 = arith.divf %145, %146 : vector<8x128xf32>
    %148 = vector.extract_strided_slice %141 {offsets = [0, 128], sizes = [8, 128], strides = [1, 1]} : vector<8x512xf32> to vector<8x128xf32>
    %149 = arith.negf %148 : vector<8x128xf32>
    %150 = math.exp %149 : vector<8x128xf32>
    %cst_45 = arith.constant 1.000000e+00 : f32
    %151 = vector.broadcast %cst_45 : f32 to vector<8x128xf32>
    %152 = arith.addf %151, %150 : vector<8x128xf32>
    %153 = arith.divf %151, %152 : vector<8x128xf32>
    %154 = vector.extract_strided_slice %141 {offsets = [0, 256], sizes = [8, 128], strides = [1, 1]} : vector<8x512xf32> to vector<8x128xf32>
    %155 = math.tanh %154 : vector<8x128xf32>
    %156 = vector.extract_strided_slice %141 {offsets = [0, 384], sizes = [8, 128], strides = [1, 1]} : vector<8x512xf32> to vector<8x128xf32>
    %157 = arith.negf %156 : vector<8x128xf32>
    %158 = math.exp %157 : vector<8x128xf32>
    %cst_46 = arith.constant 1.000000e+00 : f32
    %159 = vector.broadcast %cst_46 : f32 to vector<8x128xf32>
    %160 = arith.addf %159, %158 : vector<8x128xf32>
    %161 = arith.divf %159, %160 : vector<8x128xf32>
    %162 = arith.mulf %153, %133 : vector<8x128xf32>
    %163 = arith.mulf %147, %155 : vector<8x128xf32>
    %164 = arith.addf %162, %163 : vector<8x128xf32>
    %165 = math.tanh %164 : vector<8x128xf32>
    %166 = arith.mulf %161, %165 : vector<8x128xf32>
    %167 = arith.addi %11, %c3_i32 : i32
    %168 = vector.broadcast %167 : i32 to vector<8x1xi32>
    %169 = arith.cmpi slt, %168, %10 : vector<8x1xi32>
    %170 = vector.shape_cast %169 : vector<8x1xi1> to vector<8x1xi1>
    %171 = vector.broadcast %170 : vector<8x1xi1> to vector<8x128xi1>
    %172 = arith.select %171, %166, %132 : vector<8x128xi1>, vector<8x128xf32>
    %173 = arith.select %171, %164, %133 : vector<8x128xi1>, vector<8x128xf32>
    %c4_i32 = arith.constant 4 : i32
    %c8_i32_47 = arith.constant 8 : i32
    %174 = arith.muli %c4_i32, %c8_i32_47 : i32
    %175 = tpu.assume_multiple %174, 8 : i32
    %176 = arith.index_cast %175 : i32 to index
    %c0_48 = arith.constant 0 : index
    %177 = vector.load %arg14[%176, %c0_48] : memref<64x512xf32, #tpu.memory_space<vmem>>, vector<8x512xf32>
    %178 = arith.truncf %172 : vector<8x128xf32> to vector<8x128xbf16>
    %c0_49 = arith.constant 0 : index
    %c0_50 = arith.constant 0 : index
    %179 = vector.load %arg4[%c0_49, %c0_50] : memref<128x512xbf16, #tpu.memory_space<vmem>>, vector<128x512xbf16>
    %cst_51 = arith.constant dense<0.000000e+00> : vector<8x512xf32>
    %180 = tpu.matmul %178, %179, %cst_51 {dimension_numbers = #tpu.dot_dimension_numbers<[1], [0], [0], [1], [0, 0, 1, 1], [], []>} : vector<8x128xbf16>, vector<128x512xbf16>, vector<8x512xf32> -> vector<8x512xf32>
    %181 = arith.addf %177, %180 : vector<8x512xf32>
    %182 = vector.extract_strided_slice %181 {offsets = [0, 0], sizes = [8, 128], strides = [1, 1]} : vector<8x512xf32> to vector<8x128xf32>
    %183 = arith.negf %182 : vector<8x128xf32>
    %184 = math.exp %183 : vector<8x128xf32>
    %cst_52 = arith.constant 1.000000e+00 : f32
    %185 = vector.broadcast %cst_52 : f32 to vector<8x128xf32>
    %186 = arith.addf %185, %184 : vector<8x128xf32>
    %187 = arith.divf %185, %186 : vector<8x128xf32>
    %188 = vector.extract_strided_slice %181 {offsets = [0, 128], sizes = [8, 128], strides = [1, 1]} : vector<8x512xf32> to vector<8x128xf32>
    %189 = arith.negf %188 : vector<8x128xf32>
    %190 = math.exp %189 : vector<8x128xf32>
    %cst_53 = arith.constant 1.000000e+00 : f32
    %191 = vector.broadcast %cst_53 : f32 to vector<8x128xf32>
    %192 = arith.addf %191, %190 : vector<8x128xf32>
    %193 = arith.divf %191, %192 : vector<8x128xf32>
    %194 = vector.extract_strided_slice %181 {offsets = [0, 256], sizes = [8, 128], strides = [1, 1]} : vector<8x512xf32> to vector<8x128xf32>
    %195 = math.tanh %194 : vector<8x128xf32>
    %196 = vector.extract_strided_slice %181 {offsets = [0, 384], sizes = [8, 128], strides = [1, 1]} : vector<8x512xf32> to vector<8x128xf32>
    %197 = arith.negf %196 : vector<8x128xf32>
    %198 = math.exp %197 : vector<8x128xf32>
    %cst_54 = arith.constant 1.000000e+00 : f32
    %199 = vector.broadcast %cst_54 : f32 to vector<8x128xf32>
    %200 = arith.addf %199, %198 : vector<8x128xf32>
    %201 = arith.divf %199, %200 : vector<8x128xf32>
    %202 = arith.mulf %193, %173 : vector<8x128xf32>
    %203 = arith.mulf %187, %195 : vector<8x128xf32>
    %204 = arith.addf %202, %203 : vector<8x128xf32>
    %205 = math.tanh %204 : vector<8x128xf32>
    %206 = arith.mulf %201, %205 : vector<8x128xf32>
    %207 = arith.addi %11, %c4_i32 : i32
    %208 = vector.broadcast %207 : i32 to vector<8x1xi32>
    %209 = arith.cmpi slt, %208, %10 : vector<8x1xi32>
    %210 = vector.shape_cast %209 : vector<8x1xi1> to vector<8x1xi1>
    %211 = vector.broadcast %210 : vector<8x1xi1> to vector<8x128xi1>
    %212 = arith.select %211, %206, %172 : vector<8x128xi1>, vector<8x128xf32>
    %213 = arith.select %211, %204, %173 : vector<8x128xi1>, vector<8x128xf32>
    %c5_i32 = arith.constant 5 : i32
    %c8_i32_55 = arith.constant 8 : i32
    %214 = arith.muli %c5_i32, %c8_i32_55 : i32
    %215 = tpu.assume_multiple %214, 8 : i32
    %216 = arith.index_cast %215 : i32 to index
    %c0_56 = arith.constant 0 : index
    %217 = vector.load %arg14[%216, %c0_56] : memref<64x512xf32, #tpu.memory_space<vmem>>, vector<8x512xf32>
    %218 = arith.truncf %212 : vector<8x128xf32> to vector<8x128xbf16>
    %c0_57 = arith.constant 0 : index
    %c0_58 = arith.constant 0 : index
    %219 = vector.load %arg4[%c0_57, %c0_58] : memref<128x512xbf16, #tpu.memory_space<vmem>>, vector<128x512xbf16>
    %cst_59 = arith.constant dense<0.000000e+00> : vector<8x512xf32>
    %220 = tpu.matmul %218, %219, %cst_59 {dimension_numbers = #tpu.dot_dimension_numbers<[1], [0], [0], [1], [0, 0, 1, 1], [], []>} : vector<8x128xbf16>, vector<128x512xbf16>, vector<8x512xf32> -> vector<8x512xf32>
    %221 = arith.addf %217, %220 : vector<8x512xf32>
    %222 = vector.extract_strided_slice %221 {offsets = [0, 0], sizes = [8, 128], strides = [1, 1]} : vector<8x512xf32> to vector<8x128xf32>
    %223 = arith.negf %222 : vector<8x128xf32>
    %224 = math.exp %223 : vector<8x128xf32>
    %cst_60 = arith.constant 1.000000e+00 : f32
    %225 = vector.broadcast %cst_60 : f32 to vector<8x128xf32>
    %226 = arith.addf %225, %224 : vector<8x128xf32>
    %227 = arith.divf %225, %226 : vector<8x128xf32>
    %228 = vector.extract_strided_slice %221 {offsets = [0, 128], sizes = [8, 128], strides = [1, 1]} : vector<8x512xf32> to vector<8x128xf32>
    %229 = arith.negf %228 : vector<8x128xf32>
    %230 = math.exp %229 : vector<8x128xf32>
    %cst_61 = arith.constant 1.000000e+00 : f32
    %231 = vector.broadcast %cst_61 : f32 to vector<8x128xf32>
    %232 = arith.addf %231, %230 : vector<8x128xf32>
    %233 = arith.divf %231, %232 : vector<8x128xf32>
    %234 = vector.extract_strided_slice %221 {offsets = [0, 256], sizes = [8, 128], strides = [1, 1]} : vector<8x512xf32> to vector<8x128xf32>
    %235 = math.tanh %234 : vector<8x128xf32>
    %236 = vector.extract_strided_slice %221 {offsets = [0, 384], sizes = [8, 128], strides = [1, 1]} : vector<8x512xf32> to vector<8x128xf32>
    %237 = arith.negf %236 : vector<8x128xf32>
    %238 = math.exp %237 : vector<8x128xf32>
    %cst_62 = arith.constant 1.000000e+00 : f32
    %239 = vector.broadcast %cst_62 : f32 to vector<8x128xf32>
    %240 = arith.addf %239, %238 : vector<8x128xf32>
    %241 = arith.divf %239, %240 : vector<8x128xf32>
    %242 = arith.mulf %233, %213 : vector<8x128xf32>
    %243 = arith.mulf %227, %235 : vector<8x128xf32>
    %244 = arith.addf %242, %243 : vector<8x128xf32>
    %245 = math.tanh %244 : vector<8x128xf32>
    %246 = arith.mulf %241, %245 : vector<8x128xf32>
    %247 = arith.addi %11, %c5_i32 : i32
    %248 = vector.broadcast %247 : i32 to vector<8x1xi32>
    %249 = arith.cmpi slt, %248, %10 : vector<8x1xi32>
    %250 = vector.shape_cast %249 : vector<8x1xi1> to vector<8x1xi1>
    %251 = vector.broadcast %250 : vector<8x1xi1> to vector<8x128xi1>
    %252 = arith.select %251, %246, %212 : vector<8x128xi1>, vector<8x128xf32>
    %253 = arith.select %251, %244, %213 : vector<8x128xi1>, vector<8x128xf32>
    %c6_i32 = arith.constant 6 : i32
    %c8_i32_63 = arith.constant 8 : i32
    %254 = arith.muli %c6_i32, %c8_i32_63 : i32
    %255 = tpu.assume_multiple %254, 8 : i32
    %256 = arith.index_cast %255 : i32 to index
    %c0_64 = arith.constant 0 : index
    %257 = vector.load %arg14[%256, %c0_64] : memref<64x512xf32, #tpu.memory_space<vmem>>, vector<8x512xf32>
    %258 = arith.truncf %252 : vector<8x128xf32> to vector<8x128xbf16>
    %c0_65 = arith.constant 0 : index
    %c0_66 = arith.constant 0 : index
    %259 = vector.load %arg4[%c0_65, %c0_66] : memref<128x512xbf16, #tpu.memory_space<vmem>>, vector<128x512xbf16>
    %cst_67 = arith.constant dense<0.000000e+00> : vector<8x512xf32>
    %260 = tpu.matmul %258, %259, %cst_67 {dimension_numbers = #tpu.dot_dimension_numbers<[1], [0], [0], [1], [0, 0, 1, 1], [], []>} : vector<8x128xbf16>, vector<128x512xbf16>, vector<8x512xf32> -> vector<8x512xf32>
    %261 = arith.addf %257, %260 : vector<8x512xf32>
    %262 = vector.extract_strided_slice %261 {offsets = [0, 0], sizes = [8, 128], strides = [1, 1]} : vector<8x512xf32> to vector<8x128xf32>
    %263 = arith.negf %262 : vector<8x128xf32>
    %264 = math.exp %263 : vector<8x128xf32>
    %cst_68 = arith.constant 1.000000e+00 : f32
    %265 = vector.broadcast %cst_68 : f32 to vector<8x128xf32>
    %266 = arith.addf %265, %264 : vector<8x128xf32>
    %267 = arith.divf %265, %266 : vector<8x128xf32>
    %268 = vector.extract_strided_slice %261 {offsets = [0, 128], sizes = [8, 128], strides = [1, 1]} : vector<8x512xf32> to vector<8x128xf32>
    %269 = arith.negf %268 : vector<8x128xf32>
    %270 = math.exp %269 : vector<8x128xf32>
    %cst_69 = arith.constant 1.000000e+00 : f32
    %271 = vector.broadcast %cst_69 : f32 to vector<8x128xf32>
    %272 = arith.addf %271, %270 : vector<8x128xf32>
    %273 = arith.divf %271, %272 : vector<8x128xf32>
    %274 = vector.extract_strided_slice %261 {offsets = [0, 256], sizes = [8, 128], strides = [1, 1]} : vector<8x512xf32> to vector<8x128xf32>
    %275 = math.tanh %274 : vector<8x128xf32>
    %276 = vector.extract_strided_slice %261 {offsets = [0, 384], sizes = [8, 128], strides = [1, 1]} : vector<8x512xf32> to vector<8x128xf32>
    %277 = arith.negf %276 : vector<8x128xf32>
    %278 = math.exp %277 : vector<8x128xf32>
    %cst_70 = arith.constant 1.000000e+00 : f32
    %279 = vector.broadcast %cst_70 : f32 to vector<8x128xf32>
    %280 = arith.addf %279, %278 : vector<8x128xf32>
    %281 = arith.divf %279, %280 : vector<8x128xf32>
    %282 = arith.mulf %273, %253 : vector<8x128xf32>
    %283 = arith.mulf %267, %275 : vector<8x128xf32>
    %284 = arith.addf %282, %283 : vector<8x128xf32>
    %285 = math.tanh %284 : vector<8x128xf32>
    %286 = arith.mulf %281, %285 : vector<8x128xf32>
    %287 = arith.addi %11, %c6_i32 : i32
    %288 = vector.broadcast %287 : i32 to vector<8x1xi32>
    %289 = arith.cmpi slt, %288, %10 : vector<8x1xi32>
    %290 = vector.shape_cast %289 : vector<8x1xi1> to vector<8x1xi1>
    %291 = vector.broadcast %290 : vector<8x1xi1> to vector<8x128xi1>
    %292 = arith.select %291, %286, %252 : vector<8x128xi1>, vector<8x128xf32>
    %293 = arith.select %291, %284, %253 : vector<8x128xi1>, vector<8x128xf32>
    %c7_i32 = arith.constant 7 : i32
    %c8_i32_71 = arith.constant 8 : i32
    %294 = arith.muli %c7_i32, %c8_i32_71 : i32
    %295 = tpu.assume_multiple %294, 8 : i32
    %296 = arith.index_cast %295 : i32 to index
    %c0_72 = arith.constant 0 : index
    %297 = vector.load %arg14[%296, %c0_72] : memref<64x512xf32, #tpu.memory_space<vmem>>, vector<8x512xf32>
    %298 = arith.truncf %292 : vector<8x128xf32> to vector<8x128xbf16>
    %c0_73 = arith.constant 0 : index
    %c0_74 = arith.constant 0 : index
    %299 = vector.load %arg4[%c0_73, %c0_74] : memref<128x512xbf16, #tpu.memory_space<vmem>>, vector<128x512xbf16>
    %cst_75 = arith.constant dense<0.000000e+00> : vector<8x512xf32>
    %300 = tpu.matmul %298, %299, %cst_75 {dimension_numbers = #tpu.dot_dimension_numbers<[1], [0], [0], [1], [0, 0, 1, 1], [], []>} : vector<8x128xbf16>, vector<128x512xbf16>, vector<8x512xf32> -> vector<8x512xf32>
    %301 = arith.addf %297, %300 : vector<8x512xf32>
    %302 = vector.extract_strided_slice %301 {offsets = [0, 0], sizes = [8, 128], strides = [1, 1]} : vector<8x512xf32> to vector<8x128xf32>
    %303 = arith.negf %302 : vector<8x128xf32>
    %304 = math.exp %303 : vector<8x128xf32>
    %cst_76 = arith.constant 1.000000e+00 : f32
    %305 = vector.broadcast %cst_76 : f32 to vector<8x128xf32>
    %306 = arith.addf %305, %304 : vector<8x128xf32>
    %307 = arith.divf %305, %306 : vector<8x128xf32>
    %308 = vector.extract_strided_slice %301 {offsets = [0, 128], sizes = [8, 128], strides = [1, 1]} : vector<8x512xf32> to vector<8x128xf32>
    %309 = arith.negf %308 : vector<8x128xf32>
    %310 = math.exp %309 : vector<8x128xf32>
    %cst_77 = arith.constant 1.000000e+00 : f32
    %311 = vector.broadcast %cst_77 : f32 to vector<8x128xf32>
    %312 = arith.addf %311, %310 : vector<8x128xf32>
    %313 = arith.divf %311, %312 : vector<8x128xf32>
    %314 = vector.extract_strided_slice %301 {offsets = [0, 256], sizes = [8, 128], strides = [1, 1]} : vector<8x512xf32> to vector<8x128xf32>
    %315 = math.tanh %314 : vector<8x128xf32>
    %316 = vector.extract_strided_slice %301 {offsets = [0, 384], sizes = [8, 128], strides = [1, 1]} : vector<8x512xf32> to vector<8x128xf32>
    %317 = arith.negf %316 : vector<8x128xf32>
    %318 = math.exp %317 : vector<8x128xf32>
    %cst_78 = arith.constant 1.000000e+00 : f32
    %319 = vector.broadcast %cst_78 : f32 to vector<8x128xf32>
    %320 = arith.addf %319, %318 : vector<8x128xf32>
    %321 = arith.divf %319, %320 : vector<8x128xf32>
    %322 = arith.mulf %313, %293 : vector<8x128xf32>
    %323 = arith.mulf %307, %315 : vector<8x128xf32>
    %324 = arith.addf %322, %323 : vector<8x128xf32>
    %325 = math.tanh %324 : vector<8x128xf32>
    %326 = arith.mulf %321, %325 : vector<8x128xf32>
    %327 = arith.addi %11, %c7_i32 : i32
    %328 = vector.broadcast %327 : i32 to vector<8x1xi32>
    %329 = arith.cmpi slt, %328, %10 : vector<8x1xi32>
    %330 = vector.shape_cast %329 : vector<8x1xi1> to vector<8x1xi1>
    %331 = vector.broadcast %330 : vector<8x1xi1> to vector<8x128xi1>
    %332 = arith.select %331, %326, %292 : vector<8x128xi1>, vector<8x128xf32>
    %333 = arith.select %331, %324, %293 : vector<8x128xi1>, vector<8x128xf32>
    %c8_i32_79 = arith.constant 8 : i32
    %c0_80 = arith.constant 0 : index
    %c0_81 = arith.constant 0 : index
    %334 = vector.load %arg12[%c0_80, %c0_81] : memref<8x128xf32, #tpu.memory_space<vmem>>, vector<8x128xf32>
    tpu.vector_store %arg12[%c0_80, %c0_81], %332 {strides = array<i32>} : memref<8x128xf32, #tpu.memory_space<vmem>>, vector<8x128xf32>,
    %c0_82 = arith.constant 0 : index
    %c0_83 = arith.constant 0 : index
    %335 = vector.load %arg13[%c0_82, %c0_83] : memref<8x128xf32, #tpu.memory_space<vmem>>, vector<8x128xf32>
    tpu.vector_store %arg13[%c0_82, %c0_83], %333 {strides = array<i32>} : memref<8x128xf32, #tpu.memory_space<vmem>>, vector<8x128xf32>,
    %c1_i32_84 = arith.constant 1 : i32
    %336 = arith.cmpi eq, %arg0, %c1_i32_84 : i32
    %337 = arith.extui %336 : i1 to i32
    %c0_i32_85 = arith.constant 0 : i32
    %338 = arith.cmpi ne, %337, %c0_i32_85 : i32
    scf.if %338 {
      %339 = arith.truncf %332 : vector<8x128xf32> to vector<8x128xbf16>
      %c0_86 = arith.constant 0 : index
      %c0_87 = arith.constant 0 : index
      %340 = vector.load %arg6[%c0_86, %c0_87] : memref<128x128xbf16, #tpu.memory_space<vmem>>, vector<128x128xbf16>
      %cst_88 = arith.constant dense<0.000000e+00> : vector<8x128xf32>
      %341 = tpu.matmul %339, %340, %cst_88 {dimension_numbers = #tpu.dot_dimension_numbers<[1], [0], [0], [1], [0, 0, 1, 1], [], []>} : vector<8x128xbf16>, vector<128x128xbf16>, vector<8x128xf32> -> vector<8x128xf32>
      %c0_89 = arith.constant 0 : index
      %c0_90 = arith.constant 0 : index
      %342 = vector.load %arg7[%c0_89, %c0_90] : memref<1x128xf32, #tpu.memory_space<vmem>>, vector<1x128xf32>
      %343 = vector.broadcast %342 : vector<1x128xf32> to vector<8x128xf32>
      %344 = arith.addf %341, %343 : vector<8x128xf32>
      %cst_91 = arith.constant 0.000000e+00 : f32
      %345 = vector.broadcast %cst_91 : f32 to vector<8x128xf32>
      %346 = arith.maximumf %344, %345 : vector<8x128xf32>
      %c0_92 = arith.constant 0 : index
      %c0_93 = arith.constant 0 : index
      %347 = vector.load %arg10[%c0_92, %c0_93] : memref<8x128xf32, #tpu.memory_space<vmem>>, vector<8x128xf32>
      tpu.vector_store %arg10[%c0_92, %c0_93], %346 {strides = array<i32>} : memref<8x128xf32, #tpu.memory_space<vmem>>, vector<8x128xf32>,
      %348 = arith.truncf %346 : vector<8x128xf32> to vector<8x128xbf16>
      %c0_94 = arith.constant 0 : index
      %c0_95 = arith.constant 0 : index
      %349 = vector.load %arg8[%c0_94, %c0_95] : memref<128x128xbf16, #tpu.memory_space<vmem>>, vector<128x128xbf16>
      %cst_96 = arith.constant dense<0.000000e+00> : vector<8x128xf32>
      %350 = tpu.matmul %348, %349, %cst_96 {dimension_numbers = #tpu.dot_dimension_numbers<[1], [0], [0], [1], [0, 0, 1, 1], [], []>} : vector<8x128xbf16>, vector<128x128xbf16>, vector<8x128xf32> -> vector<8x128xf32>
      %c0_97 = arith.constant 0 : index
      %c0_98 = arith.constant 0 : index
      %351 = vector.load %arg9[%c0_97, %c0_98] : memref<1x128xf32, #tpu.memory_space<vmem>>, vector<1x128xf32>
      %352 = vector.broadcast %351 : vector<1x128xf32> to vector<8x128xf32>
      %353 = arith.addf %350, %352 : vector<8x128xf32>
      %c0_99 = arith.constant 0 : index
      %c0_100 = arith.constant 0 : index
      %354 = vector.load %arg11[%c0_99, %c0_100] : memref<8x128xf32, #tpu.memory_space<vmem>>, vector<8x128xf32>
      tpu.vector_store %arg11[%c0_99, %c0_100], %353 {strides = array<i32>} : memref<8x128xf32, #tpu.memory_space<vmem>>, vector<8x128xf32>,
    } else {
    }
    return
  }
  func.func @transform_0(%arg0: i32) -> (i32, i32) {
    %c0_i32 = arith.constant 0 : i32
    %c0_i32_0 = arith.constant 0 : i32
    return %arg0, %c0_i32 : i32, i32
  }
  func.func @transform_1(%arg0: i32) -> (i32, i32) {
    %c0_i32 = arith.constant 0 : i32
    %c0_i32_0 = arith.constant 0 : i32
    %c0_i32_1 = arith.constant 0 : i32
    return %c0_i32, %c0_i32_0 : i32, i32
  }
  func.func @transform_2(%arg0: i32) -> (i32, i32) {
    %c0_i32 = arith.constant 0 : i32
    %c0_i32_0 = arith.constant 0 : i32
    %c0_i32_1 = arith.constant 0 : i32
    return %c0_i32, %c0_i32_0 : i32, i32
  }
  func.func @transform_3(%arg0: i32) -> (i32, i32) {
    %c0_i32 = arith.constant 0 : i32
    %c0_i32_0 = arith.constant 0 : i32
    %c0_i32_1 = arith.constant 0 : i32
    return %c0_i32, %c0_i32_0 : i32, i32
  }
  func.func @transform_4(%arg0: i32) -> (i32, i32) {
    %c0_i32 = arith.constant 0 : i32
    %c0_i32_0 = arith.constant 0 : i32
    %c0_i32_1 = arith.constant 0 : i32
    return %c0_i32, %c0_i32_0 : i32, i32
  }
  func.func @transform_5(%arg0: i32) -> (i32, i32) {
    %c0_i32 = arith.constant 0 : i32
    %c0_i32_0 = arith.constant 0 : i32
    %c0_i32_1 = arith.constant 0 : i32
    return %c0_i32, %c0_i32_0 : i32, i32
  }
  func.func @transform_6(%arg0: i32) -> (i32, i32) {
    %c0_i32 = arith.constant 0 : i32
    %c0_i32_0 = arith.constant 0 : i32
    %c0_i32_1 = arith.constant 0 : i32
    return %c0_i32, %c0_i32_0 : i32, i32
  }
  func.func @transform_7(%arg0: i32) -> (i32, i32) {
    %c0_i32 = arith.constant 0 : i32
    %c0_i32_0 = arith.constant 0 : i32
    %c0_i32_1 = arith.constant 0 : i32
    return %c0_i32, %c0_i32_0 : i32, i32
  }
  func.func @transform_8(%arg0: i32) -> (i32, i32) {
    %c0_i32 = arith.constant 0 : i32
    %c0_i32_0 = arith.constant 0 : i32
    %c0_i32_1 = arith.constant 0 : i32
    return %c0_i32, %c0_i32_0 : i32, i32
  }
  func.func @transform_9(%arg0: i32) -> (i32, i32) {
    %c0_i32 = arith.constant 0 : i32
    %c0_i32_0 = arith.constant 0 : i32
    %c0_i32_1 = arith.constant 0 : i32
    return %c0_i32, %c0_i32_0 : i32, i32
  }
  func.func @transform_10(%arg0: i32) -> (i32, i32) {
    %c0_i32 = arith.constant 0 : i32
    %c0_i32_0 = arith.constant 0 : i32
    %c0_i32_1 = arith.constant 0 : i32
    return %c0_i32, %c0_i32_0 : i32, i32
  }
}

</mosaic_0001>

<llo_original>
// kernel: tpu_custom_call.1
$region0: #{tpu_custom_call.1}
  #allocation0 [shape = 'u32[]', space=smem, size = 0x4, offset = 0x4, fixed_abs, tag = 'smem constant byte address 0x4 - core index']
  #allocation1 [shape = 'u32[144,128]{1,0:T(1,128)}', space=vmem, size = 0x12000, scoped, tag = 'internal scratch']
  #allocation2 [shape = 'f32[8,128]{1,0:T(8,128)}', space=vmem, size = 0x1000, scoped, tag = 'scratch operand']
  #allocation3 [shape = 'f32[8,128]{1,0:T(8,128)}', space=vmem, size = 0x1000, scoped, tag = 'scratch operand']
  #allocation4 [shape = 'f32[64,512]{1,0:T(8,128)}', space=vmem, size = 0x20000, scoped, tag = 'scratch operand']
  %s0 = inlined_call_operand.hbm [shape: bf16[128,256], index: 0, kind: input, shape index: {}]
  %s1 = inlined_call_operand.vmem [shape: s32[8,1], index: 1, kind: input, shape index: {}]
  %s2 = inlined_call_operand.hbm [shape: bf16[256,512], index: 2, kind: input, shape index: {}]
  %s3 = inlined_call_operand.hbm [shape: bf16[128,512], index: 3, kind: input, shape index: {}]
  %s4 = inlined_call_operand.vmem [shape: f32[1,512], index: 4, kind: input, shape index: {}]
  %s5 = inlined_call_operand.hbm [shape: bf16[128,128], index: 5, kind: input, shape index: {}]
  %s6 = inlined_call_operand.vmem [shape: f32[1,128], index: 6, kind: input, shape index: {}]
  %s7 = inlined_call_operand.hbm [shape: bf16[128,128], index: 7, kind: input, shape index: {}]
  %s8 = inlined_call_operand.vmem [shape: f32[1,128], index: 8, kind: input, shape index: {}]
  %s9 = inlined_call_operand.hbm [shape: f32[8,128], index: 9, kind: output, shape index: {0}]
  %s10 = inlined_call_operand.hbm [shape: f32[8,128], index: 10, kind: output, shape index: {1}]
  %11 = xla_tuple %s9, %s10
  %s12 = sld [smem:[#allocation0]]
  $region105: #{tpu_custom_call.1} parent=0
    _
  %s14 = ssub.s32 1, %s12
  %s15 = scalar_select 0, %s14, %s12
  $region1: #{tpu_custom_call.1} parent=0
    #allocation5 [shape = 'u8[65536]{0}', space=vmem, size = 0x10000, scoped, tag = 'input window, operand 0']
    #allocation6 [shape = 's32[2]{0}', space=sflag, size = 0x8, scoped, tag = 'scoped memory for tpu_custom_call.1']
    #allocation7 [shape = 's32[2]{0}', space=sflag, size = 0x8, scoped, tag = 'scoped memory for tpu_custom_call.1']
    #allocation8 [shape = 'u8[262144]{0}', space=vmem, size = 0x40000, scoped, tag = 'input window, operand 2, single buffered']
    #allocation9 [shape = 's32[1]{0}', space=sflag, size = 0x4, scoped, tag = 'scoped memory for tpu_custom_call.1']
    #allocation10 [shape = 'u8[131072]{0}', space=vmem, size = 0x20000, scoped, tag = 'input window, operand 3, single buffered']
    #allocation11 [shape = 'u8[32768]{0}', space=vmem, size = 0x8000, scoped, tag = 'input window, operand 5, single buffered']
    #allocation12 [shape = 's32[1]{0}', space=sflag, size = 0x4, scoped, tag = 'scoped memory for tpu_custom_call.1']
    #allocation13 [shape = 'u8[32768]{0}', space=vmem, size = 0x8000, scoped, tag = 'input window, operand 7, single buffered']
    #allocation14 [shape = 'u8[4096]{0}', space=vmem, size = 0x1000, scoped, tag = 'output window, operand 0, single buffered']
    #allocation15 [shape = 'u8[4096]{0}', space=vmem, size = 0x1000, scoped, tag = 'output window, operand 1, single buffered']
    #allocation16 [shape = 's32[1]{0}', space=sflag, size = 0x4, scoped, tag = 'scoped memory for tpu_custom_call.1']
    %16 = vsyncpa [#allocation6], 0
    %s17 = scalar_lea.sflag [#allocation6], 1
    %18 = vsyncpa %s17, 0
    %19 = vsyncpa [#allocation9], 0
    %20 = vsyncpa [#allocation12], 0
    %21 = vsyncpa [#allocation7], 0
    %22 = vsyncpa [#allocation16], 0
    loop: start=0, step=1, limit=4
    $region2: #{tpu_custom_call.1} parent=1 // loop_pre_header
      _
    $region3: #{tpu_custom_call.1} parent=1 // loop_header
      %s24 = sphi 0, %s28
      %p25 = scmp.ge.s32.totalorder %s24, 4
      %s34 = sphi 0, %s36
      %s37 = sphi 0, %s34
      %s38 = sphi 0, %s37
      %s54 = sphi 0, %s38
      %s58 = sphi 0, %s58
      %s60 = sphi 0, %s58
      %s61 = sphi 0, %s60
      %s75 = sphi 0, %s61
      %s79 = sphi 0, %s79
      %s81 = sphi 0, %s79
      %s82 = sphi 0, %s81
      %s96 = sphi 0, %s82
      %s100 = sphi 0, %s100
      %s102 = sphi 0, %s100
      %s103 = sphi 0, %s102
      %s117 = sphi 0, %s103
      %s121 = sphi 0, %s121
      %s123 = sphi 0, %s121
      %s124 = sphi 0, %s123
      %s138 = sphi 0, %s124
      %s142 = sphi 0, %s142
      %s144 = sphi 0, %s142
      %s145 = sphi 0, %s144
      %s159 = sphi 0, %s145
      %s163 = sphi 0, %s163
      %s165 = sphi 0, %s163
      %s166 = sphi 0, %s165
      %s180 = sphi 0, %s166
      %s184 = sphi 0, %s184
      %s186 = sphi 0, %s184
      %s187 = sphi 0, %s186
      %s201 = sphi 0, %s187
      %s205 = sphi 0, %s205
      %s207 = sphi 0, %s205
      %s208 = sphi 0, %s207
      %s222 = sphi 0, %s208
      %s226 = sphi 0, %s226
      %s228 = sphi 0, %s226
      %s229 = sphi 0, %s228
      %s243 = sphi 0, %s229
      %s247 = sphi 0, %s247
      %s249 = sphi 0, %s247
      %s250 = sphi 0, %s249
      %s264 = sphi 0, %s250
    $region4: #{tpu_custom_call.1} parent=1 // loop_header_branch
      %27 = sbr.rel (%p25) target = $region8
    $region5: #{tpu_custom_call.1} parent=1 // loop_body
      %s29 = ssub.s32 %s24, 1
      %s30 = ssub.s32 %s24, 2
      %s31 = sadd.s32 %s24, 1
      %s32 = ssub.s32 %s24, %s31
      %p33 = scmp.eq.s32.totalorder %s32, 0
      %s35 = sadd.s32 %s34, 1
      %s36 = scalar_select %p33, %s34, %s35
      %p39 = pneg %p33
      %p40 = scmp.eq.s32.totalorder %s24, 1
      %p41 = por %p39, %p40
      %p42 = scmp.ne.s32.totalorder %s34, %s37
      %p43 = scmp.eq.s32.totalorder %s24, 0
      %p44 = por %p42, %p43
      %p45 = scmp.ne.s32.totalorder %s34, %s37
      %p46 = scmp.eq.s32.totalorder %s29, 1
      %p47 = por %p45, %p46
      %p48 = scmp.ne.s32.totalorder %s37, %s38
      %p49 = scmp.eq.s32.totalorder %s29, 0
      %p50 = por %p48, %p49
      %p51 = scmp.ne.s32.totalorder %s37, %s38
      %p52 = scmp.eq.s32.totalorder %s30, 1
      %p53 = por %p51, %p52
      %p55 = scmp.ne.s32.totalorder %s38, %s54
      %p56 = scmp.eq.s32.totalorder %s30, 0
      %p57 = por %p55, %p56
      %s59 = sadd.s32 %s58, 1
      %p62 = scmp.eq.s32.totalorder %s24, 1
      %p63 = scmp.ne.s32.totalorder %s58, %s60
      %p64 = scmp.eq.s32.totalorder %s24, 0
      %p65 = por %p63, %p64
      %p66 = scmp.ne.s32.totalorder %s58, %s60
      %p67 = scmp.eq.s32.totalorder %s29, 1
      %p68 = por %p66, %p67
      %p69 = scmp.ne.s32.totalorder %s60, %s61
      %p70 = scmp.eq.s32.totalorder %s29, 0
      %p71 = por %p69, %p70
      %p72 = scmp.ne.s32.totalorder %s60, %s61
      %p73 = scmp.eq.s32.totalorder %s30, 1
      %p74 = por %p72, %p73
      %p76 = scmp.ne.s32.totalorder %s61, %s75
      %p77 = scmp.eq.s32.totalorder %s30, 0
      %p78 = por %p76, %p77
      %s80 = sadd.s32 %s79, 1
      %p83 = scmp.eq.s32.totalorder %s24, 1
      %p84 = scmp.ne.s32.totalorder %s79, %s81
      %p85 = scmp.eq.s32.totalorder %s24, 0
      %p86 = por %p84, %p85
      %p87 = scmp.ne.s32.totalorder %s79, %s81
      %p88 = scmp.eq.s32.totalorder %s29, 1
      %p89 = por %p87, %p88
      %p90 = scmp.ne.s32.totalorder %s81, %s82
      %p91 = scmp.eq.s32.totalorder %s29, 0
      %p92 = por %p90, %p91
      %p93 = scmp.ne.s32.totalorder %s81, %s82
      %p94 = scmp.eq.s32.totalorder %s30, 1
      %p95 = por %p93, %p94
      %p97 = scmp.ne.s32.totalorder %s82, %s96
      %p98 = scmp.eq.s32.totalorder %s30, 0
      %p99 = por %p97, %p98
      %s101 = sadd.s32 %s100, 1
      %p104 = scmp.eq.s32.totalorder %s24, 1
      %p105 = scmp.ne.s32.totalorder %s100, %s102
      %p106 = scmp.eq.s32.totalorder %s24, 0
      %p107 = por %p105, %p106
      %p108 = scmp.ne.s32.totalorder %s100, %s102
      %p109 = scmp.eq.s32.totalorder %s29, 1
      %p110 = por %p108, %p109
      %p111 = scmp.ne.s32.totalorder %s102, %s103
      %p112 = scmp.eq.s32.totalorder %s29, 0
      %p113 = por %p111, %p112
      %p114 = scmp.ne.s32.totalorder %s102, %s103
      %p115 = scmp.eq.s32.totalorder %s30, 1
      %p116 = por %p114, %p115
      %p118 = scmp.ne.s32.totalorder %s103, %s117
      %p119 = scmp.eq.s32.totalorder %s30, 0
      %p120 = por %p118, %p119
      %s122 = sadd.s32 %s121, 1
      %p125 = scmp.eq.s32.totalorder %s24, 1
      %p126 = scmp.ne.s32.totalorder %s121, %s123
      %p127 = scmp.eq.s32.totalorder %s24, 0
      %p128 = por %p126, %p127
      %p129 = scmp.ne.s32.totalorder %s121, %s123
      %p130 = scmp.eq.s32.totalorder %s29, 1
      %p131 = por %p129, %p130
      %p132 = scmp.ne.s32.totalorder %s123, %s124
      %p133 = scmp.eq.s32.totalorder %s29, 0
      %p134 = por %p132, %p133
      %p135 = scmp.ne.s32.totalorder %s123, %s124
      %p136 = scmp.eq.s32.totalorder %s30, 1
      %p137 = por %p135, %p136
      %p139 = scmp.ne.s32.totalorder %s124, %s138
      %p140 = scmp.eq.s32.totalorder %s30, 0
      %p141 = por %p139, %p140
      %s143 = sadd.s32 %s142, 1
      %p146 = scmp.eq.s32.totalorder %s24, 1
      %p147 = scmp.ne.s32.totalorder %s142, %s144
      %p148 = scmp.eq.s32.totalorder %s24, 0
      %p149 = por %p147, %p148
      %p150 = scmp.ne.s32.totalorder %s142, %s144
      %p151 = scmp.eq.s32.totalorder %s29, 1
      %p152 = por %p150, %p151
      %p153 = scmp.ne.s32.totalorder %s144, %s145
      %p154 = scmp.eq.s32.totalorder %s29, 0
      %p155 = por %p153, %p154
      %p156 = scmp.ne.s32.totalorder %s144, %s145
      %p157 = scmp.eq.s32.totalorder %s30, 1
      %p158 = por %p156, %p157
      %p160 = scmp.ne.s32.totalorder %s145, %s159
      %p161 = scmp.eq.s32.totalorder %s30, 0
      %p162 = por %p160, %p161
      %s164 = sadd.s32 %s163, 1
      %p167 = scmp.eq.s32.totalorder %s24, 1
      %p168 = scmp.ne.s32.totalorder %s163, %s165
      %p169 = scmp.eq.s32.totalorder %s24, 0
      %p170 = por %p168, %p169
      %p171 = scmp.ne.s32.totalorder %s163, %s165
      %p172 = scmp.eq.s32.totalorder %s29, 1
      %p173 = por %p171, %p172
      %p174 = scmp.ne.s32.totalorder %s165, %s166
      %p175 = scmp.eq.s32.totalorder %s29, 0
      %p176 = por %p174, %p175
      %p177 = scmp.ne.s32.totalorder %s165, %s166
      %p178 = scmp.eq.s32.totalorder %s30, 1
      %p179 = por %p177, %p178
      %p181 = scmp.ne.s32.totalorder %s166, %s180
      %p182 = scmp.eq.s32.totalorder %s30, 0
      %p183 = por %p181, %p182
      %s185 = sadd.s32 %s184, 1
      %p188 = scmp.eq.s32.totalorder %s24, 1
      %p189 = scmp.ne.s32.totalorder %s184, %s186
      %p190 = scmp.eq.s32.totalorder %s24, 0
      %p191 = por %p189, %p190
      %p192 = scmp.ne.s32.totalorder %s184, %s186
      %p193 = scmp.eq.s32.totalorder %s29, 1
      %p194 = por %p192, %p193
      %p195 = scmp.ne.s32.totalorder %s186, %s187
      %p196 = scmp.eq.s32.totalorder %s29, 0
      %p197 = por %p195, %p196
      %p198 = scmp.ne.s32.totalorder %s186, %s187
      %p199 = scmp.eq.s32.totalorder %s30, 1
      %p200 = por %p198, %p199
      %p202 = scmp.ne.s32.totalorder %s187, %s201
      %p203 = scmp.eq.s32.totalorder %s30, 0
      %p204 = por %p202, %p203
      %s206 = sadd.s32 %s205, 1
      %p209 = scmp.eq.s32.totalorder %s24, 1
      %p210 = scmp.ne.s32.totalorder %s205, %s207
      %p211 = scmp.eq.s32.totalorder %s24, 0
      %p212 = por %p210, %p211
      %p213 = scmp.ne.s32.totalorder %s205, %s207
      %p214 = scmp.eq.s32.totalorder %s29, 1
      %p215 = por %p213, %p214
      %p216 = scmp.ne.s32.totalorder %s207, %s208
      %p217 = scmp.eq.s32.totalorder %s29, 0
      %p218 = por %p216, %p217
      %p219 = scmp.ne.s32.totalorder %s207, %s208
      %p220 = scmp.eq.s32.totalorder %s30, 1
      %p221 = por %p219, %p220
      %p223 = scmp.ne.s32.totalorder %s208, %s222
      %p224 = scmp.eq.s32.totalorder %s30, 0
      %p225 = por %p223, %p224
      %s227 = sadd.s32 %s226, 1
      %p230 = scmp.eq.s32.totalorder %s24, 1
      %p231 = scmp.ne.s32.totalorder %s226, %s228
      %p232 = scmp.eq.s32.totalorder %s24, 0
      %p233 = por %p231, %p232
      %p234 = scmp.ne.s32.totalorder %s226, %s228
      %p235 = scmp.eq.s32.totalorder %s29, 1
      %p236 = por %p234, %p235
      %p237 = scmp.ne.s32.totalorder %s228, %s229
      %p238 = scmp.eq.s32.totalorder %s29, 0
      %p239 = por %p237, %p238
      %p240 = scmp.ne.s32.totalorder %s228, %s229
      %p241 = scmp.eq.s32.totalorder %s30, 1
      %p242 = por %p240, %p241
      %p244 = scmp.ne.s32.totalorder %s229, %s243
      %p245 = scmp.eq.s32.totalorder %s30, 0
      %p246 = por %p244, %p245
      %s248 = sadd.s32 %s247, 1
      %p251 = scmp.eq.s32.totalorder %s24, 1
      %p252 = scmp.ne.s32.totalorder %s247, %s249
      %p253 = scmp.eq.s32.totalorder %s24, 0
      %p254 = por %p252, %p253
      %p255 = scmp.ne.s32.totalorder %s247, %s249
      %p256 = scmp.eq.s32.totalorder %s29, 1
      %p257 = por %p255, %p256
      %p258 = scmp.ne.s32.totalorder %s249, %s250
      %p259 = scmp.eq.s32.totalorder %s29, 0
      %p260 = por %p258, %p259
      %p261 = scmp.ne.s32.totalorder %s249, %s250
      %p262 = scmp.eq.s32.totalorder %s30, 1
      %p263 = por %p261, %p262
      %p265 = scmp.ne.s32.totalorder %s250, %s264
      %p266 = scmp.eq.s32.totalorder %s30, 0
      %p267 = por %p265, %p266
      %p268 = scmp.le.s32.totalorder 1, %s24
      %p269 = scmp.lt.s32.totalorder %s24, 3
      %p270 = pnand %p268, %p269
      %p271 = pneg %p270
      // Predicated region
      $region9: #{tpu_custom_call.1} parent=5 // pred_check
        _
      $region10: #{tpu_custom_call.1} parent=5 // pred_check_branch
        %273 = sbr.rel (%p270) target = $region12
      $region11: #{tpu_custom_call.1} parent=5 // pred_region
        %s274 = ssub.s32 %s24, 1
        // Predicated region
        $region13: #{tpu_custom_call.1} parent=11 // pred_check
          %p275 = pneg %p71
        $region14: #{tpu_custom_call.1} parent=11 // pred_check_branch
          %277 = sbr.rel (%p275) target = $region16
        $region15: #{tpu_custom_call.1} parent=11 // pred_region
          _
        $region16: #{tpu_custom_call.1} parent=11 // pred_fallthru
          _
        // Predicated region
        $region17: #{tpu_custom_call.1} parent=11 // pred_check
          %p278 = pneg %p92
        $region18: #{tpu_custom_call.1} parent=11 // pred_check_branch
          %280 = sbr.rel (%p278) target = $region20
        $region19: #{tpu_custom_call.1} parent=11 // pred_region
          %s282 = ssub.s32 8192, 8192
          %283 = vsyncadd [#allocation9], %s282
          %s284 = sshll.u32 [#allocation8], 4
          %s285 = int_to_ptr.vmem [resolvable:$true] %s284
          %290 = dma.hbm_to_vmem [thread:$0]  %s2, 8192, %s285, [#allocation9], 256, 256, 16
        $region20: #{tpu_custom_call.1} parent=11 // pred_fallthru
          _
        // Predicated region
        $region21: #{tpu_custom_call.1} parent=11 // pred_check
          %p291 = pneg %p113
        $region22: #{tpu_custom_call.1} parent=11 // pred_check_branch
          %293 = sbr.rel (%p291) target = $region24
        $region23: #{tpu_custom_call.1} parent=11 // pred_region
          %s295 = ssub.s32 4096, 4096
          %296 = vsyncadd [#allocation9], %s295
          %s297 = sshll.u32 [#allocation10], 4
          %s298 = int_to_ptr.vmem [resolvable:$true] %s297
          %303 = dma.hbm_to_vmem [thread:$0]  %s3, 4096, %s298, [#allocation9], 256, 256, 16
        $region24: #{tpu_custom_call.1} parent=11 // pred_fallthru
          _
        // Predicated region
        $region25: #{tpu_custom_call.1} parent=11 // pred_check
          %p304 = pneg %p134
        $region26: #{tpu_custom_call.1} parent=11 // pred_check_branch
          %306 = sbr.rel (%p304) target = $region28
        $region27: #{tpu_custom_call.1} parent=11 // pred_region
          _
        $region28: #{tpu_custom_call.1} parent=11 // pred_fallthru
          _
        // Predicated region
        $region29: #{tpu_custom_call.1} parent=11 // pred_check
          %p307 = pneg %p155
        $region30: #{tpu_custom_call.1} parent=11 // pred_check_branch
          %309 = sbr.rel (%p307) target = $region32
        $region31: #{tpu_custom_call.1} parent=11 // pred_region
          %s311 = ssub.s32 1024, 1024
          %312 = vsyncadd [#allocation12], %s311
          %s313 = sshll.u32 [#allocation11], 4
          %s314 = int_to_ptr.vmem [resolvable:$true] %s313
          %319 = dma.hbm_to_vmem [thread:$0]  %s5, 1024, %s314, [#allocation12], 64, 64, 4
        $region32: #{tpu_custom_call.1} parent=11 // pred_fallthru
          _
        // Predicated region
        $region33: #{tpu_custom_call.1} parent=11 // pred_check
          %p320 = pneg %p176
        $region34: #{tpu_custom_call.1} parent=11 // pred_check_branch
          %322 = sbr.rel (%p320) target = $region36
        $region35: #{tpu_custom_call.1} parent=11 // pred_region
          _
        $region36: #{tpu_custom_call.1} parent=11 // pred_fallthru
          _
        // Predicated region
        $region37: #{tpu_custom_call.1} parent=11 // pred_check
          %p323 = pneg %p197
        $region38: #{tpu_custom_call.1} parent=11 // pred_check_branch
          %325 = sbr.rel (%p323) target = $region40
        $region39: #{tpu_custom_call.1} parent=11 // pred_region
          %s327 = ssub.s32 1024, 1024
          %328 = vsyncadd [#allocation12], %s327
          %s329 = sshll.u32 [#allocation13], 4
          %s330 = int_to_ptr.vmem [resolvable:$true] %s329
          %335 = dma.hbm_to_vmem [thread:$0]  %s7, 1024, %s330, [#allocation12], 64, 64, 4
        $region40: #{tpu_custom_call.1} parent=11 // pred_fallthru
          _
        // Predicated region
        $region41: #{tpu_custom_call.1} parent=11 // pred_check
          %p336 = pneg %p218
        $region42: #{tpu_custom_call.1} parent=11 // pred_check_branch
          %338 = sbr.rel (%p336) target = $region44
        $region43: #{tpu_custom_call.1} parent=11 // pred_region
          _
        $region44: #{tpu_custom_call.1} parent=11 // pred_fallthru
          _
      $region12: #{tpu_custom_call.1} parent=5 // pred_fallthru
        _
      %p339 = scmp.lt.s32.totalorder %s24, 2
      // Predicated region
      $region45: #{tpu_custom_call.1} parent=5 // pred_check
        %p340 = pneg %p339
      $region46: #{tpu_custom_call.1} parent=5 // pred_check_branch
        %342 = sbr.rel (%p340) target = $region48
      $region47: #{tpu_custom_call.1} parent=5 // pred_region
        // Predicated region
        $region49: #{tpu_custom_call.1} parent=47 // pred_check
          %p343 = pneg %p44
        $region50: #{tpu_custom_call.1} parent=47 // pred_check_branch
          %345 = sbr.rel (%p343) target = $region52
        $region51: #{tpu_custom_call.1} parent=47 // pred_region
          %s346 = sand.u32 %s34, 1
          %s347 = scalar_lea.sflag [#allocation6], %s346
          %s348 = sand.u32 %s34, 1
          %s349 = smul.addr %s348, 64
          %s350 = scalar_lea.vmem [#allocation5], %s349
          %s351 = smul.u32 8, %s24
          %s353 = ssub.s32 1024, 1024
          %354 = vsyncadd %s347, %s353
          %s355 = smul.addr %s351, 2
          %s356 = smul.addr %s355, 64
          %s357 = scalar_lea.hbm %s0, %s356
          %s358 = sshll.u32 %s350, 4
          %s359 = int_to_ptr.vmem [resolvable:$true] %s358
          %364 = dma.hbm_to_vmem [thread:$0]  %s357, 1024, %s359, %s347, 128, 128, 8
        $region52: #{tpu_custom_call.1} parent=47 // pred_fallthru
          _
      $region48: #{tpu_custom_call.1} parent=5 // pred_fallthru
        _
      %p365 = scmp.le.s32.totalorder 1, %s24
      %p366 = scmp.lt.s32.totalorder %s24, 3
      %p367 = pnand %p365, %p366
      %p368 = pneg %p367
      // Predicated region
      $region53: #{tpu_custom_call.1} parent=5 // pred_check
        _
      $region54: #{tpu_custom_call.1} parent=5 // pred_check_branch
        %370 = sbr.rel (%p367) target = $region56
      $region55: #{tpu_custom_call.1} parent=5 // pred_region
        %s371 = ssub.s32 %s24, 1
        %s372 = sand.u32 %s37, 1
        %s373 = scalar_lea.sflag [#allocation6], %s372
        %s374 = sand.u32 %s37, 1
        %s375 = smul.addr %s374, 64
        %s376 = scalar_lea.vmem [#allocation5], %s375
        // Predicated region
        $region57: #{tpu_custom_call.1} parent=55 // pred_check
          %p377 = pneg %p50
        $region58: #{tpu_custom_call.1} parent=55 // pred_check_branch
          %379 = sbr.rel (%p377) target = $region60
        $region59: #{tpu_custom_call.1} parent=55 // pred_region
          %380 = dma.done %s373, 1024
        $region60: #{tpu_custom_call.1} parent=55 // pred_fallthru
          _
        // Predicated region
        $region61: #{tpu_custom_call.1} parent=55 // pred_check
          %p381 = pneg %p92
        $region62: #{tpu_custom_call.1} parent=55 // pred_check_branch
          %383 = sbr.rel (%p381) target = $region64
        $region63: #{tpu_custom_call.1} parent=55 // pred_region
          %384 = dma.done [#allocation9], 8192
        $region64: #{tpu_custom_call.1} parent=55 // pred_fallthru
          _
        // Predicated region
        $region65: #{tpu_custom_call.1} parent=55 // pred_check
          %p385 = pneg %p113
        $region66: #{tpu_custom_call.1} parent=55 // pred_check_branch
          %387 = sbr.rel (%p385) target = $region68
        $region67: #{tpu_custom_call.1} parent=55 // pred_region
          %388 = dma.done [#allocation9], 4096
        $region68: #{tpu_custom_call.1} parent=55 // pred_fallthru
          _
        // Predicated region
        $region69: #{tpu_custom_call.1} parent=55 // pred_check
          %p389 = pneg %p155
        $region70: #{tpu_custom_call.1} parent=55 // pred_check_branch
          %391 = sbr.rel (%p389) target = $region72
        $region71: #{tpu_custom_call.1} parent=55 // pred_region
          %392 = dma.done [#allocation12], 1024
        $region72: #{tpu_custom_call.1} parent=55 // pred_fallthru
          _
        // Predicated region
        $region73: #{tpu_custom_call.1} parent=55 // pred_check
          %p393 = pneg %p197
        $region74: #{tpu_custom_call.1} parent=55 // pred_check_branch
          %395 = sbr.rel (%p393) target = $region76
        $region75: #{tpu_custom_call.1} parent=55 // pred_region
          %396 = dma.done [#allocation12], 1024
        $region76: #{tpu_custom_call.1} parent=55 // pred_fallthru
          _
        %s397 = sand.u32 %s37, 1
        %s398 = scalar_lea.sflag [#allocation6], %s397
        %s399 = sand.u32 %s37, 1
        %s400 = smul.addr %s399, 64
        %s401 = scalar_lea.vmem [#allocation5], %s400
        %p402 = pneg %p50
        %p403 = pneg %p47
        %p404 = pneg %p71
        %p405 = pneg %p68
        %p406 = pneg %p92
        %p407 = pneg %p89
        %p408 = pneg %p113
        %p409 = pneg %p110
        %p410 = pneg %p134
        %p411 = pneg %p131
        %p412 = pneg %p155
        %p413 = pneg %p152
        %p414 = pneg %p176
        %p415 = pneg %p173
        %p416 = pneg %p197
        %p417 = pneg %p194
        %p418 = pneg %p218
        %p419 = pneg %p215
        %p420 = pneg %p239
        %p421 = pneg %p236
        %p422 = pneg %p260
        %p423 = pneg %p257
        %s424 = smul.u32 8, %s29
        %p426 = scmp.eq.s32.totalorder %s29, 0
        // Predicated region
        $region77: #{tpu_custom_call.1} parent=55 // pred_check
          %p427 = pneg %p426
        $region78: #{tpu_custom_call.1} parent=55 // pred_check_branch
          %429 = sbr.rel (%p427) target = $region80
        $region79: #{tpu_custom_call.1} parent=55 // pred_region
          %430 = vst [vmem:[#allocation2] sm:$0xff] 0.0
          %431 = vst [vmem:[#allocation3] sm:$0xff] 0.0
        $region80: #{tpu_custom_call.1} parent=55 // pred_fallthru
          _
        %v432 = vld [vmem:[%s376] sm:$0xff]
        %v433 = vld [vmem:[%s376 + $0x8] sm:$0xff]
        %v434 = vld [vmem:[%s376 + $0x10] sm:$0xff]
        %v435 = vld [vmem:[%s376 + $0x18] sm:$0xff]
        %v436 = vld [vmem:[%s376 + $0x20] sm:$0xff]
        %v437 = vld [vmem:[%s376 + $0x28] sm:$0xff]
        %v438 = vld [vmem:[%s376 + $0x30] sm:$0xff]
        %v439 = vld [vmem:[%s376 + $0x38] sm:$0xff]
        %v440 = vld [vmem:[#allocation8] sm:$0xff]
        %v441 = vld [vmem:[#allocation8 + $0x8] sm:$0xff]
        %v442 = vld [vmem:[#allocation8 + $0x10] sm:$0xff]
        %v443 = vld [vmem:[#allocation8 + $0x18] sm:$0xff]
        %v444 = vld [vmem:[#allocation8 + $0x20] sm:$0xff]
        %v445 = vld [vmem:[#allocation8 + $0x28] sm:$0xff]
        %v446 = vld [vmem:[#allocation8 + $0x30] sm:$0xff]
        %v447 = vld [vmem:[#allocation8 + $0x38] sm:$0xff]
        %v448 = vld [vmem:[#allocation8 + $0x40] sm:$0xff]
        %v449 = vld [vmem:[#allocation8 + $0x48] sm:$0xff]
        %v450 = vld [vmem:[#allocation8 + $0x50] sm:$0xff]
        %v451 = vld [vmem:[#allocation8 + $0x58] sm:$0xff]
        %v452 = vld [vmem:[#allocation8 + $0x60] sm:$0xff]
        %v453 = vld [vmem:[#allocation8 + $0x68] sm:$0xff]
        %v454 = vld [vmem:[#allocation8 + $0x70] sm:$0xff]
        %v455 = vld [vmem:[#allocation8 + $0x78] sm:$0xff]
        %v456 = vld [vmem:[#allocation8 + $0x80] sm:$0xff]
        %v457 = vld [vmem:[#allocation8 + $0x88] sm:$0xff]
        %v458 = vld [vmem:[#allocation8 + $0x90] sm:$0xff]
        %v459 = vld [vmem:[#allocation8 + $0x98] sm:$0xff]
        %v460 = vld [vmem:[#allocation8 + $0xa0] sm:$0xff]
        %v461 = vld [vmem:[#allocation8 + $0xa8] sm:$0xff]
        %v462 = vld [vmem:[#allocation8 + $0xb0] sm:$0xff]
        %v463 = vld [vmem:[#allocation8 + $0xb8] sm:$0xff]
        %v464 = vld [vmem:[#allocation8 + $0xc0] sm:$0xff]
        %v465 = vld [vmem:[#allocation8 + $0xc8] sm:$0xff]
        %v466 = vld [vmem:[#allocation8 + $0xd0] sm:$0xff]
        %v467 = vld [vmem:[#allocation8 + $0xd8] sm:$0xff]
        %v468 = vld [vmem:[#allocation8 + $0xe0] sm:$0xff]
        %v469 = vld [vmem:[#allocation8 + $0xe8] sm:$0xff]
        %v470 = vld [vmem:[#allocation8 + $0xf0] sm:$0xff]
        %v471 = vld [vmem:[#allocation8 + $0xf8] sm:$0xff]
        %v472 = vld [vmem:[#allocation8 + $0x100] sm:$0xff]
        %v473 = vld [vmem:[#allocation8 + $0x108] sm:$0xff]
        %v474 = vld [vmem:[#allocation8 + $0x110] sm:$0xff]
        %v475 = vld [vmem:[#allocation8 + $0x118] sm:$0xff]
        %v476 = vld [vmem:[#allocation8 + $0x120] sm:$0xff]
        %v477 = vld [vmem:[#allocation8 + $0x128] sm:$0xff]
        %v478 = vld [vmem:[#allocation8 + $0x130] sm:$0xff]
        %v479 = vld [vmem:[#allocation8 + $0x138] sm:$0xff]
        %v480 = vld [vmem:[#allocation8 + $0x140] sm:$0xff]
        %v481 = vld [vmem:[#allocation8 + $0x148] sm:$0xff]
        %v482 = vld [vmem:[#allocation8 + $0x150] sm:$0xff]
        %v483 = vld [vmem:[#allocation8 + $0x158] sm:$0xff]
        %v484 = vld [vmem:[#allocation8 + $0x160] sm:$0xff]
        %v485 = vld [vmem:[#allocation8 + $0x168] sm:$0xff]
        %v486 = vld [vmem:[#allocation8 + $0x170] sm:$0xff]
        %v487 = vld [vmem:[#allocation8 + $0x178] sm:$0xff]
        %v488 = vld [vmem:[#allocation8 + $0x180] sm:$0xff]
        %v489 = vld [vmem:[#allocation8 + $0x188] sm:$0xff]
        %v490 = vld [vmem:[#allocation8 + $0x190] sm:$0xff]
        %v491 = vld [vmem:[#allocation8 + $0x198] sm:$0xff]
        %v492 = vld [vmem:[#allocation8 + $0x1a0] sm:$0xff]
        %v493 = vld [vmem:[#allocation8 + $0x1a8] sm:$0xff]
        %v494 = vld [vmem:[#allocation8 + $0x1b0] sm:$0xff]
        %v495 = vld [vmem:[#allocation8 + $0x1b8] sm:$0xff]
        %v496 = vld [vmem:[#allocation8 + $0x1c0] sm:$0xff]
        %v497 = vld [vmem:[#allocation8 + $0x1c8] sm:$0xff]
        %v498 = vld [vmem:[#allocation8 + $0x1d0] sm:$0xff]
        %v499 = vld [vmem:[#allocation8 + $0x1d8] sm:$0xff]
        %v500 = vld [vmem:[#allocation8 + $0x1e0] sm:$0xff]
        %v501 = vld [vmem:[#allocation8 + $0x1e8] sm:$0xff]
        %v502 = vld [vmem:[#allocation8 + $0x1f0] sm:$0xff]
        %v503 = vld [vmem:[#allocation8 + $0x1f8] sm:$0xff]
        %v504 = vld [vmem:[%s4] sm:$0xf]
        %v506 = vlaneseq
        %v507 = vshrl.u32 %v506, 7
        %v508 = vsub.s32 0, %v507
        %v509 = vrot.slane %v504, %v508
        %v510 = vlaneseq
        %v511 = vshrl.u32 %v510, 7
        %v512 = vsub.s32 1, %v511
        %v513 = vrot.slane %v504, %v512
        %v514 = vlaneseq
        %v515 = vshrl.u32 %v514, 7
        %v516 = vsub.s32 2, %v515
        %v517 = vrot.slane %v504, %v516
        %v518 = vlaneseq
        %v519 = vshrl.u32 %v518, 7
        %v520 = vsub.s32 3, %v519
        %v521 = vrot.slane %v504, %v520
        %v534 = vunpack.c.l.b16 %v432
        %v535 = vunpack.c.h.b16 %v432
        %v536 = vunpack.c.l.b16 %v433
        %v537 = vunpack.c.h.b16 %v433
        %v538 = vunpack.c.l.b16 %v434
        %v539 = vunpack.c.h.b16 %v434
        %v540 = vunpack.c.l.b16 %v435
        %v541 = vunpack.c.h.b16 %v435
        %v542 = vunpack.c.l.b16 %v436
        %v543 = vunpack.c.h.b16 %v436
        %v544 = vunpack.c.l.b16 %v437
        %v545 = vunpack.c.h.b16 %v437
        %v546 = vunpack.c.l.b16 %v438
        %v547 = vunpack.c.h.b16 %v438
        %v548 = vunpack.c.l.b16 %v439
        %v549 = vunpack.c.h.b16 %v439
        %v550 = vpack.c.b16 %v536, %v534
        %v551 = vpack.c.b16 %v537, %v535
        %v552 = vpack.c.b16 %v540, %v538
        %v553 = vpack.c.b16 %v541, %v539
        %v554 = vpack.c.b16 %v544, %v542
        %v555 = vpack.c.b16 %v545, %v543
        %v556 = vpack.c.b16 %v548, %v546
        %v557 = vpack.c.b16 %v549, %v547
        %v630 = vunpack.c.l.b16 %v440
        %v631 = vunpack.c.h.b16 %v440
        %v632 = vunpack.c.l.b16 %v441
        %v633 = vunpack.c.h.b16 %v441
        %v634 = vunpack.c.l.b16 %v442
        %v635 = vunpack.c.h.b16 %v442
        %v636 = vunpack.c.l.b16 %v443
        %v637 = vunpack.c.h.b16 %v443
        %v638 = vunpack.c.l.b16 %v444
        %v639 = vunpack.c.h.b16 %v444
        %v640 = vunpack.c.l.b16 %v445
        %v641 = vunpack.c.h.b16 %v445
        %v642 = vunpack.c.l.b16 %v446
        %v643 = vunpack.c.h.b16 %v446
        %v644 = vunpack.c.l.b16 %v447
        %v645 = vunpack.c.h.b16 %v447
        %v646 = vunpack.c.l.b16 %v448
        %v647 = vunpack.c.h.b16 %v448
        %v648 = vunpack.c.l.b16 %v449
        %v649 = vunpack.c.h.b16 %v449
        %v650 = vunpack.c.l.b16 %v450
        %v651 = vunpack.c.h.b16 %v450
        %v652 = vunpack.c.l.b16 %v451
        %v653 = vunpack.c.h.b16 %v451
        %v654 = vunpack.c.l.b16 %v452
        %v655 = vunpack.c.h.b16 %v452
        %v656 = vunpack.c.l.b16 %v453
        %v657 = vunpack.c.h.b16 %v453
        %v658 = vunpack.c.l.b16 %v454
        %v659 = vunpack.c.h.b16 %v454
        %v660 = vunpack.c.l.b16 %v455
        %v661 = vunpack.c.h.b16 %v455
        %v662 = vunpack.c.l.b16 %v456
        %v663 = vunpack.c.h.b16 %v456
        %v664 = vunpack.c.l.b16 %v457
        %v665 = vunpack.c.h.b16 %v457
        %v666 = vunpack.c.l.b16 %v458
        %v667 = vunpack.c.h.b16 %v458
        %v668 = vunpack.c.l.b16 %v459
        %v669 = vunpack.c.h.b16 %v459
        %v670 = vunpack.c.l.b16 %v460
        %v671 = vunpack.c.h.b16 %v460
        %v672 = vunpack.c.l.b16 %v461
        %v673 = vunpack.c.h.b16 %v461
        %v674 = vunpack.c.l.b16 %v462
        %v675 = vunpack.c.h.b16 %v462
        %v676 = vunpack.c.l.b16 %v463
        %v677 = vunpack.c.h.b16 %v463
        %v678 = vunpack.c.l.b16 %v464
        %v679 = vunpack.c.h.b16 %v464
        %v680 = vunpack.c.l.b16 %v465
        %v681 = vunpack.c.h.b16 %v465
        %v682 = vunpack.c.l.b16 %v466
        %v683 = vunpack.c.h.b16 %v466
        %v684 = vunpack.c.l.b16 %v467
        %v685 = vunpack.c.h.b16 %v467
        %v686 = vunpack.c.l.b16 %v468
        %v687 = vunpack.c.h.b16 %v468
        %v688 = vunpack.c.l.b16 %v469
        %v689 = vunpack.c.h.b16 %v469
        %v690 = vunpack.c.l.b16 %v470
        %v691 = vunpack.c.h.b16 %v470
        %v692 = vunpack.c.l.b16 %v471
        %v693 = vunpack.c.h.b16 %v471
        %v694 = vunpack.c.l.b16 %v472
        %v695 = vunpack.c.h.b16 %v472
        %v696 = vunpack.c.l.b16 %v473
        %v697 = vunpack.c.h.b16 %v473
        %v698 = vunpack.c.l.b16 %v474
        %v699 = vunpack.c.h.b16 %v474
        %v700 = vunpack.c.l.b16 %v475
        %v701 = vunpack.c.h.b16 %v475
        %v702 = vunpack.c.l.b16 %v476
        %v703 = vunpack.c.h.b16 %v476
        %v704 = vunpack.c.l.b16 %v477
        %v705 = vunpack.c.h.b16 %v477
        %v706 = vunpack.c.l.b16 %v478
        %v707 = vunpack.c.h.b16 %v478
        %v708 = vunpack.c.l.b16 %v479
        %v709 = vunpack.c.h.b16 %v479
        %v710 = vunpack.c.l.b16 %v480
        %v711 = vunpack.c.h.b16 %v480
        %v712 = vunpack.c.l.b16 %v481
        %v713 = vunpack.c.h.b16 %v481
        %v714 = vunpack.c.l.b16 %v482
        %v715 = vunpack.c.h.b16 %v482
        %v716 = vunpack.c.l.b16 %v483
        %v717 = vunpack.c.h.b16 %v483
        %v718 = vunpack.c.l.b16 %v484
        %v719 = vunpack.c.h.b16 %v484
        %v720 = vunpack.c.l.b16 %v485
        %v721 = vunpack.c.h.b16 %v485
        %v722 = vunpack.c.l.b16 %v486
        %v723 = vunpack.c.h.b16 %v486
        %v724 = vunpack.c.l.b16 %v487
        %v725 = vunpack.c.h.b16 %v487
        %v726 = vunpack.c.l.b16 %v488
        %v727 = vunpack.c.h.b16 %v488
        %v728 = vunpack.c.l.b16 %v489
        %v729 = vunpack.c.h.b16 %v489
        %v730 = vunpack.c.l.b16 %v490
        %v731 = vunpack.c.h.b16 %v490
        %v732 = vunpack.c.l.b16 %v491
        %v733 = vunpack.c.h.b16 %v491
        %v734 = vunpack.c.l.b16 %v492
        %v735 = vunpack.c.h.b16 %v492
        %v736 = vunpack.c.l.b16 %v493
        %v737 = vunpack.c.h.b16 %v493
        %v738 = vunpack.c.l.b16 %v494
        %v739 = vunpack.c.h.b16 %v494
        %v740 = vunpack.c.l.b16 %v495
        %v741 = vunpack.c.h.b16 %v495
        %v742 = vunpack.c.l.b16 %v496
        %v743 = vunpack.c.h.b16 %v496
        %v744 = vunpack.c.l.b16 %v497
        %v745 = vunpack.c.h.b16 %v497
        %v746 = vunpack.c.l.b16 %v498
        %v747 = vunpack.c.h.b16 %v498
        %v748 = vunpack.c.l.b16 %v499
        %v749 = vunpack.c.h.b16 %v499
        %v750 = vunpack.c.l.b16 %v500
        %v751 = vunpack.c.h.b16 %v500
        %v752 = vunpack.c.l.b16 %v501
        %v753 = vunpack.c.h.b16 %v501
        %v754 = vunpack.c.l.b16 %v502
        %v755 = vunpack.c.h.b16 %v502
        %v756 = vunpack.c.l.b16 %v503
        %v757 = vunpack.c.h.b16 %v503
        %v758 = vpack.c.b16 %v634, %v630
        %v759 = vpack.c.b16 %v635, %v631
        %v760 = vpack.c.b16 %v636, %v632
        %v761 = vpack.c.b16 %v637, %v633
        %v762 = vpack.c.b16 %v642, %v638
        %v763 = vpack.c.b16 %v643, %v639
        %v764 = vpack.c.b16 %v644, %v640
        %v765 = vpack.c.b16 %v645, %v641
        %v766 = vpack.c.b16 %v650, %v646
        %v767 = vpack.c.b16 %v651, %v647
        %v768 = vpack.c.b16 %v652, %v648
        %v769 = vpack.c.b16 %v653, %v649
        %v770 = vpack.c.b16 %v658, %v654
        %v771 = vpack.c.b16 %v659, %v655
        %v772 = vpack.c.b16 %v660, %v656
        %v773 = vpack.c.b16 %v661, %v657
        %v774 = vpack.c.b16 %v666, %v662
        %v775 = vpack.c.b16 %v667, %v663
        %v776 = vpack.c.b16 %v668, %v664
        %v777 = vpack.c.b16 %v669, %v665
        %v778 = vpack.c.b16 %v674, %v670
        %v779 = vpack.c.b16 %v675, %v671
        %v780 = vpack.c.b16 %v676, %v672
        %v781 = vpack.c.b16 %v677, %v673
        %v782 = vpack.c.b16 %v682, %v678
        %v783 = vpack.c.b16 %v683, %v679
        %v784 = vpack.c.b16 %v684, %v680
        %v785 = vpack.c.b16 %v685, %v681
        %v786 = vpack.c.b16 %v690, %v686
        %v787 = vpack.c.b16 %v691, %v687
        %v788 = vpack.c.b16 %v692, %v688
        %v789 = vpack.c.b16 %v693, %v689
        %v790 = vpack.c.b16 %v698, %v694
        %v791 = vpack.c.b16 %v699, %v695
        %v792 = vpack.c.b16 %v700, %v696
        %v793 = vpack.c.b16 %v701, %v697
        %v794 = vpack.c.b16 %v706, %v702
        %v795 = vpack.c.b16 %v707, %v703
        %v796 = vpack.c.b16 %v708, %v704
        %v797 = vpack.c.b16 %v709, %v705
        %v798 = vpack.c.b16 %v714, %v710
        %v799 = vpack.c.b16 %v715, %v711
        %v800 = vpack.c.b16 %v716, %v712
        %v801 = vpack.c.b16 %v717, %v713
        %v802 = vpack.c.b16 %v722, %v718
        %v803 = vpack.c.b16 %v723, %v719
        %v804 = vpack.c.b16 %v724, %v720
        %v805 = vpack.c.b16 %v725, %v721
        %v806 = vpack.c.b16 %v730, %v726
        %v807 = vpack.c.b16 %v731, %v727
        %v808 = vpack.c.b16 %v732, %v728
        %v809 = vpack.c.b16 %v733, %v729
        %v810 = vpack.c.b16 %v738, %v734
        %v811 = vpack.c.b16 %v739, %v735
        %v812 = vpack.c.b16 %v740, %v736
        %v813 = vpack.c.b16 %v741, %v737
        %v814 = vpack.c.b16 %v746, %v742
        %v815 = vpack.c.b16 %v747, %v743
        %v816 = vpack.c.b16 %v748, %v744
        %v817 = vpack.c.b16 %v749, %v745
        %v818 = vpack.c.b16 %v754, %v750
        %v819 = vpack.c.b16 %v755, %v751
        %v820 = vpack.c.b16 %v756, %v752
        %v821 = vpack.c.b16 %v757, %v753
        %886 = vmatprep.subr.bf16.mxu0 %v787
        %887 = vmatpush1.bf16.msra.mxu0 %v786
        %888 = vmatprep.subr.bf16.mxu0 %v783
        %889 = vmatpush1.bf16.msra.mxu0 %v782
        %890 = vmatprep.subr.bf16.mxu0 %v779
        %891 = vmatpush1.bf16.msra.mxu0 %v778
        %892 = vmatprep.subr.bf16.mxu0 %v775
        %893 = vmatpush1.bf16.msra.mxu0 %v774
        %894 = vmatprep.subr.bf16.mxu0 %v771
        %895 = vmatpush1.bf16.msra.mxu0 %v770
        %896 = vmatprep.subr.bf16.mxu0 %v767
        %897 = vmatpush1.bf16.msra.mxu0 %v766
        %898 = vmatprep.subr.bf16.mxu0 %v763
        %899 = vmatpush1.bf16.msra.mxu0 %v762
        %900 = vmatprep.subr.bf16.mxu0 %v759
        %901 = vmatpush1.bf16.msra.mxu0 %v758
        %902 = vmatprep.subr.bf16.mxu0 %v819
        %903 = vmatpush2.bf16.msra.mxu0 %v818
        %904 = vmatprep.subr.bf16.mxu0 %v815
        %905 = vmatpush2.bf16.msra.mxu0 %v814
        %906 = vmatprep.subr.bf16.mxu0 %v811
        %907 = vmatpush2.bf16.msra.mxu0 %v810
        %908 = vmatprep.subr.bf16.mxu0 %v807
        %909 = vmatpush2.bf16.msra.mxu0 %v806
        %910 = vmatprep.subr.bf16.mxu0 %v803
        %911 = vmatpush2.bf16.msra.mxu0 %v802
        %912 = vmatprep.subr.bf16.mxu0 %v799
        %913 = vmatpush2.bf16.msra.mxu0 %v798
        %914 = vmatprep.subr.bf16.mxu0 %v795
        %915 = vmatpush2.bf16.msra.mxu0 %v794
        %916 = vmatprep.subr.bf16.mxu0 %v791
        %917 = vmatpush2.bf16.msra.mxu0 %v790
        %918 = vmatprep.mubr.bf16.mxu0 %v551
        %919 = vmatmul.mubr.bf16.gmra.mxu0 %v550
        %v920 = vpop.f32.mrf.mxu0
        %v921 = vadd.f32 %v509, %v920
        %v922 = vpop.f32.mrf.mxu0
        %v923 = vadd.f32 %v513, %v922
        %v924 = vpop.f32.mrf.mxu0
        %v925 = vadd.f32 %v509, %v924
        %v926 = vpop.f32.mrf.mxu0
        %v927 = vadd.f32 %v513, %v926
        %928 = vmatprep.mubr.bf16.mxu0 %v553
        %929 = vmatmul.mubr.bf16.gmra.mxu0 %v552
        %v930 = vpop.f32.mrf.mxu0
        %v931 = vadd.f32 %v509, %v930
        %v932 = vpop.f32.mrf.mxu0
        %v933 = vadd.f32 %v513, %v932
        %v934 = vpop.f32.mrf.mxu0
        %v935 = vadd.f32 %v509, %v934
        %v936 = vpop.f32.mrf.mxu0
        %v937 = vadd.f32 %v513, %v936
        %938 = vmatprep.mubr.bf16.mxu0 %v555
        %939 = vmatmul.mubr.bf16.gmra.mxu0 %v554
        %v940 = vpop.f32.mrf.mxu0
        %v941 = vadd.f32 %v509, %v940
        %v942 = vpop.f32.mrf.mxu0
        %v943 = vadd.f32 %v513, %v942
        %v944 = vpop.f32.mrf.mxu0
        %v945 = vadd.f32 %v509, %v944
        %v946 = vpop.f32.mrf.mxu0
        %v947 = vadd.f32 %v513, %v946
        %948 = vmatprep.mubr.bf16.mxu0 %v557
        %949 = vmatmul.mubr.bf16.gmra.mxu0 %v556
        %v950 = vpop.f32.mrf.mxu0
        %v951 = vadd.f32 %v509, %v950
        %v952 = vpop.f32.mrf.mxu0
        %v953 = vadd.f32 %v513, %v952
        %v954 = vpop.f32.mrf.mxu0
        %v955 = vadd.f32 %v509, %v954
        %v956 = vpop.f32.mrf.mxu0
        %v957 = vadd.f32 %v513, %v956
        %958 = vdwg.mxu0
        %959 = vmatprep.subr.bf16.mxu0 %v789
        %960 = vmatpush1.bf16.msra.mxu0 %v788
        %961 = vmatprep.subr.bf16.mxu0 %v785
        %962 = vmatpush1.bf16.msra.mxu0 %v784
        %963 = vmatprep.subr.bf16.mxu0 %v781
        %964 = vmatpush1.bf16.msra.mxu0 %v780
        %965 = vmatprep.subr.bf16.mxu0 %v777
        %966 = vmatpush1.bf16.msra.mxu0 %v776
        %967 = vmatprep.subr.bf16.mxu0 %v773
        %968 = vmatpush1.bf16.msra.mxu0 %v772
        %969 = vmatprep.subr.bf16.mxu0 %v769
        %970 = vmatpush1.bf16.msra.mxu0 %v768
        %971 = vmatprep.subr.bf16.mxu0 %v765
        %972 = vmatpush1.bf16.msra.mxu0 %v764
        %973 = vmatprep.subr.bf16.mxu0 %v761
        %974 = vmatpush1.bf16.msra.mxu0 %v760
        %975 = vmatprep.subr.bf16.mxu0 %v821
        %976 = vmatpush2.bf16.msra.mxu0 %v820
        %977 = vmatprep.subr.bf16.mxu0 %v817
        %978 = vmatpush2.bf16.msra.mxu0 %v816
        %979 = vmatprep.subr.bf16.mxu0 %v813
        %980 = vmatpush2.bf16.msra.mxu0 %v812
        %981 = vmatprep.subr.bf16.mxu0 %v809
        %982 = vmatpush2.bf16.msra.mxu0 %v808
        %983 = vmatprep.subr.bf16.mxu0 %v805
        %984 = vmatpush2.bf16.msra.mxu0 %v804
        %985 = vmatprep.subr.bf16.mxu0 %v801
        %986 = vmatpush2.bf16.msra.mxu0 %v800
        %987 = vmatprep.subr.bf16.mxu0 %v797
        %988 = vmatpush2.bf16.msra.mxu0 %v796
        %989 = vmatprep.subr.bf16.mxu0 %v793
        %990 = vmatpush2.bf16.msra.mxu0 %v792
        %991 = vmatprep.mubr.bf16.mxu0 %v551
        %992 = vmatmul.mubr.bf16.gmra.mxu0 %v550
        %v993 = vpop.f32.mrf.mxu0
        %v994 = vadd.f32 %v517, %v993
        %v995 = vpop.f32.mrf.mxu0
        %v996 = vadd.f32 %v521, %v995
        %v997 = vpop.f32.mrf.mxu0
        %v998 = vadd.f32 %v517, %v997
        %v999 = vpop.f32.mrf.mxu0
        %v1000 = vadd.f32 %v521, %v999
        %1001 = vmatprep.mubr.bf16.mxu0 %v553
        %1002 = vmatmul.mubr.bf16.gmra.mxu0 %v552
        %v1003 = vpop.f32.mrf.mxu0
        %v1004 = vadd.f32 %v517, %v1003
        %v1005 = vpop.f32.mrf.mxu0
        %v1006 = vadd.f32 %v521, %v1005
        %v1007 = vpop.f32.mrf.mxu0
        %v1008 = vadd.f32 %v517, %v1007
        %v1009 = vpop.f32.mrf.mxu0
        %v1010 = vadd.f32 %v521, %v1009
        %1011 = vmatprep.mubr.bf16.mxu0 %v555
        %1012 = vmatmul.mubr.bf16.gmra.mxu0 %v554
        %v1013 = vpop.f32.mrf.mxu0
        %v1014 = vadd.f32 %v517, %v1013
        %v1015 = vpop.f32.mrf.mxu0
        %v1016 = vadd.f32 %v521, %v1015
        %v1017 = vpop.f32.mrf.mxu0
        %v1018 = vadd.f32 %v517, %v1017
        %v1019 = vpop.f32.mrf.mxu0
        %v1020 = vadd.f32 %v521, %v1019
        %1021 = vmatprep.mubr.bf16.mxu0 %v557
        %1022 = vmatmul.mubr.bf16.gmra.mxu0 %v556
        %v1023 = vpop.f32.mrf.mxu0
        %v1024 = vadd.f32 %v517, %v1023
        %v1025 = vpop.f32.mrf.mxu0
        %v1026 = vadd.f32 %v521, %v1025
        %v1027 = vpop.f32.mrf.mxu0
        %v1028 = vadd.f32 %v517, %v1027
        %v1029 = vpop.f32.mrf.mxu0
        %v1030 = vadd.f32 %v521, %v1029
        %1031 = vdwg.mxu0
        %1032 = vst [vmem:[#allocation4] sm:$0xff] %v921
        %1033 = vst [vmem:[#allocation4 + $0x8] sm:$0xff] %v923
        %1034 = vst [vmem:[#allocation4 + $0x10] sm:$0xff] %v994
        %1035 = vst [vmem:[#allocation4 + $0x18] sm:$0xff] %v996
        %1036 = vst [vmem:[#allocation4 + $0x20] sm:$0xff] %v925
        %1037 = vst [vmem:[#allocation4 + $0x28] sm:$0xff] %v927
        %1038 = vst [vmem:[#allocation4 + $0x30] sm:$0xff] %v998
        %1039 = vst [vmem:[#allocation4 + $0x38] sm:$0xff] %v1000
        %1040 = vst [vmem:[#allocation4 + $0x40] sm:$0xff] %v931
        %1041 = vst [vmem:[#allocation4 + $0x48] sm:$0xff] %v933
        %1042 = vst [vmem:[#allocation4 + $0x50] sm:$0xff] %v1004
        %1043 = vst [vmem:[#allocation4 + $0x58] sm:$0xff] %v1006
        %1044 = vst [vmem:[#allocation4 + $0x60] sm:$0xff] %v935
        %1045 = vst [vmem:[#allocation4 + $0x68] sm:$0xff] %v937
        %1046 = vst [vmem:[#allocation4 + $0x70] sm:$0xff] %v1008
        %1047 = vst [vmem:[#allocation4 + $0x78] sm:$0xff] %v1010
        %1048 = vst [vmem:[#allocation4 + $0x80] sm:$0xff] %v941
        %1049 = vst [vmem:[#allocation4 + $0x88] sm:$0xff] %v943
        %1050 = vst [vmem:[#allocation4 + $0x90] sm:$0xff] %v1014
        %1051 = vst [vmem:[#allocation4 + $0x98] sm:$0xff] %v1016
        %1052 = vst [vmem:[#allocation4 + $0xa0] sm:$0xff] %v945
        %1053 = vst [vmem:[#allocation4 + $0xa8] sm:$0xff] %v947
        %1054 = vst [vmem:[#allocation4 + $0xb0] sm:$0xff] %v1018
        %1055 = vst [vmem:[#allocation4 + $0xb8] sm:$0xff] %v1020
        %1056 = vst [vmem:[#allocation4 + $0xc0] sm:$0xff] %v951
        %1057 = vst [vmem:[#allocation4 + $0xc8] sm:$0xff] %v953
        %1058 = vst [vmem:[#allocation4 + $0xd0] sm:$0xff] %v1024
        %1059 = vst [vmem:[#allocation4 + $0xd8] sm:$0xff] %v1026
        %1060 = vst [vmem:[#allocation4 + $0xe0] sm:$0xff] %v955
        %1061 = vst [vmem:[#allocation4 + $0xe8] sm:$0xff] %v957
        %1062 = vst [vmem:[#allocation4 + $0xf0] sm:$0xff] %v1028
        %1063 = vst [vmem:[#allocation4 + $0xf8] sm:$0xff] %v1030
        %v1064 = vld [vmem:[%s1] sm:$0xff]
        %s1065 = smul.u32 %s29, 8
        %v1066 = vld [vmem:[#allocation2] sm:$0xff]
        %v1067 = vld [vmem:[#allocation3] sm:$0xff]
        %s1068 = smul.u32 0, 4
        %s1069 = smul.addr %s1068, 8
        %s1070 = scalar_lea.vmem [#allocation4], %s1069
        %v1071 = vld [vmem:[%s1070] sm:$0xff]
        %v1072 = vld [vmem:[%s1070 + $0x8] sm:$0xff]
        %v1073 = vld [vmem:[%s1070 + $0x10] sm:$0xff]
        %v1074 = vld [vmem:[%s1070 + $0x18] sm:$0xff]
        %v1075 = vpack.c.bf16 %v1066, %v1066
        %v1076 = vld [vmem:[#allocation10] sm:$0xff]
        %v1077 = vld [vmem:[#allocation10 + $0x8] sm:$0xff]
        %v1078 = vld [vmem:[#allocation10 + $0x10] sm:$0xff]
        %v1079 = vld [vmem:[#allocation10 + $0x18] sm:$0xff]
        %v1080 = vld [vmem:[#allocation10 + $0x20] sm:$0xff]
        %v1081 = vld [vmem:[#allocation10 + $0x28] sm:$0xff]
        %v1082 = vld [vmem:[#allocation10 + $0x30] sm:$0xff]
        %v1083 = vld [vmem:[#allocation10 + $0x38] sm:$0xff]
        %v1084 = vld [vmem:[#allocation10 + $0x40] sm:$0xff]
        %v1085 = vld [vmem:[#allocation10 + $0x48] sm:$0xff]
        %v1086 = vld [vmem:[#allocation10 + $0x50] sm:$0xff]
        %v1087 = vld [vmem:[#allocation10 + $0x58] sm:$0xff]
        %v1088 = vld [vmem:[#allocation10 + $0x60] sm:$0xff]
        %v1089 = vld [vmem:[#allocation10 + $0x68] sm:$0xff]
        %v1090 = vld [vmem:[#allocation10 + $0x70] sm:$0xff]
        %v1091 = vld [vmem:[#allocation10 + $0x78] sm:$0xff]
        %v1092 = vld [vmem:[#allocation10 + $0x80] sm:$0xff]
        %v1093 = vld [vmem:[#allocation10 + $0x88] sm:$0xff]
        %v1094 = vld [vmem:[#allocation10 + $0x90] sm:$0xff]
        %v1095 = vld [vmem:[#allocation10 + $0x98] sm:$0xff]
        %v1096 = vld [vmem:[#allocation10 + $0xa0] sm:$0xff]
        %v1097 = vld [vmem:[#allocation10 + $0xa8] sm:$0xff]
        %v1098 = vld [vmem:[#allocation10 + $0xb0] sm:$0xff]
        %v1099 = vld [vmem:[#allocation10 + $0xb8] sm:$0xff]
        %v1100 = vld [vmem:[#allocation10 + $0xc0] sm:$0xff]
        %v1101 = vld [vmem:[#allocation10 + $0xc8] sm:$0xff]
        %v1102 = vld [vmem:[#allocation10 + $0xd0] sm:$0xff]
        %v1103 = vld [vmem:[#allocation10 + $0xd8] sm:$0xff]
        %v1104 = vld [vmem:[#allocation10 + $0xe0] sm:$0xff]
        %v1105 = vld [vmem:[#allocation10 + $0xe8] sm:$0xff]
        %v1106 = vld [vmem:[#allocation10 + $0xf0] sm:$0xff]
        %v1107 = vld [vmem:[#allocation10 + $0xf8] sm:$0xff]
        %v1140 = vunpack.c.l.b16 %v1076
        %v1141 = vunpack.c.h.b16 %v1076
        %v1142 = vunpack.c.l.b16 %v1077
        %v1143 = vunpack.c.h.b16 %v1077
        %v1144 = vunpack.c.l.b16 %v1078
        %v1145 = vunpack.c.h.b16 %v1078
        %v1146 = vunpack.c.l.b16 %v1079
        %v1147 = vunpack.c.h.b16 %v1079
        %v1148 = vunpack.c.l.b16 %v1080
        %v1149 = vunpack.c.h.b16 %v1080
        %v1150 = vunpack.c.l.b16 %v1081
        %v1151 = vunpack.c.h.b16 %v1081
        %v1152 = vunpack.c.l.b16 %v1082
        %v1153 = vunpack.c.h.b16 %v1082
        %v1154 = vunpack.c.l.b16 %v1083
        %v1155 = vunpack.c.h.b16 %v1083
        %v1156 = vunpack.c.l.b16 %v1084
        %v1157 = vunpack.c.h.b16 %v1084
        %v1158 = vunpack.c.l.b16 %v1085
        %v1159 = vunpack.c.h.b16 %v1085
        %v1160 = vunpack.c.l.b16 %v1086
        %v1161 = vunpack.c.h.b16 %v1086
        %v1162 = vunpack.c.l.b16 %v1087
        %v1163 = vunpack.c.h.b16 %v1087
        %v1164 = vunpack.c.l.b16 %v1088
        %v1165 = vunpack.c.h.b16 %v1088
        %v1166 = vunpack.c.l.b16 %v1089
        %v1167 = vunpack.c.h.b16 %v1089
        %v1168 = vunpack.c.l.b16 %v1090
        %v1169 = vunpack.c.h.b16 %v1090
        %v1170 = vunpack.c.l.b16 %v1091
        %v1171 = vunpack.c.h.b16 %v1091
        %v1172 = vunpack.c.l.b16 %v1092
        %v1173 = vunpack.c.h.b16 %v1092
        %v1174 = vunpack.c.l.b16 %v1093
        %v1175 = vunpack.c.h.b16 %v1093
        %v1176 = vunpack.c.l.b16 %v1094
        %v1177 = vunpack.c.h.b16 %v1094
        %v1178 = vunpack.c.l.b16 %v1095
        %v1179 = vunpack.c.h.b16 %v1095
        %v1180 = vunpack.c.l.b16 %v1096
        %v1181 = vunpack.c.h.b16 %v1096
        %v1182 = vunpack.c.l.b16 %v1097
        %v1183 = vunpack.c.h.b16 %v1097
        %v1184 = vunpack.c.l.b16 %v1098
        %v1185 = vunpack.c.h.b16 %v1098
        %v1186 = vunpack.c.l.b16 %v1099
        %v1187 = vunpack.c.h.b16 %v1099
        %v1188 = vunpack.c.l.b16 %v1100
        %v1189 = vunpack.c.h.b16 %v1100
        %v1190 = vunpack.c.l.b16 %v1101
        %v1191 = vunpack.c.h.b16 %v1101
        %v1192 = vunpack.c.l.b16 %v1102
        %v1193 = vunpack.c.h.b16 %v1102
        %v1194 = vunpack.c.l.b16 %v1103
        %v1195 = vunpack.c.h.b16 %v1103
        %v1196 = vunpack.c.l.b16 %v1104
        %v1197 = vunpack.c.h.b16 %v1104
        %v1198 = vunpack.c.l.b16 %v1105
        %v1199 = vunpack.c.h.b16 %v1105
        %v1200 = vunpack.c.l.b16 %v1106
        %v1201 = vunpack.c.h.b16 %v1106
        %v1202 = vunpack.c.l.b16 %v1107
        %v1203 = vunpack.c.h.b16 %v1107
        %v1204 = vpack.c.b16 %v1144, %v1140
        %v1205 = vpack.c.b16 %v1145, %v1141
        %v1206 = vpack.c.b16 %v1146, %v1142
        %v1207 = vpack.c.b16 %v1147, %v1143
        %v1208 = vpack.c.b16 %v1152, %v1148
        %v1209 = vpack.c.b16 %v1153, %v1149
        %v1210 = vpack.c.b16 %v1154, %v1150
        %v1211 = vpack.c.b16 %v1155, %v1151
        %v1212 = vpack.c.b16 %v1160, %v1156
        %v1213 = vpack.c.b16 %v1161, %v1157
        %v1214 = vpack.c.b16 %v1162, %v1158
        %v1215 = vpack.c.b16 %v1163, %v1159
        %v1216 = vpack.c.b16 %v1168, %v1164
        %v1217 = vpack.c.b16 %v1169, %v1165
        %v1218 = vpack.c.b16 %v1170, %v1166
        %v1219 = vpack.c.b16 %v1171, %v1167
        %v1220 = vpack.c.b16 %v1176, %v1172
        %v1221 = vpack.c.b16 %v1177, %v1173
        %v1222 = vpack.c.b16 %v1178, %v1174
        %v1223 = vpack.c.b16 %v1179, %v1175
        %v1224 = vpack.c.b16 %v1184, %v1180
        %v1225 = vpack.c.b16 %v1185, %v1181
        %v1226 = vpack.c.b16 %v1186, %v1182
        %v1227 = vpack.c.b16 %v1187, %v1183
        %v1228 = vpack.c.b16 %v1192, %v1188
        %v1229 = vpack.c.b16 %v1193, %v1189
        %v1230 = vpack.c.b16 %v1194, %v1190
        %v1231 = vpack.c.b16 %v1195, %v1191
        %v1232 = vpack.c.b16 %v1200, %v1196
        %v1233 = vpack.c.b16 %v1201, %v1197
        %v1234 = vpack.c.b16 %v1202, %v1198
        %v1235 = vpack.c.b16 %v1203, %v1199
        %1268 = vmatprep.subr.bf16.mxu0 %v1233
        %1269 = vmatpush1.bf16.msra.mxu0 %v1232
        %1270 = vmatprep.subr.bf16.mxu0 %v1229
        %1271 = vmatpush1.bf16.msra.mxu0 %v1228
        %1272 = vmatprep.subr.bf16.mxu0 %v1225
        %1273 = vmatpush1.bf16.msra.mxu0 %v1224
        %1274 = vmatprep.subr.bf16.mxu0 %v1221
        %1275 = vmatpush1.bf16.msra.mxu0 %v1220
        %1276 = vmatprep.subr.bf16.mxu0 %v1217
        %1277 = vmatpush1.bf16.msra.mxu0 %v1216
        %1278 = vmatprep.subr.bf16.mxu0 %v1213
        %1279 = vmatpush1.bf16.msra.mxu0 %v1212
        %1280 = vmatprep.subr.bf16.mxu0 %v1209
        %1281 = vmatpush1.bf16.msra.mxu0 %v1208
        %1282 = vmatprep.subr.bf16.mxu0 %v1205
        %1283 = vmatpush1.bf16.msra.mxu0 %v1204
        %1284 = vmatprep.subr.bf16.mxu0 0
        %1285 = vmatpush2.bf16.msra.mxu0 0
        %1286 = vmatprep.subr.bf16.mxu0 0
        %1287 = vmatpush2.bf16.msra.mxu0 0
        %1288 = vmatprep.subr.bf16.mxu0 0
        %1289 = vmatpush2.bf16.msra.mxu0 0
        %1290 = vmatprep.subr.bf16.mxu0 0
        %1291 = vmatpush2.bf16.msra.mxu0 0
        %1292 = vmatprep.subr.bf16.mxu0 0
        %1293 = vmatpush2.bf16.msra.mxu0 0
        %1294 = vmatprep.subr.bf16.mxu0 0
        %1295 = vmatpush2.bf16.msra.mxu0 0
        %1296 = vmatprep.subr.bf16.mxu0 0
        %1297 = vmatpush2.bf16.msra.mxu0 0
        %1298 = vmatprep.subr.bf16.mxu0 0
        %1299 = vmatpush2.bf16.msra.mxu0 0
        %1300 = vmatprep.mubr.bf16.mxu0 0
        %1301 = vmatmul.mubr.bf16.gmra.mxu0 %v1075
        %v1302 = vpop.f32.mrf.mxu0
        %v1303 = vadd.f32 0.0, %v1302
        %v1304 = vpop.f32.mrf.mxu0
        %v1305 = vadd.f32 0.0, %v1304
        %v1306 = vpop.f32.mrf.mxu0
        %v1307 = vpop.f32.mrf.mxu0
        %1308 = vdwg.mxu0
        %1309 = vmatprep.subr.bf16.mxu0 %v1235
        %1310 = vmatpush1.bf16.msra.mxu0 %v1234
        %1311 = vmatprep.subr.bf16.mxu0 %v1231
        %1312 = vmatpush1.bf16.msra.mxu0 %v1230
        %1313 = vmatprep.subr.bf16.mxu0 %v1227
        %1314 = vmatpush1.bf16.msra.mxu0 %v1226
        %1315 = vmatprep.subr.bf16.mxu0 %v1223
        %1316 = vmatpush1.bf16.msra.mxu0 %v1222
        %1317 = vmatprep.subr.bf16.mxu0 %v1219
        %1318 = vmatpush1.bf16.msra.mxu0 %v1218
        %1319 = vmatprep.subr.bf16.mxu0 %v1215
        %1320 = vmatpush1.bf16.msra.mxu0 %v1214
        %1321 = vmatprep.subr.bf16.mxu0 %v1211
        %1322 = vmatpush1.bf16.msra.mxu0 %v1210
        %1323 = vmatprep.subr.bf16.mxu0 %v1207
        %1324 = vmatpush1.bf16.msra.mxu0 %v1206
        %1325 = vmatprep.subr.bf16.mxu0 0
        %1326 = vmatpush2.bf16.msra.mxu0 0
        %1327 = vmatprep.subr.bf16.mxu0 0
        %1328 = vmatpush2.bf16.msra.mxu0 0
        %1329 = vmatprep.subr.bf16.mxu0 0
        %1330 = vmatpush2.bf16.msra.mxu0 0
        %1331 = vmatprep.subr.bf16.mxu0 0
        %1332 = vmatpush2.bf16.msra.mxu0 0
        %1333 = vmatprep.subr.bf16.mxu0 0
        %1334 = vmatpush2.bf16.msra.mxu0 0
        %1335 = vmatprep.subr.bf16.mxu0 0
        %1336 = vmatpush2.bf16.msra.mxu0 0
        %1337 = vmatprep.subr.bf16.mxu0 0
        %1338 = vmatpush2.bf16.msra.mxu0 0
        %1339 = vmatprep.subr.bf16.mxu0 0
        %1340 = vmatpush2.bf16.msra.mxu0 0
        %1341 = vmatprep.mubr.bf16.mxu0 0
        %1342 = vmatmul.mubr.bf16.gmra.mxu0 %v1075
        %v1343 = vpop.f32.mrf.mxu0
        %v1344 = vadd.f32 0.0, %v1343
        %v1345 = vpop.f32.mrf.mxu0
        %v1346 = vadd.f32 0.0, %v1345
        %v1347 = vpop.f32.mrf.mxu0
        %v1348 = vpop.f32.mrf.mxu0
        %1349 = vdwg.mxu0
        %v1350 = vadd.f32 %v1071, %v1303
        %v1351 = vadd.f32 %v1072, %v1305
        %v1352 = vadd.f32 %v1073, %v1344
        %v1353 = vadd.f32 %v1074, %v1346
        %v1354 = vxor.u32 %v1350, 2147483648
        %v1355 = vmul.f32 %v1354, 1.442695
        %v1356 = vpow.pop %v1355
        %v1357 = vadd.f32 %v1356, 1.0
        %v1358 = vrcp.pop %v1357
        %v1359 = vmul.f32 1.0, %v1358
        %v1360 = vxor.u32 %v1351, 2147483648
        %v1361 = vmul.f32 %v1360, 1.442695
        %v1362 = vpow.pop %v1361
        %v1363 = vadd.f32 %v1362, 1.0
        %v1364 = vrcp.pop %v1363
        %v1365 = vmul.f32 1.0, %v1364
        %v1366 = vtanh.pop %v1352
        %v1367 = vxor.u32 %v1353, 2147483648
        %v1368 = vmul.f32 %v1367, 1.442695
        %v1369 = vpow.pop %v1368
        %v1370 = vadd.f32 %v1369, 1.0
        %v1371 = vrcp.pop %v1370
        %v1372 = vmul.f32 1.0, %v1371
        %v1373 = vmul.f32 %v1365, %v1067
        %v1374 = vmul.f32 %v1359, %v1366
        %v1375 = vadd.f32 %v1373, %v1374
        %v1376 = vtanh.pop %v1375
        %v1377 = vmul.f32 %v1372, %v1376
        %v1378 = vstv %s1065
        %vm1379 = vcmp.lt.s32.totalorder %v1378, %v1064
        %v1380 = vsel %vm1379, 1, 0
        %1381 = vset.pattern.permute.xlu0 0
        %1382 = vperm.xlu0 %1381, %v1380
        %v1383 = vpop.permute.xlu0 %1382
        %vm1384 = vcmp.eq.s32.totalorder %v1383, 1
        %v1385 = vsel %vm1384, %v1377, %v1066
        %v1386 = vsel %vm1384, %v1375, %v1067
        %s1387 = smul.u32 1, 4
        %s1388 = smul.addr %s1387, 8
        %s1389 = scalar_lea.vmem [#allocation4], %s1388
        %v1390 = vld [vmem:[%s1389] sm:$0xff]
        %v1391 = vld [vmem:[%s1389 + $0x8] sm:$0xff]
        %v1392 = vld [vmem:[%s1389 + $0x10] sm:$0xff]
        %v1393 = vld [vmem:[%s1389 + $0x18] sm:$0xff]
        %v1394 = vpack.c.bf16 %v1385, %v1385
        %1395 = vmatprep.subr.bf16.mxu0 %v1233
        %1396 = vmatpush1.bf16.msra.mxu0 %v1232
        %1397 = vmatprep.subr.bf16.mxu0 %v1229
        %1398 = vmatpush1.bf16.msra.mxu0 %v1228
        %1399 = vmatprep.subr.bf16.mxu0 %v1225
        %1400 = vmatpush1.bf16.msra.mxu0 %v1224
        %1401 = vmatprep.subr.bf16.mxu0 %v1221
        %1402 = vmatpush1.bf16.msra.mxu0 %v1220
        %1403 = vmatprep.subr.bf16.mxu0 %v1217
        %1404 = vmatpush1.bf16.msra.mxu0 %v1216
        %1405 = vmatprep.subr.bf16.mxu0 %v1213
        %1406 = vmatpush1.bf16.msra.mxu0 %v1212
        %1407 = vmatprep.subr.bf16.mxu0 %v1209
        %1408 = vmatpush1.bf16.msra.mxu0 %v1208
        %1409 = vmatprep.subr.bf16.mxu0 %v1205
        %1410 = vmatpush1.bf16.msra.mxu0 %v1204
        %1411 = vmatprep.subr.bf16.mxu0 0
        %1412 = vmatpush2.bf16.msra.mxu0 0
        %1413 = vmatprep.subr.bf16.mxu0 0
        %1414 = vmatpush2.bf16.msra.mxu0 0
        %1415 = vmatprep.subr.bf16.mxu0 0
        %1416 = vmatpush2.bf16.msra.mxu0 0
        %1417 = vmatprep.subr.bf16.mxu0 0
        %1418 = vmatpush2.bf16.msra.mxu0 0
        %1419 = vmatprep.subr.bf16.mxu0 0
        %1420 = vmatpush2.bf16.msra.mxu0 0
        %1421 = vmatprep.subr.bf16.mxu0 0
        %1422 = vmatpush2.bf16.msra.mxu0 0
        %1423 = vmatprep.subr.bf16.mxu0 0
        %1424 = vmatpush2.bf16.msra.mxu0 0
        %1425 = vmatprep.subr.bf16.mxu0 0
        %1426 = vmatpush2.bf16.msra.mxu0 0
        %1427 = vmatprep.mubr.bf16.mxu0 0
        %1428 = vmatmul.mubr.bf16.gmra.mxu0 %v1394
        %v1429 = vpop.f32.mrf.mxu0
        %v1430 = vadd.f32 0.0, %v1429
        %v1431 = vpop.f32.mrf.mxu0
        %v1432 = vadd.f32 0.0, %v1431
        %v1433 = vpop.f32.mrf.mxu0
        %v1434 = vpop.f32.mrf.mxu0
        %1435 = vdwg.mxu0
        %1436 = vmatprep.subr.bf16.mxu0 %v1235
        %1437 = vmatpush1.bf16.msra.mxu0 %v1234
        %1438 = vmatprep.subr.bf16.mxu0 %v1231
        %1439 = vmatpush1.bf16.msra.mxu0 %v1230
        %1440 = vmatprep.subr.bf16.mxu0 %v1227
        %1441 = vmatpush1.bf16.msra.mxu0 %v1226
        %1442 = vmatprep.subr.bf16.mxu0 %v1223
        %1443 = vmatpush1.bf16.msra.mxu0 %v1222
        %1444 = vmatprep.subr.bf16.mxu0 %v1219
        %1445 = vmatpush1.bf16.msra.mxu0 %v1218
        %1446 = vmatprep.subr.bf16.mxu0 %v1215
        %1447 = vmatpush1.bf16.msra.mxu0 %v1214
        %1448 = vmatprep.subr.bf16.mxu0 %v1211
        %1449 = vmatpush1.bf16.msra.mxu0 %v1210
        %1450 = vmatprep.subr.bf16.mxu0 %v1207
        %1451 = vmatpush1.bf16.msra.mxu0 %v1206
        %1452 = vmatprep.subr.bf16.mxu0 0
        %1453 = vmatpush2.bf16.msra.mxu0 0
        %1454 = vmatprep.subr.bf16.mxu0 0
        %1455 = vmatpush2.bf16.msra.mxu0 0
        %1456 = vmatprep.subr.bf16.mxu0 0
        %1457 = vmatpush2.bf16.msra.mxu0 0
        %1458 = vmatprep.subr.bf16.mxu0 0
        %1459 = vmatpush2.bf16.msra.mxu0 0
        %1460 = vmatprep.subr.bf16.mxu0 0
        %1461 = vmatpush2.bf16.msra.mxu0 0
        %1462 = vmatprep.subr.bf16.mxu0 0
        %1463 = vmatpush2.bf16.msra.mxu0 0
        %1464 = vmatprep.subr.bf16.mxu0 0
        %1465 = vmatpush2.bf16.msra.mxu0 0
        %1466 = vmatprep.subr.bf16.mxu0 0
        %1467 = vmatpush2.bf16.msra.mxu0 0
        %1468 = vmatprep.mubr.bf16.mxu0 0
        %1469 = vmatmul.mubr.bf16.gmra.mxu0 %v1394
        %v1470 = vpop.f32.mrf.mxu0
        %v1471 = vadd.f32 0.0, %v1470
        %v1472 = vpop.f32.mrf.mxu0
        %v1473 = vadd.f32 0.0, %v1472
        %v1474 = vpop.f32.mrf.mxu0
        %v1475 = vpop.f32.mrf.mxu0
        %1476 = vdwg.mxu0
        %v1477 = vadd.f32 %v1390, %v1430
        %v1478 = vadd.f32 %v1391, %v1432
        %v1479 = vadd.f32 %v1392, %v1471
        %v1480 = vadd.f32 %v1393, %v1473
        %v1481 = vxor.u32 %v1477, 2147483648
        %v1482 = vmul.f32 %v1481, 1.442695
        %v1483 = vpow.pop %v1482
        %v1484 = vadd.f32 %v1483, 1.0
        %v1485 = vrcp.pop %v1484
        %v1486 = vmul.f32 1.0, %v1485
        %v1487 = vxor.u32 %v1478, 2147483648
        %v1488 = vmul.f32 %v1487, 1.442695
        %v1489 = vpow.pop %v1488
        %v1490 = vadd.f32 %v1489, 1.0
        %v1491 = vrcp.pop %v1490
        %v1492 = vmul.f32 1.0, %v1491
        %v1493 = vtanh.pop %v1479
        %v1494 = vxor.u32 %v1480, 2147483648
        %v1495 = vmul.f32 %v1494, 1.442695
        %v1496 = vpow.pop %v1495
        %v1497 = vadd.f32 %v1496, 1.0
        %v1498 = vrcp.pop %v1497
        %v1499 = vmul.f32 1.0, %v1498
        %v1500 = vmul.f32 %v1492, %v1386
        %v1501 = vmul.f32 %v1486, %v1493
        %v1502 = vadd.f32 %v1500, %v1501
        %v1503 = vtanh.pop %v1502
        %v1504 = vmul.f32 %v1499, %v1503
        %s1505 = sadd.s32 %s1065, 1
        %v1506 = vstv %s1505
        %vm1507 = vcmp.lt.s32.totalorder %v1506, %v1064
        %v1508 = vsel %vm1507, 1, 0
        %1509 = vset.pattern.permute.xlu0 0
        %1510 = vperm.xlu0 %1509, %v1508
        %v1511 = vpop.permute.xlu0 %1510
        %vm1512 = vcmp.eq.s32.totalorder %v1511, 1
        %v1513 = vsel %vm1512, %v1504, %v1385
        %v1514 = vsel %vm1512, %v1502, %v1386
        %s1515 = smul.u32 2, 4
        %s1516 = smul.addr %s1515, 8
        %s1517 = scalar_lea.vmem [#allocation4], %s1516
        %v1518 = vld [vmem:[%s1517] sm:$0xff]
        %v1519 = vld [vmem:[%s1517 + $0x8] sm:$0xff]
        %v1520 = vld [vmem:[%s1517 + $0x10] sm:$0xff]
        %v1521 = vld [vmem:[%s1517 + $0x18] sm:$0xff]
        %v1522 = vpack.c.bf16 %v1513, %v1513
        %1523 = vmatprep.subr.bf16.mxu0 %v1233
        %1524 = vmatpush1.bf16.msra.mxu0 %v1232
        %1525 = vmatprep.subr.bf16.mxu0 %v1229
        %1526 = vmatpush1.bf16.msra.mxu0 %v1228
        %1527 = vmatprep.subr.bf16.mxu0 %v1225
        %1528 = vmatpush1.bf16.msra.mxu0 %v1224
        %1529 = vmatprep.subr.bf16.mxu0 %v1221
        %1530 = vmatpush1.bf16.msra.mxu0 %v1220
        %1531 = vmatprep.subr.bf16.mxu0 %v1217
        %1532 = vmatpush1.bf16.msra.mxu0 %v1216
        %1533 = vmatprep.subr.bf16.mxu0 %v1213
        %1534 = vmatpush1.bf16.msra.mxu0 %v1212
        %1535 = vmatprep.subr.bf16.mxu0 %v1209
        %1536 = vmatpush1.bf16.msra.mxu0 %v1208
        %1537 = vmatprep.subr.bf16.mxu0 %v1205
        %1538 = vmatpush1.bf16.msra.mxu0 %v1204
        %1539 = vmatprep.subr.bf16.mxu0 0
        %1540 = vmatpush2.bf16.msra.mxu0 0
        %1541 = vmatprep.subr.bf16.mxu0 0
        %1542 = vmatpush2.bf16.msra.mxu0 0
        %1543 = vmatprep.subr.bf16.mxu0 0
        %1544 = vmatpush2.bf16.msra.mxu0 0
        %1545 = vmatprep.subr.bf16.mxu0 0
        %1546 = vmatpush2.bf16.msra.mxu0 0
        %1547 = vmatprep.subr.bf16.mxu0 0
        %1548 = vmatpush2.bf16.msra.mxu0 0
        %1549 = vmatprep.subr.bf16.mxu0 0
        %1550 = vmatpush2.bf16.msra.mxu0 0
        %1551 = vmatprep.subr.bf16.mxu0 0
        %1552 = vmatpush2.bf16.msra.mxu0 0
        %1553 = vmatprep.subr.bf16.mxu0 0
        %1554 = vmatpush2.bf16.msra.mxu0 0
        %1555 = vmatprep.mubr.bf16.mxu0 0
        %1556 = vmatmul.mubr.bf16.gmra.mxu0 %v1522
        %v1557 = vpop.f32.mrf.mxu0
        %v1558 = vadd.f32 0.0, %v1557
        %v1559 = vpop.f32.mrf.mxu0
        %v1560 = vadd.f32 0.0, %v1559
        %v1561 = vpop.f32.mrf.mxu0
        %v1562 = vpop.f32.mrf.mxu0
        %1563 = vdwg.mxu0
        %1564 = vmatprep.subr.bf16.mxu0 %v1235
        %1565 = vmatpush1.bf16.msra.mxu0 %v1234
        %1566 = vmatprep.subr.bf16.mxu0 %v1231
        %1567 = vmatpush1.bf16.msra.mxu0 %v1230
        %1568 = vmatprep.subr.bf16.mxu0 %v1227
        %1569 = vmatpush1.bf16.msra.mxu0 %v1226
        %1570 = vmatprep.subr.bf16.mxu0 %v1223
        %1571 = vmatpush1.bf16.msra.mxu0 %v1222
        %1572 = vmatprep.subr.bf16.mxu0 %v1219
        %1573 = vmatpush1.bf16.msra.mxu0 %v1218
        %1574 = vmatprep.subr.bf16.mxu0 %v1215
        %1575 = vmatpush1.bf16.msra.mxu0 %v1214
        %1576 = vmatprep.subr.bf16.mxu0 %v1211
        %1577 = vmatpush1.bf16.msra.mxu0 %v1210
        %1578 = vmatprep.subr.bf16.mxu0 %v1207
        %1579 = vmatpush1.bf16.msra.mxu0 %v1206
        %1580 = vmatprep.subr.bf16.mxu0 0
        %1581 = vmatpush2.bf16.msra.mxu0 0
        %1582 = vmatprep.subr.bf16.mxu0 0
        %1583 = vmatpush2.bf16.msra.mxu0 0
        %1584 = vmatprep.subr.bf16.mxu0 0
        %1585 = vmatpush2.bf16.msra.mxu0 0
        %1586 = vmatprep.subr.bf16.mxu0 0
        %1587 = vmatpush2.bf16.msra.mxu0 0
        %1588 = vmatprep.subr.bf16.mxu0 0
        %1589 = vmatpush2.bf16.msra.mxu0 0
        %1590 = vmatprep.subr.bf16.mxu0 0
        %1591 = vmatpush2.bf16.msra.mxu0 0
        %1592 = vmatprep.subr.bf16.mxu0 0
        %1593 = vmatpush2.bf16.msra.mxu0 0
        %1594 = vmatprep.subr.bf16.mxu0 0
        %1595 = vmatpush2.bf16.msra.mxu0 0
        %1596 = vmatprep.mubr.bf16.mxu0 0
        %1597 = vmatmul.mubr.bf16.gmra.mxu0 %v1522
        %v1598 = vpop.f32.mrf.mxu0
        %v1599 = vadd.f32 0.0, %v1598
        %v1600 = vpop.f32.mrf.mxu0
        %v1601 = vadd.f32 0.0, %v1600
        %v1602 = vpop.f32.mrf.mxu0
        %v1603 = vpop.f32.mrf.mxu0
        %1604 = vdwg.mxu0
        %v1605 = vadd.f32 %v1518, %v1558
        %v1606 = vadd.f32 %v1519, %v1560
        %v1607 = vadd.f32 %v1520, %v1599
        %v1608 = vadd.f32 %v1521, %v1601
        %v1609 = vxor.u32 %v1605, 2147483648
        %v1610 = vmul.f32 %v1609, 1.442695
        %v1611 = vpow.pop %v1610
        %v1612 = vadd.f32 %v1611, 1.0
        %v1613 = vrcp.pop %v1612
        %v1614 = vmul.f32 1.0, %v1613
        %v1615 = vxor.u32 %v1606, 2147483648
        %v1616 = vmul.f32 %v1615, 1.442695
        %v1617 = vpow.pop %v1616
        %v1618 = vadd.f32 %v1617, 1.0
        %v1619 = vrcp.pop %v1618
        %v1620 = vmul.f32 1.0, %v1619
        %v1621 = vtanh.pop %v1607
        %v1622 = vxor.u32 %v1608, 2147483648
        %v1623 = vmul.f32 %v1622, 1.442695
        %v1624 = vpow.pop %v1623
        %v1625 = vadd.f32 %v1624, 1.0
        %v1626 = vrcp.pop %v1625
        %v1627 = vmul.f32 1.0, %v1626
        %v1628 = vmul.f32 %v1620, %v1514
        %v1629 = vmul.f32 %v1614, %v1621
        %v1630 = vadd.f32 %v1628, %v1629
        %v1631 = vtanh.pop %v1630
        %v1632 = vmul.f32 %v1627, %v1631
        %s1633 = sadd.s32 %s1065, 2
        %v1634 = vstv %s1633
        %vm1635 = vcmp.lt.s32.totalorder %v1634, %v1064
        %v1636 = vsel %vm1635, 1, 0
        %1637 = vset.pattern.permute.xlu0 0
        %1638 = vperm.xlu0 %1637, %v1636
        %v1639 = vpop.permute.xlu0 %1638
        %vm1640 = vcmp.eq.s32.totalorder %v1639, 1
        %v1641 = vsel %vm1640, %v1632, %v1513
        %v1642 = vsel %vm1640, %v1630, %v1514
        %s1643 = smul.u32 3, 4
        %s1644 = smul.addr %s1643, 8
        %s1645 = scalar_lea.vmem [#allocation4], %s1644
        %v1646 = vld [vmem:[%s1645] sm:$0xff]
        %v1647 = vld [vmem:[%s1645 + $0x8] sm:$0xff]
        %v1648 = vld [vmem:[%s1645 + $0x10] sm:$0xff]
        %v1649 = vld [vmem:[%s1645 + $0x18] sm:$0xff]
        %v1650 = vpack.c.bf16 %v1641, %v1641
        %1651 = vmatprep.subr.bf16.mxu0 %v1233
        %1652 = vmatpush1.bf16.msra.mxu0 %v1232
        %1653 = vmatprep.subr.bf16.mxu0 %v1229
        %1654 = vmatpush1.bf16.msra.mxu0 %v1228
        %1655 = vmatprep.subr.bf16.mxu0 %v1225
        %1656 = vmatpush1.bf16.msra.mxu0 %v1224
        %1657 = vmatprep.subr.bf16.mxu0 %v1221
        %1658 = vmatpush1.bf16.msra.mxu0 %v1220
        %1659 = vmatprep.subr.bf16.mxu0 %v1217
        %1660 = vmatpush1.bf16.msra.mxu0 %v1216
        %1661 = vmatprep.subr.bf16.mxu0 %v1213
        %1662 = vmatpush1.bf16.msra.mxu0 %v1212
        %1663 = vmatprep.subr.bf16.mxu0 %v1209
        %1664 = vmatpush1.bf16.msra.mxu0 %v1208
        %1665 = vmatprep.subr.bf16.mxu0 %v1205
        %1666 = vmatpush1.bf16.msra.mxu0 %v1204
        %1667 = vmatprep.subr.bf16.mxu0 0
        %1668 = vmatpush2.bf16.msra.mxu0 0
        %1669 = vmatprep.subr.bf16.mxu0 0
        %1670 = vmatpush2.bf16.msra.mxu0 0
        %1671 = vmatprep.subr.bf16.mxu0 0
        %1672 = vmatpush2.bf16.msra.mxu0 0
        %1673 = vmatprep.subr.bf16.mxu0 0
        %1674 = vmatpush2.bf16.msra.mxu0 0
        %1675 = vmatprep.subr.bf16.mxu0 0
        %1676 = vmatpush2.bf16.msra.mxu0 0
        %1677 = vmatprep.subr.bf16.mxu0 0
        %1678 = vmatpush2.bf16.msra.mxu0 0
        %1679 = vmatprep.subr.bf16.mxu0 0
        %1680 = vmatpush2.bf16.msra.mxu0 0
        %1681 = vmatprep.subr.bf16.mxu0 0
        %1682 = vmatpush2.bf16.msra.mxu0 0
        %1683 = vmatprep.mubr.bf16.mxu0 0
        %1684 = vmatmul.mubr.bf16.gmra.mxu0 %v1650
        %v1685 = vpop.f32.mrf.mxu0
        %v1686 = vadd.f32 0.0, %v1685
        %v1687 = vpop.f32.mrf.mxu0
        %v1688 = vadd.f32 0.0, %v1687
        %v1689 = vpop.f32.mrf.mxu0
        %v1690 = vpop.f32.mrf.mxu0
        %1691 = vdwg.mxu0
        %1692 = vmatprep.subr.bf16.mxu0 %v1235
        %1693 = vmatpush1.bf16.msra.mxu0 %v1234
        %1694 = vmatprep.subr.bf16.mxu0 %v1231
        %1695 = vmatpush1.bf16.msra.mxu0 %v1230
        %1696 = vmatprep.subr.bf16.mxu0 %v1227
        %1697 = vmatpush1.bf16.msra.mxu0 %v1226
        %1698 = vmatprep.subr.bf16.mxu0 %v1223
        %1699 = vmatpush1.bf16.msra.mxu0 %v1222
        %1700 = vmatprep.subr.bf16.mxu0 %v1219
        %1701 = vmatpush1.bf16.msra.mxu0 %v1218
        %1702 = vmatprep.subr.bf16.mxu0 %v1215
        %1703 = vmatpush1.bf16.msra.mxu0 %v1214
        %1704 = vmatprep.subr.bf16.mxu0 %v1211
        %1705 = vmatpush1.bf16.msra.mxu0 %v1210
        %1706 = vmatprep.subr.bf16.mxu0 %v1207
        %1707 = vmatpush1.bf16.msra.mxu0 %v1206
        %1708 = vmatprep.subr.bf16.mxu0 0
        %1709 = vmatpush2.bf16.msra.mxu0 0
        %1710 = vmatprep.subr.bf16.mxu0 0
        %1711 = vmatpush2.bf16.msra.mxu0 0
        %1712 = vmatprep.subr.bf16.mxu0 0
        %1713 = vmatpush2.bf16.msra.mxu0 0
        %1714 = vmatprep.subr.bf16.mxu0 0
        %1715 = vmatpush2.bf16.msra.mxu0 0
        %1716 = vmatprep.subr.bf16.mxu0 0
        %1717 = vmatpush2.bf16.msra.mxu0 0
        %1718 = vmatprep.subr.bf16.mxu0 0
        %1719 = vmatpush2.bf16.msra.mxu0 0
        %1720 = vmatprep.subr.bf16.mxu0 0
        %1721 = vmatpush2.bf16.msra.mxu0 0
        %1722 = vmatprep.subr.bf16.mxu0 0
        %1723 = vmatpush2.bf16.msra.mxu0 0
        %1724 = vmatprep.mubr.bf16.mxu0 0
        %1725 = vmatmul.mubr.bf16.gmra.mxu0 %v1650
        %v1726 = vpop.f32.mrf.mxu0
        %v1727 = vadd.f32 0.0, %v1726
        %v1728 = vpop.f32.mrf.mxu0
        %v1729 = vadd.f32 0.0, %v1728
        %v1730 = vpop.f32.mrf.mxu0
        %v1731 = vpop.f32.mrf.mxu0
        %1732 = vdwg.mxu0
        %v1733 = vadd.f32 %v1646, %v1686
        %v1734 = vadd.f32 %v1647, %v1688
        %v1735 = vadd.f32 %v1648, %v1727
        %v1736 = vadd.f32 %v1649, %v1729
        %v1737 = vxor.u32 %v1733, 2147483648
        %v1738 = vmul.f32 %v1737, 1.442695
        %v1739 = vpow.pop %v1738
        %v1740 = vadd.f32 %v1739, 1.0
        %v1741 = vrcp.pop %v1740
        %v1742 = vmul.f32 1.0, %v1741
        %v1743 = vxor.u32 %v1734, 2147483648
        %v1744 = vmul.f32 %v1743, 1.442695
        %v1745 = vpow.pop %v1744
        %v1746 = vadd.f32 %v1745, 1.0
        %v1747 = vrcp.pop %v1746
        %v1748 = vmul.f32 1.0, %v1747
        %v1749 = vtanh.pop %v1735
        %v1750 = vxor.u32 %v1736, 2147483648
        %v1751 = vmul.f32 %v1750, 1.442695
        %v1752 = vpow.pop %v1751
        %v1753 = vadd.f32 %v1752, 1.0
        %v1754 = vrcp.pop %v1753
        %v1755 = vmul.f32 1.0, %v1754
        %v1756 = vmul.f32 %v1748, %v1642
        %v1757 = vmul.f32 %v1742, %v1749
        %v1758 = vadd.f32 %v1756, %v1757
        %v1759 = vtanh.pop %v1758
        %v1760 = vmul.f32 %v1755, %v1759
        %s1761 = sadd.s32 %s1065, 3
        %v1762 = vstv %s1761
        %vm1763 = vcmp.lt.s32.totalorder %v1762, %v1064
        %v1764 = vsel %vm1763, 1, 0
        %1765 = vset.pattern.permute.xlu0 0
        %1766 = vperm.xlu0 %1765, %v1764
        %v1767 = vpop.permute.xlu0 %1766
        %vm1768 = vcmp.eq.s32.totalorder %v1767, 1
        %v1769 = vsel %vm1768, %v1760, %v1641
        %v1770 = vsel %vm1768, %v1758, %v1642
        %s1771 = smul.u32 4, 4
        %s1772 = smul.addr %s1771, 8
        %s1773 = scalar_lea.vmem [#allocation4], %s1772
        %v1774 = vld [vmem:[%s1773] sm:$0xff]
        %v1775 = vld [vmem:[%s1773 + $0x8] sm:$0xff]
        %v1776 = vld [vmem:[%s1773 + $0x10] sm:$0xff]
        %v1777 = vld [vmem:[%s1773 + $0x18] sm:$0xff]
        %v1778 = vpack.c.bf16 %v1769, %v1769
        %1779 = vmatprep.subr.bf16.mxu0 %v1233
        %1780 = vmatpush1.bf16.msra.mxu0 %v1232
        %1781 = vmatprep.subr.bf16.mxu0 %v1229
        %1782 = vmatpush1.bf16.msra.mxu0 %v1228
        %1783 = vmatprep.subr.bf16.mxu0 %v1225
        %1784 = vmatpush1.bf16.msra.mxu0 %v1224
        %1785 = vmatprep.subr.bf16.mxu0 %v1221
        %1786 = vmatpush1.bf16.msra.mxu0 %v1220
        %1787 = vmatprep.subr.bf16.mxu0 %v1217
        %1788 = vmatpush1.bf16.msra.mxu0 %v1216
        %1789 = vmatprep.subr.bf16.mxu0 %v1213
        %1790 = vmatpush1.bf16.msra.mxu0 %v1212
        %1791 = vmatprep.subr.bf16.mxu0 %v1209
        %1792 = vmatpush1.bf16.msra.mxu0 %v1208
        %1793 = vmatprep.subr.bf16.mxu0 %v1205
        %1794 = vmatpush1.bf16.msra.mxu0 %v1204
        %1795 = vmatprep.subr.bf16.mxu0 0
        %1796 = vmatpush2.bf16.msra.mxu0 0
        %1797 = vmatprep.subr.bf16.mxu0 0
        %1798 = vmatpush2.bf16.msra.mxu0 0
        %1799 = vmatprep.subr.bf16.mxu0 0
        %1800 = vmatpush2.bf16.msra.mxu0 0
        %1801 = vmatprep.subr.bf16.mxu0 0
        %1802 = vmatpush2.bf16.msra.mxu0 0
        %1803 = vmatprep.subr.bf16.mxu0 0
        %1804 = vmatpush2.bf16.msra.mxu0 0
        %1805 = vmatprep.subr.bf16.mxu0 0
        %1806 = vmatpush2.bf16.msra.mxu0 0
        %1807 = vmatprep.subr.bf16.mxu0 0
        %1808 = vmatpush2.bf16.msra.mxu0 0
        %1809 = vmatprep.subr.bf16.mxu0 0
        %1810 = vmatpush2.bf16.msra.mxu0 0
        %1811 = vmatprep.mubr.bf16.mxu0 0
        %1812 = vmatmul.mubr.bf16.gmra.mxu0 %v1778
        %v1813 = vpop.f32.mrf.mxu0
        %v1814 = vadd.f32 0.0, %v1813
        %v1815 = vpop.f32.mrf.mxu0
        %v1816 = vadd.f32 0.0, %v1815
        %v1817 = vpop.f32.mrf.mxu0
        %v1818 = vpop.f32.mrf.mxu0
        %1819 = vdwg.mxu0
        %1820 = vmatprep.subr.bf16.mxu0 %v1235
        %1821 = vmatpush1.bf16.msra.mxu0 %v1234
        %1822 = vmatprep.subr.bf16.mxu0 %v1231
        %1823 = vmatpush1.bf16.msra.mxu0 %v1230
        %1824 = vmatprep.subr.bf16.mxu0 %v1227
        %1825 = vmatpush1.bf16.msra.mxu0 %v1226
        %1826 = vmatprep.subr.bf16.mxu0 %v1223
        %1827 = vmatpush1.bf16.msra.mxu0 %v1222
        %1828 = vmatprep.subr.bf16.mxu0 %v1219
        %1829 = vmatpush1.bf16.msra.mxu0 %v1218
        %1830 = vmatprep.subr.bf16.mxu0 %v1215
        %1831 = vmatpush1.bf16.msra.mxu0 %v1214
        %1832 = vmatprep.subr.bf16.mxu0 %v1211
        %1833 = vmatpush1.bf16.msra.mxu0 %v1210
        %1834 = vmatprep.subr.bf16.mxu0 %v1207
        %1835 = vmatpush1.bf16.msra.mxu0 %v1206
        %1836 = vmatprep.subr.bf16.mxu0 0
        %1837 = vmatpush2.bf16.msra.mxu0 0
        %1838 = vmatprep.subr.bf16.mxu0 0
        %1839 = vmatpush2.bf16.msra.mxu0 0
        %1840 = vmatprep.subr.bf16.mxu0 0
        %1841 = vmatpush2.bf16.msra.mxu0 0
        %1842 = vmatprep.subr.bf16.mxu0 0
        %1843 = vmatpush2.bf16.msra.mxu0 0
        %1844 = vmatprep.subr.bf16.mxu0 0
        %1845 = vmatpush2.bf16.msra.mxu0 0
        %1846 = vmatprep.subr.bf16.mxu0 0
        %1847 = vmatpush2.bf16.msra.mxu0 0
        %1848 = vmatprep.subr.bf16.mxu0 0
        %1849 = vmatpush2.bf16.msra.mxu0 0
        %1850 = vmatprep.subr.bf16.mxu0 0
        %1851 = vmatpush2.bf16.msra.mxu0 0
        %1852 = vmatprep.mubr.bf16.mxu0 0
        %1853 = vmatmul.mubr.bf16.gmra.mxu0 %v1778
        %v1854 = vpop.f32.mrf.mxu0
        %v1855 = vadd.f32 0.0, %v1854
        %v1856 = vpop.f32.mrf.mxu0
        %v1857 = vadd.f32 0.0, %v1856
        %v1858 = vpop.f32.mrf.mxu0
        %v1859 = vpop.f32.mrf.mxu0
        %1860 = vdwg.mxu0
        %v1861 = vadd.f32 %v1774, %v1814
        %v1862 = vadd.f32 %v1775, %v1816
        %v1863 = vadd.f32 %v1776, %v1855
        %v1864 = vadd.f32 %v1777, %v1857
        %v1865 = vxor.u32 %v1861, 2147483648
        %v1866 = vmul.f32 %v1865, 1.442695
        %v1867 = vpow.pop %v1866
        %v1868 = vadd.f32 %v1867, 1.0
        %v1869 = vrcp.pop %v1868
        %v1870 = vmul.f32 1.0, %v1869
        %v1871 = vxor.u32 %v1862, 2147483648
        %v1872 = vmul.f32 %v1871, 1.442695
        %v1873 = vpow.pop %v1872
        %v1874 = vadd.f32 %v1873, 1.0
        %v1875 = vrcp.pop %v1874
        %v1876 = vmul.f32 1.0, %v1875
        %v1877 = vtanh.pop %v1863
        %v1878 = vxor.u32 %v1864, 2147483648
        %v1879 = vmul.f32 %v1878, 1.442695
        %v1880 = vpow.pop %v1879
        %v1881 = vadd.f32 %v1880, 1.0
        %v1882 = vrcp.pop %v1881
        %v1883 = vmul.f32 1.0, %v1882
        %v1884 = vmul.f32 %v1876, %v1770
        %v1885 = vmul.f32 %v1870, %v1877
        %v1886 = vadd.f32 %v1884, %v1885
        %v1887 = vtanh.pop %v1886
        %v1888 = vmul.f32 %v1883, %v1887
        %s1889 = sadd.s32 %s1065, 4
        %v1890 = vstv %s1889
        %vm1891 = vcmp.lt.s32.totalorder %v1890, %v1064
        %v1892 = vsel %vm1891, 1, 0
        %1893 = vset.pattern.permute.xlu0 0
        %1894 = vperm.xlu0 %1893, %v1892
        %v1895 = vpop.permute.xlu0 %1894
        %vm1896 = vcmp.eq.s32.totalorder %v1895, 1
        %v1897 = vsel %vm1896, %v1888, %v1769
        %v1898 = vsel %vm1896, %v1886, %v1770
        %s1899 = smul.u32 5, 4
        %s1900 = smul.addr %s1899, 8
        %s1901 = scalar_lea.vmem [#allocation4], %s1900
        %v1902 = vld [vmem:[%s1901] sm:$0xff]
        %v1903 = vld [vmem:[%s1901 + $0x8] sm:$0xff]
        %v1904 = vld [vmem:[%s1901 + $0x10] sm:$0xff]
        %v1905 = vld [vmem:[%s1901 + $0x18] sm:$0xff]
        %v1906 = vpack.c.bf16 %v1897, %v1897
        %1907 = vmatprep.subr.bf16.mxu0 %v1233
        %1908 = vmatpush1.bf16.msra.mxu0 %v1232
        %1909 = vmatprep.subr.bf16.mxu0 %v1229
        %1910 = vmatpush1.bf16.msra.mxu0 %v1228
        %1911 = vmatprep.subr.bf16.mxu0 %v1225
        %1912 = vmatpush1.bf16.msra.mxu0 %v1224
        %1913 = vmatprep.subr.bf16.mxu0 %v1221
        %1914 = vmatpush1.bf16.msra.mxu0 %v1220
        %1915 = vmatprep.subr.bf16.mxu0 %v1217
        %1916 = vmatpush1.bf16.msra.mxu0 %v1216
        %1917 = vmatprep.subr.bf16.mxu0 %v1213
        %1918 = vmatpush1.bf16.msra.mxu0 %v1212
        %1919 = vmatprep.subr.bf16.mxu0 %v1209
        %1920 = vmatpush1.bf16.msra.mxu0 %v1208
        %1921 = vmatprep.subr.bf16.mxu0 %v1205
        %1922 = vmatpush1.bf16.msra.mxu0 %v1204
        %1923 = vmatprep.subr.bf16.mxu0 0
        %1924 = vmatpush2.bf16.msra.mxu0 0
        %1925 = vmatprep.subr.bf16.mxu0 0
        %1926 = vmatpush2.bf16.msra.mxu0 0
        %1927 = vmatprep.subr.bf16.mxu0 0
        %1928 = vmatpush2.bf16.msra.mxu0 0
        %1929 = vmatprep.subr.bf16.mxu0 0
        %1930 = vmatpush2.bf16.msra.mxu0 0
        %1931 = vmatprep.subr.bf16.mxu0 0
        %1932 = vmatpush2.bf16.msra.mxu0 0
        %1933 = vmatprep.subr.bf16.mxu0 0
        %1934 = vmatpush2.bf16.msra.mxu0 0
        %1935 = vmatprep.subr.bf16.mxu0 0
        %1936 = vmatpush2.bf16.msra.mxu0 0
        %1937 = vmatprep.subr.bf16.mxu0 0
        %1938 = vmatpush2.bf16.msra.mxu0 0
        %1939 = vmatprep.mubr.bf16.mxu0 0
        %1940 = vmatmul.mubr.bf16.gmra.mxu0 %v1906
        %v1941 = vpop.f32.mrf.mxu0
        %v1942 = vadd.f32 0.0, %v1941
        %v1943 = vpop.f32.mrf.mxu0
        %v1944 = vadd.f32 0.0, %v1943
        %v1945 = vpop.f32.mrf.mxu0
        %v1946 = vpop.f32.mrf.mxu0
        %1947 = vdwg.mxu0
        %1948 = vmatprep.subr.bf16.mxu0 %v1235
        %1949 = vmatpush1.bf16.msra.mxu0 %v1234
        %1950 = vmatprep.subr.bf16.mxu0 %v1231
        %1951 = vmatpush1.bf16.msra.mxu0 %v1230
        %1952 = vmatprep.subr.bf16.mxu0 %v1227
        %1953 = vmatpush1.bf16.msra.mxu0 %v1226
        %1954 = vmatprep.subr.bf16.mxu0 %v1223
        %1955 = vmatpush1.bf16.msra.mxu0 %v1222
        %1956 = vmatprep.subr.bf16.mxu0 %v1219
        %1957 = vmatpush1.bf16.msra.mxu0 %v1218
        %1958 = vmatprep.subr.bf16.mxu0 %v1215
        %1959 = vmatpush1.bf16.msra.mxu0 %v1214
        %1960 = vmatprep.subr.bf16.mxu0 %v1211
        %1961 = vmatpush1.bf16.msra.mxu0 %v1210
        %1962 = vmatprep.subr.bf16.mxu0 %v1207
        %1963 = vmatpush1.bf16.msra.mxu0 %v1206
        %1964 = vmatprep.subr.bf16.mxu0 0
        %1965 = vmatpush2.bf16.msra.mxu0 0
        %1966 = vmatprep.subr.bf16.mxu0 0
        %1967 = vmatpush2.bf16.msra.mxu0 0
        %1968 = vmatprep.subr.bf16.mxu0 0
        %1969 = vmatpush2.bf16.msra.mxu0 0
        %1970 = vmatprep.subr.bf16.mxu0 0
        %1971 = vmatpush2.bf16.msra.mxu0 0
        %1972 = vmatprep.subr.bf16.mxu0 0
        %1973 = vmatpush2.bf16.msra.mxu0 0
        %1974 = vmatprep.subr.bf16.mxu0 0
        %1975 = vmatpush2.bf16.msra.mxu0 0
        %1976 = vmatprep.subr.bf16.mxu0 0
        %1977 = vmatpush2.bf16.msra.mxu0 0
        %1978 = vmatprep.subr.bf16.mxu0 0
        %1979 = vmatpush2.bf16.msra.mxu0 0
        %1980 = vmatprep.mubr.bf16.mxu0 0
        %1981 = vmatmul.mubr.bf16.gmra.mxu0 %v1906
        %v1982 = vpop.f32.mrf.mxu0
        %v1983 = vadd.f32 0.0, %v1982
        %v1984 = vpop.f32.mrf.mxu0
        %v1985 = vadd.f32 0.0, %v1984
        %v1986 = vpop.f32.mrf.mxu0
        %v1987 = vpop.f32.mrf.mxu0
        %1988 = vdwg.mxu0
        %v1989 = vadd.f32 %v1902, %v1942
        %v1990 = vadd.f32 %v1903, %v1944
        %v1991 = vadd.f32 %v1904, %v1983
        %v1992 = vadd.f32 %v1905, %v1985
        %v1993 = vxor.u32 %v1989, 2147483648
        %v1994 = vmul.f32 %v1993, 1.442695
        %v1995 = vpow.pop %v1994
        %v1996 = vadd.f32 %v1995, 1.0
        %v1997 = vrcp.pop %v1996
        %v1998 = vmul.f32 1.0, %v1997
        %v1999 = vxor.u32 %v1990, 2147483648
        %v2000 = vmul.f32 %v1999, 1.442695
        %v2001 = vpow.pop %v2000
        %v2002 = vadd.f32 %v2001, 1.0
        %v2003 = vrcp.pop %v2002
        %v2004 = vmul.f32 1.0, %v2003
        %v2005 = vtanh.pop %v1991
        %v2006 = vxor.u32 %v1992, 2147483648
        %v2007 = vmul.f32 %v2006, 1.442695
        %v2008 = vpow.pop %v2007
        %v2009 = vadd.f32 %v2008, 1.0
        %v2010 = vrcp.pop %v2009
        %v2011 = vmul.f32 1.0, %v2010
        %v2012 = vmul.f32 %v2004, %v1898
        %v2013 = vmul.f32 %v1998, %v2005
        %v2014 = vadd.f32 %v2012, %v2013
        %v2015 = vtanh.pop %v2014
        %v2016 = vmul.f32 %v2011, %v2015
        %s2017 = sadd.s32 %s1065, 5
        %v2018 = vstv %s2017
        %vm2019 = vcmp.lt.s32.totalorder %v2018, %v1064
        %v2020 = vsel %vm2019, 1, 0
        %2021 = vset.pattern.permute.xlu0 0
        %2022 = vperm.xlu0 %2021, %v2020
        %v2023 = vpop.permute.xlu0 %2022
        %vm2024 = vcmp.eq.s32.totalorder %v2023, 1
        %v2025 = vsel %vm2024, %v2016, %v1897
        %v2026 = vsel %vm2024, %v2014, %v1898
        %s2027 = smul.u32 6, 4
        %s2028 = smul.addr %s2027, 8
        %s2029 = scalar_lea.vmem [#allocation4], %s2028
        %v2030 = vld [vmem:[%s2029] sm:$0xff]
        %v2031 = vld [vmem:[%s2029 + $0x8] sm:$0xff]
        %v2032 = vld [vmem:[%s2029 + $0x10] sm:$0xff]
        %v2033 = vld [vmem:[%s2029 + $0x18] sm:$0xff]
        %v2034 = vpack.c.bf16 %v2025, %v2025
        %2035 = vmatprep.subr.bf16.mxu0 %v1233
        %2036 = vmatpush1.bf16.msra.mxu0 %v1232
        %2037 = vmatprep.subr.bf16.mxu0 %v1229
        %2038 = vmatpush1.bf16.msra.mxu0 %v1228
        %2039 = vmatprep.subr.bf16.mxu0 %v1225
        %2040 = vmatpush1.bf16.msra.mxu0 %v1224
        %2041 = vmatprep.subr.bf16.mxu0 %v1221
        %2042 = vmatpush1.bf16.msra.mxu0 %v1220
        %2043 = vmatprep.subr.bf16.mxu0 %v1217
        %2044 = vmatpush1.bf16.msra.mxu0 %v1216
        %2045 = vmatprep.subr.bf16.mxu0 %v1213
        %2046 = vmatpush1.bf16.msra.mxu0 %v1212
        %2047 = vmatprep.subr.bf16.mxu0 %v1209
        %2048 = vmatpush1.bf16.msra.mxu0 %v1208
        %2049 = vmatprep.subr.bf16.mxu0 %v1205
        %2050 = vmatpush1.bf16.msra.mxu0 %v1204
        %2051 = vmatprep.subr.bf16.mxu0 0
        %2052 = vmatpush2.bf16.msra.mxu0 0
        %2053 = vmatprep.subr.bf16.mxu0 0
        %2054 = vmatpush2.bf16.msra.mxu0 0
        %2055 = vmatprep.subr.bf16.mxu0 0
        %2056 = vmatpush2.bf16.msra.mxu0 0
        %2057 = vmatprep.subr.bf16.mxu0 0
        %2058 = vmatpush2.bf16.msra.mxu0 0
        %2059 = vmatprep.subr.bf16.mxu0 0
        %2060 = vmatpush2.bf16.msra.mxu0 0
        %2061 = vmatprep.subr.bf16.mxu0 0
        %2062 = vmatpush2.bf16.msra.mxu0 0
        %2063 = vmatprep.subr.bf16.mxu0 0
        %2064 = vmatpush2.bf16.msra.mxu0 0
        %2065 = vmatprep.subr.bf16.mxu0 0
        %2066 = vmatpush2.bf16.msra.mxu0 0
        %2067 = vmatprep.mubr.bf16.mxu0 0
        %2068 = vmatmul.mubr.bf16.gmra.mxu0 %v2034
        %v2069 = vpop.f32.mrf.mxu0
        %v2070 = vadd.f32 0.0, %v2069
        %v2071 = vpop.f32.mrf.mxu0
        %v2072 = vadd.f32 0.0, %v2071
        %v2073 = vpop.f32.mrf.mxu0
        %v2074 = vpop.f32.mrf.mxu0
        %2075 = vdwg.mxu0
        %2076 = vmatprep.subr.bf16.mxu0 %v1235
        %2077 = vmatpush1.bf16.msra.mxu0 %v1234
        %2078 = vmatprep.subr.bf16.mxu0 %v1231
        %2079 = vmatpush1.bf16.msra.mxu0 %v1230
        %2080 = vmatprep.subr.bf16.mxu0 %v1227
        %2081 = vmatpush1.bf16.msra.mxu0 %v1226
        %2082 = vmatprep.subr.bf16.mxu0 %v1223
        %2083 = vmatpush1.bf16.msra.mxu0 %v1222
        %2084 = vmatprep.subr.bf16.mxu0 %v1219
        %2085 = vmatpush1.bf16.msra.mxu0 %v1218
        %2086 = vmatprep.subr.bf16.mxu0 %v1215
        %2087 = vmatpush1.bf16.msra.mxu0 %v1214
        %2088 = vmatprep.subr.bf16.mxu0 %v1211
        %2089 = vmatpush1.bf16.msra.mxu0 %v1210
        %2090 = vmatprep.subr.bf16.mxu0 %v1207
        %2091 = vmatpush1.bf16.msra.mxu0 %v1206
        %2092 = vmatprep.subr.bf16.mxu0 0
        %2093 = vmatpush2.bf16.msra.mxu0 0
        %2094 = vmatprep.subr.bf16.mxu0 0
        %2095 = vmatpush2.bf16.msra.mxu0 0
        %2096 = vmatprep.subr.bf16.mxu0 0
        %2097 = vmatpush2.bf16.msra.mxu0 0
        %2098 = vmatprep.subr.bf16.mxu0 0
        %2099 = vmatpush2.bf16.msra.mxu0 0
        %2100 = vmatprep.subr.bf16.mxu0 0
        %2101 = vmatpush2.bf16.msra.mxu0 0
        %2102 = vmatprep.subr.bf16.mxu0 0
        %2103 = vmatpush2.bf16.msra.mxu0 0
        %2104 = vmatprep.subr.bf16.mxu0 0
        %2105 = vmatpush2.bf16.msra.mxu0 0
        %2106 = vmatprep.subr.bf16.mxu0 0
        %2107 = vmatpush2.bf16.msra.mxu0 0
        %2108 = vmatprep.mubr.bf16.mxu0 0
        %2109 = vmatmul.mubr.bf16.gmra.mxu0 %v2034
        %v2110 = vpop.f32.mrf.mxu0
        %v2111 = vadd.f32 0.0, %v2110
        %v2112 = vpop.f32.mrf.mxu0
        %v2113 = vadd.f32 0.0, %v2112
        %v2114 = vpop.f32.mrf.mxu0
        %v2115 = vpop.f32.mrf.mxu0
        %2116 = vdwg.mxu0
        %v2117 = vadd.f32 %v2030, %v2070
        %v2118 = vadd.f32 %v2031, %v2072
        %v2119 = vadd.f32 %v2032, %v2111
        %v2120 = vadd.f32 %v2033, %v2113
        %v2121 = vxor.u32 %v2117, 2147483648
        %v2122 = vmul.f32 %v2121, 1.442695
        %v2123 = vpow.pop %v2122
        %v2124 = vadd.f32 %v2123, 1.0
        %v2125 = vrcp.pop %v2124
        %v2126 = vmul.f32 1.0, %v2125
        %v2127 = vxor.u32 %v2118, 2147483648
        %v2128 = vmul.f32 %v2127, 1.442695
        %v2129 = vpow.pop %v2128
        %v2130 = vadd.f32 %v2129, 1.0
        %v2131 = vrcp.pop %v2130
        %v2132 = vmul.f32 1.0, %v2131
        %v2133 = vtanh.pop %v2119
        %v2134 = vxor.u32 %v2120, 2147483648
        %v2135 = vmul.f32 %v2134, 1.442695
        %v2136 = vpow.pop %v2135
        %v2137 = vadd.f32 %v2136, 1.0
        %v2138 = vrcp.pop %v2137
        %v2139 = vmul.f32 1.0, %v2138
        %v2140 = vmul.f32 %v2132, %v2026
        %v2141 = vmul.f32 %v2126, %v2133
        %v2142 = vadd.f32 %v2140, %v2141
        %v2143 = vtanh.pop %v2142
        %v2144 = vmul.f32 %v2139, %v2143
        %s2145 = sadd.s32 %s1065, 6
        %v2146 = vstv %s2145
        %vm2147 = vcmp.lt.s32.totalorder %v2146, %v1064
        %v2148 = vsel %vm2147, 1, 0
        %2149 = vset.pattern.permute.xlu0 0
        %2150 = vperm.xlu0 %2149, %v2148
        %v2151 = vpop.permute.xlu0 %2150
        %vm2152 = vcmp.eq.s32.totalorder %v2151, 1
        %v2153 = vsel %vm2152, %v2144, %v2025
        %v2154 = vsel %vm2152, %v2142, %v2026
        %s2155 = smul.u32 7, 4
        %s2156 = smul.addr %s2155, 8
        %s2157 = scalar_lea.vmem [#allocation4], %s2156
        %v2158 = vld [vmem:[%s2157] sm:$0xff]
        %v2159 = vld [vmem:[%s2157 + $0x8] sm:$0xff]
        %v2160 = vld [vmem:[%s2157 + $0x10] sm:$0xff]
        %v2161 = vld [vmem:[%s2157 + $0x18] sm:$0xff]
        %v2162 = vpack.c.bf16 %v2153, %v2153
        %2163 = vmatprep.subr.bf16.mxu0 %v1233
        %2164 = vmatpush1.bf16.msra.mxu0 %v1232
        %2165 = vmatprep.subr.bf16.mxu0 %v1229
        %2166 = vmatpush1.bf16.msra.mxu0 %v1228
        %2167 = vmatprep.subr.bf16.mxu0 %v1225
        %2168 = vmatpush1.bf16.msra.mxu0 %v1224
        %2169 = vmatprep.subr.bf16.mxu0 %v1221
        %2170 = vmatpush1.bf16.msra.mxu0 %v1220
        %2171 = vmatprep.subr.bf16.mxu0 %v1217
        %2172 = vmatpush1.bf16.msra.mxu0 %v1216
        %2173 = vmatprep.subr.bf16.mxu0 %v1213
        %2174 = vmatpush1.bf16.msra.mxu0 %v1212
        %2175 = vmatprep.subr.bf16.mxu0 %v1209
        %2176 = vmatpush1.bf16.msra.mxu0 %v1208
        %2177 = vmatprep.subr.bf16.mxu0 %v1205
        %2178 = vmatpush1.bf16.msra.mxu0 %v1204
        %2179 = vmatprep.subr.bf16.mxu0 0
        %2180 = vmatpush2.bf16.msra.mxu0 0
        %2181 = vmatprep.subr.bf16.mxu0 0
        %2182 = vmatpush2.bf16.msra.mxu0 0
        %2183 = vmatprep.subr.bf16.mxu0 0
        %2184 = vmatpush2.bf16.msra.mxu0 0
        %2185 = vmatprep.subr.bf16.mxu0 0
        %2186 = vmatpush2.bf16.msra.mxu0 0
        %2187 = vmatprep.subr.bf16.mxu0 0
        %2188 = vmatpush2.bf16.msra.mxu0 0
        %2189 = vmatprep.subr.bf16.mxu0 0
        %2190 = vmatpush2.bf16.msra.mxu0 0
        %2191 = vmatprep.subr.bf16.mxu0 0
        %2192 = vmatpush2.bf16.msra.mxu0 0
        %2193 = vmatprep.subr.bf16.mxu0 0
        %2194 = vmatpush2.bf16.msra.mxu0 0
        %2195 = vmatprep.mubr.bf16.mxu0 0
        %2196 = vmatmul.mubr.bf16.gmra.mxu0 %v2162
        %v2197 = vpop.f32.mrf.mxu0
        %v2198 = vadd.f32 0.0, %v2197
        %v2199 = vpop.f32.mrf.mxu0
        %v2200 = vadd.f32 0.0, %v2199
        %v2201 = vpop.f32.mrf.mxu0
        %v2202 = vpop.f32.mrf.mxu0
        %2203 = vdwg.mxu0
        %2204 = vmatprep.subr.bf16.mxu0 %v1235
        %2205 = vmatpush1.bf16.msra.mxu0 %v1234
        %2206 = vmatprep.subr.bf16.mxu0 %v1231
        %2207 = vmatpush1.bf16.msra.mxu0 %v1230
        %2208 = vmatprep.subr.bf16.mxu0 %v1227
        %2209 = vmatpush1.bf16.msra.mxu0 %v1226
        %2210 = vmatprep.subr.bf16.mxu0 %v1223
        %2211 = vmatpush1.bf16.msra.mxu0 %v1222
        %2212 = vmatprep.subr.bf16.mxu0 %v1219
        %2213 = vmatpush1.bf16.msra.mxu0 %v1218
        %2214 = vmatprep.subr.bf16.mxu0 %v1215
        %2215 = vmatpush1.bf16.msra.mxu0 %v1214
        %2216 = vmatprep.subr.bf16.mxu0 %v1211
        %2217 = vmatpush1.bf16.msra.mxu0 %v1210
        %2218 = vmatprep.subr.bf16.mxu0 %v1207
        %2219 = vmatpush1.bf16.msra.mxu0 %v1206
        %2220 = vmatprep.subr.bf16.mxu0 0
        %2221 = vmatpush2.bf16.msra.mxu0 0
        %2222 = vmatprep.subr.bf16.mxu0 0
        %2223 = vmatpush2.bf16.msra.mxu0 0
        %2224 = vmatprep.subr.bf16.mxu0 0
        %2225 = vmatpush2.bf16.msra.mxu0 0
        %2226 = vmatprep.subr.bf16.mxu0 0
        %2227 = vmatpush2.bf16.msra.mxu0 0
        %2228 = vmatprep.subr.bf16.mxu0 0
        %2229 = vmatpush2.bf16.msra.mxu0 0
        %2230 = vmatprep.subr.bf16.mxu0 0
        %2231 = vmatpush2.bf16.msra.mxu0 0
        %2232 = vmatprep.subr.bf16.mxu0 0
        %2233 = vmatpush2.bf16.msra.mxu0 0
        %2234 = vmatprep.subr.bf16.mxu0 0
        %2235 = vmatpush2.bf16.msra.mxu0 0
        %2236 = vmatprep.mubr.bf16.mxu0 0
        %2237 = vmatmul.mubr.bf16.gmra.mxu0 %v2162
        %v2238 = vpop.f32.mrf.mxu0
        %v2239 = vadd.f32 0.0, %v2238
        %v2240 = vpop.f32.mrf.mxu0
        %v2241 = vadd.f32 0.0, %v2240
        %v2242 = vpop.f32.mrf.mxu0
        %v2243 = vpop.f32.mrf.mxu0
        %2244 = vdwg.mxu0
        %v2245 = vadd.f32 %v2158, %v2198
        %v2246 = vadd.f32 %v2159, %v2200
        %v2247 = vadd.f32 %v2160, %v2239
        %v2248 = vadd.f32 %v2161, %v2241
        %v2249 = vxor.u32 %v2245, 2147483648
        %v2250 = vmul.f32 %v2249, 1.442695
        %v2251 = vpow.pop %v2250
        %v2252 = vadd.f32 %v2251, 1.0
        %v2253 = vrcp.pop %v2252
        %v2254 = vmul.f32 1.0, %v2253
        %v2255 = vxor.u32 %v2246, 2147483648
        %v2256 = vmul.f32 %v2255, 1.442695
        %v2257 = vpow.pop %v2256
        %v2258 = vadd.f32 %v2257, 1.0
        %v2259 = vrcp.pop %v2258
        %v2260 = vmul.f32 1.0, %v2259
        %v2261 = vtanh.pop %v2247
        %v2262 = vxor.u32 %v2248, 2147483648
        %v2263 = vmul.f32 %v2262, 1.442695
        %v2264 = vpow.pop %v2263
        %v2265 = vadd.f32 %v2264, 1.0
        %v2266 = vrcp.pop %v2265
        %v2267 = vmul.f32 1.0, %v2266
        %v2268 = vmul.f32 %v2260, %v2154
        %v2269 = vmul.f32 %v2254, %v2261
        %v2270 = vadd.f32 %v2268, %v2269
        %v2271 = vtanh.pop %v2270
        %v2272 = vmul.f32 %v2267, %v2271
        %s2273 = sadd.s32 %s1065, 7
        %v2274 = vstv %s2273
        %vm2275 = vcmp.lt.s32.totalorder %v2274, %v1064
        %v2276 = vsel %vm2275, 1, 0
        %2277 = vset.pattern.permute.xlu0 0
        %2278 = vperm.xlu0 %2277, %v2276
        %v2279 = vpop.permute.xlu0 %2278
        %vm2280 = vcmp.eq.s32.totalorder %v2279, 1
        %v2281 = vsel %vm2280, %v2272, %v2153
        %v2282 = vsel %vm2280, %v2270, %v2154
        %2283 = vst [vmem:[#allocation2] sm:$0xff] %v2281
        %2284 = vst [vmem:[#allocation3] sm:$0xff] %v2282
        %p2285 = scmp.eq.s32.totalorder %s29, 1
        // Predicated region
        $region81: #{tpu_custom_call.1} parent=55 // pred_check
          %p2286 = pneg %p2285
        $region82: #{tpu_custom_call.1} parent=55 // pred_check_branch
          %2288 = sbr.rel (%p2286) target = $region84
        $region83: #{tpu_custom_call.1} parent=55 // pred_region
          %v2289 = vpack.c.bf16 %v2281, %v2281
          %v2290 = vld [vmem:[#allocation11] sm:$0xf]
          %v2291 = vld [vmem:[#allocation11 + $0x4] sm:$0xf]
          %v2292 = vld [vmem:[#allocation11 + $0x8] sm:$0xf]
          %v2293 = vld [vmem:[#allocation11 + $0xc] sm:$0xf]
          %v2294 = vld [vmem:[#allocation11 + $0x10] sm:$0xf]
          %v2295 = vld [vmem:[#allocation11 + $0x14] sm:$0xf]
          %v2296 = vld [vmem:[#allocation11 + $0x18] sm:$0xf]
          %v2297 = vld [vmem:[#allocation11 + $0x1c] sm:$0xf]
          %v2298 = vld [vmem:[#allocation11 + $0x20] sm:$0xf]
          %v2299 = vld [vmem:[#allocation11 + $0x24] sm:$0xf]
          %v2300 = vld [vmem:[#allocation11 + $0x28] sm:$0xf]
          %v2301 = vld [vmem:[#allocation11 + $0x2c] sm:$0xf]
          %v2302 = vld [vmem:[#allocation11 + $0x30] sm:$0xf]
          %v2303 = vld [vmem:[#allocation11 + $0x34] sm:$0xf]
          %v2304 = vld [vmem:[#allocation11 + $0x38] sm:$0xf]
          %v2305 = vld [vmem:[#allocation11 + $0x3c] sm:$0xf]
          %v2306 = vld [vmem:[%s6] sm:$0x1]
          %v2308 = vlaneseq
          %v2309 = vshrl.u32 %v2308, 7
          %v2310 = vsub.s32 0, %v2309
          %v2311 = vrot.slane %v2306, %v2310
          %v2329 = vunpack.c.l.b16 %v2290
          %v2330 = vunpack.c.l.b16 %v2291
          %v2331 = vunpack.c.l.b16 %v2292
          %v2332 = vunpack.c.l.b16 %v2293
          %v2333 = vunpack.c.l.b16 %v2294
          %v2334 = vunpack.c.l.b16 %v2295
          %v2335 = vunpack.c.l.b16 %v2296
          %v2336 = vunpack.c.l.b16 %v2297
          %v2337 = vunpack.c.l.b16 %v2298
          %v2338 = vunpack.c.l.b16 %v2299
          %v2339 = vunpack.c.l.b16 %v2300
          %v2340 = vunpack.c.l.b16 %v2301
          %v2341 = vunpack.c.l.b16 %v2302
          %v2342 = vunpack.c.l.b16 %v2303
          %v2343 = vunpack.c.l.b16 %v2304
          %v2344 = vunpack.c.l.b16 %v2305
          %v2345 = vpack.c.b16 %v2330, %v2329
          %v2346 = vpack.c.b16 %v2332, %v2331
          %v2347 = vpack.c.b16 %v2334, %v2333
          %v2348 = vpack.c.b16 %v2336, %v2335
          %v2349 = vpack.c.b16 %v2338, %v2337
          %v2350 = vpack.c.b16 %v2340, %v2339
          %v2351 = vpack.c.b16 %v2342, %v2341
          %v2352 = vpack.c.b16 %v2344, %v2343
          %2361 = vmatprep.subr.bf16.mxu0 0
          %2362 = vmatpush1.bf16.msra.mxu0 %v2352
          %2363 = vmatprep.subr.bf16.mxu0 0
          %2364 = vmatpush1.bf16.msra.mxu0 %v2351
          %2365 = vmatprep.subr.bf16.mxu0 0
          %2366 = vmatpush1.bf16.msra.mxu0 %v2350
          %2367 = vmatprep.subr.bf16.mxu0 0
          %2368 = vmatpush1.bf16.msra.mxu0 %v2349
          %2369 = vmatprep.subr.bf16.mxu0 0
          %2370 = vmatpush1.bf16.msra.mxu0 %v2348
          %2371 = vmatprep.subr.bf16.mxu0 0
          %2372 = vmatpush1.bf16.msra.mxu0 %v2347
          %2373 = vmatprep.subr.bf16.mxu0 0
          %2374 = vmatpush1.bf16.msra.mxu0 %v2346
          %2375 = vmatprep.subr.bf16.mxu0 0
          %2376 = vmatpush1.bf16.msra.mxu0 %v2345
          %2377 = vmatprep.subr.bf16.mxu0 0
          %2378 = vmatpush2.bf16.msra.mxu0 0
          %2379 = vmatprep.subr.bf16.mxu0 0
          %2380 = vmatpush2.bf16.msra.mxu0 0
          %2381 = vmatprep.subr.bf16.mxu0 0
          %2382 = vmatpush2.bf16.msra.mxu0 0
          %2383 = vmatprep.subr.bf16.mxu0 0
          %2384 = vmatpush2.bf16.msra.mxu0 0
          %2385 = vmatprep.subr.bf16.mxu0 0
          %2386 = vmatpush2.bf16.msra.mxu0 0
          %2387 = vmatprep.subr.bf16.mxu0 0
          %2388 = vmatpush2.bf16.msra.mxu0 0
          %2389 = vmatprep.subr.bf16.mxu0 0
          %2390 = vmatpush2.bf16.msra.mxu0 0
          %2391 = vmatprep.subr.bf16.mxu0 0
          %2392 = vmatpush2.bf16.msra.mxu0 0
          %2393 = vmatprep.mubr.bf16.mxu0 0
          %2394 = vmatmul.mubr.bf16.gmra.mxu0 %v2289
          %v2395 = vpop.f32.mrf.mxu0
          %v2396 = vadd.f32 %v2311, %v2395
          %v2397 = vpop.f32.mrf.mxu0
          %v2398 = vpop.f32.mrf.mxu0
          %v2399 = vpop.f32.mrf.mxu0
          %2400 = vdwg.mxu0
          %v2401 = vmax.f32 %v2396, 0.0
          %2402 = vst [vmem:[#allocation14] sm:$0xff] %v2401
          %v2403 = vpack.c.bf16 %v2401, %v2401
          %v2404 = vld [vmem:[#allocation13] sm:$0xf]
          %v2405 = vld [vmem:[#allocation13 + $0x4] sm:$0xf]
          %v2406 = vld [vmem:[#allocation13 + $0x8] sm:$0xf]
          %v2407 = vld [vmem:[#allocation13 + $0xc] sm:$0xf]
          %v2408 = vld [vmem:[#allocation13 + $0x10] sm:$0xf]
          %v2409 = vld [vmem:[#allocation13 + $0x14] sm:$0xf]
          %v2410 = vld [vmem:[#allocation13 + $0x18] sm:$0xf]
          %v2411 = vld [vmem:[#allocation13 + $0x1c] sm:$0xf]
          %v2412 = vld [vmem:[#allocation13 + $0x20] sm:$0xf]
          %v2413 = vld [vmem:[#allocation13 + $0x24] sm:$0xf]
          %v2414 = vld [vmem:[#allocation13 + $0x28] sm:$0xf]
          %v2415 = vld [vmem:[#allocation13 + $0x2c] sm:$0xf]
          %v2416 = vld [vmem:[#allocation13 + $0x30] sm:$0xf]
          %v2417 = vld [vmem:[#allocation13 + $0x34] sm:$0xf]
          %v2418 = vld [vmem:[#allocation13 + $0x38] sm:$0xf]
          %v2419 = vld [vmem:[#allocation13 + $0x3c] sm:$0xf]
          %v2420 = vld [vmem:[%s8] sm:$0x1]
          %v2422 = vlaneseq
          %v2423 = vshrl.u32 %v2422, 7
          %v2424 = vsub.s32 0, %v2423
          %v2425 = vrot.slane %v2420, %v2424
          %v2443 = vunpack.c.l.b16 %v2404
          %v2444 = vunpack.c.l.b16 %v2405
          %v2445 = vunpack.c.l.b16 %v2406
          %v2446 = vunpack.c.l.b16 %v2407
          %v2447 = vunpack.c.l.b16 %v2408
          %v2448 = vunpack.c.l.b16 %v2409
          %v2449 = vunpack.c.l.b16 %v2410
          %v2450 = vunpack.c.l.b16 %v2411
          %v2451 = vunpack.c.l.b16 %v2412
          %v2452 = vunpack.c.l.b16 %v2413
          %v2453 = vunpack.c.l.b16 %v2414
          %v2454 = vunpack.c.l.b16 %v2415
          %v2455 = vunpack.c.l.b16 %v2416
          %v2456 = vunpack.c.l.b16 %v2417
          %v2457 = vunpack.c.l.b16 %v2418
          %v2458 = vunpack.c.l.b16 %v2419
          %v2459 = vpack.c.b16 %v2444, %v2443
          %v2460 = vpack.c.b16 %v2446, %v2445
          %v2461 = vpack.c.b16 %v2448, %v2447
          %v2462 = vpack.c.b16 %v2450, %v2449
          %v2463 = vpack.c.b16 %v2452, %v2451
          %v2464 = vpack.c.b16 %v2454, %v2453
          %v2465 = vpack.c.b16 %v2456, %v2455
          %v2466 = vpack.c.b16 %v2458, %v2457
          %2475 = vmatprep.subr.bf16.mxu0 0
          %2476 = vmatpush1.bf16.msra.mxu0 %v2466
          %2477 = vmatprep.subr.bf16.mxu0 0
          %2478 = vmatpush1.bf16.msra.mxu0 %v2465
          %2479 = vmatprep.subr.bf16.mxu0 0
          %2480 = vmatpush1.bf16.msra.mxu0 %v2464
          %2481 = vmatprep.subr.bf16.mxu0 0
          %2482 = vmatpush1.bf16.msra.mxu0 %v2463
          %2483 = vmatprep.subr.bf16.mxu0 0
          %2484 = vmatpush1.bf16.msra.mxu0 %v2462
          %2485 = vmatprep.subr.bf16.mxu0 0
          %2486 = vmatpush1.bf16.msra.mxu0 %v2461
          %2487 = vmatprep.subr.bf16.mxu0 0
          %2488 = vmatpush1.bf16.msra.mxu0 %v2460
          %2489 = vmatprep.subr.bf16.mxu0 0
          %2490 = vmatpush1.bf16.msra.mxu0 %v2459
          %2491 = vmatprep.subr.bf16.mxu0 0
          %2492 = vmatpush2.bf16.msra.mxu0 0
          %2493 = vmatprep.subr.bf16.mxu0 0
          %2494 = vmatpush2.bf16.msra.mxu0 0
          %2495 = vmatprep.subr.bf16.mxu0 0
          %2496 = vmatpush2.bf16.msra.mxu0 0
          %2497 = vmatprep.subr.bf16.mxu0 0
          %2498 = vmatpush2.bf16.msra.mxu0 0
          %2499 = vmatprep.subr.bf16.mxu0 0
          %2500 = vmatpush2.bf16.msra.mxu0 0
          %2501 = vmatprep.subr.bf16.mxu0 0
          %2502 = vmatpush2.bf16.msra.mxu0 0
          %2503 = vmatprep.subr.bf16.mxu0 0
          %2504 = vmatpush2.bf16.msra.mxu0 0
          %2505 = vmatprep.subr.bf16.mxu0 0
          %2506 = vmatpush2.bf16.msra.mxu0 0
          %2507 = vmatprep.mubr.bf16.mxu0 0
          %2508 = vmatmul.mubr.bf16.gmra.mxu0 %v2403
          %v2509 = vpop.f32.mrf.mxu0
          %v2510 = vadd.f32 %v2425, %v2509
          %v2511 = vpop.f32.mrf.mxu0
          %v2512 = vpop.f32.mrf.mxu0
          %v2513 = vpop.f32.mrf.mxu0
          %2514 = vdwg.mxu0
          %2515 = vst [vmem:[#allocation15] sm:$0xff] %v2510
        $region84: #{tpu_custom_call.1} parent=55 // pred_fallthru
          _
        // Predicated region
        $region85: #{tpu_custom_call.1} parent=55 // pred_check
          %p2516 = pneg %p236
        $region86: #{tpu_custom_call.1} parent=55 // pred_check_branch
          %2518 = sbr.rel (%p2516) target = $region88
        $region87: #{tpu_custom_call.1} parent=55 // pred_region
          %s2520 = ssub.s32 128, 128
          %2521 = vsyncadd [#allocation7], %s2520
          %s2523 = sshll.u32 [#allocation14], 4
          %s2524 = int_to_ptr.vmem [resolvable:$true] %s2523
          %2526 = dma.vmem_to_hbm [thread:$0]  %s2524, 128, %s9, [#allocation7]
        $region88: #{tpu_custom_call.1} parent=55 // pred_fallthru
          _
        // Predicated region
        $region89: #{tpu_custom_call.1} parent=55 // pred_check
          %p2527 = pneg %p257
        $region90: #{tpu_custom_call.1} parent=55 // pred_check_branch
          %2529 = sbr.rel (%p2527) target = $region92
        $region91: #{tpu_custom_call.1} parent=55 // pred_region
          %s2531 = ssub.s32 128, 128
          %2532 = vsyncadd [#allocation16], %s2531
          %s2534 = sshll.u32 [#allocation15], 4
          %s2535 = int_to_ptr.vmem [resolvable:$true] %s2534
          %2537 = dma.vmem_to_hbm [thread:$0]  %s2535, 128, %s10, [#allocation16]
        $region92: #{tpu_custom_call.1} parent=55 // pred_fallthru
          _
        // Predicated region
        $region93: #{tpu_custom_call.1} parent=55 // pred_check
          %p2538 = pneg %p236
        $region94: #{tpu_custom_call.1} parent=55 // pred_check_branch
          %2540 = sbr.rel (%p2538) target = $region96
        $region95: #{tpu_custom_call.1} parent=55 // pred_region
          %2541 = dma.done [#allocation7], 128
        $region96: #{tpu_custom_call.1} parent=55 // pred_fallthru
          _
        // Predicated region
        $region97: #{tpu_custom_call.1} parent=55 // pred_check
          %p2542 = pneg %p257
        $region98: #{tpu_custom_call.1} parent=55 // pred_check_branch
          %2544 = sbr.rel (%p2542) target = $region100
        $region99: #{tpu_custom_call.1} parent=55 // pred_region
          %2545 = dma.done [#allocation16], 128
        $region100: #{tpu_custom_call.1} parent=55 // pred_fallthru
          _
      $region56: #{tpu_custom_call.1} parent=5 // pred_fallthru
        _
      %p2546 = scmp.le.s32.totalorder 2, %s24
      // Predicated region
      $region101: #{tpu_custom_call.1} parent=5 // pred_check
        %p2547 = pneg %p2546
      $region102: #{tpu_custom_call.1} parent=5 // pred_check_branch
        %2549 = sbr.rel (%p2547) target = $region104
      $region103: #{tpu_custom_call.1} parent=5 // pred_region
        %s2550 = ssub.s32 %s24, 2
      $region104: #{tpu_custom_call.1} parent=5 // pred_fallthru
        _
    $region6: #{tpu_custom_call.1} parent=1 // loop_footer
      %s28 = sadd.s32 1, %s24
    $region7: #{tpu_custom_call.1} parent=1 // loop_footer_branch
      %23 = sbr.rel target = $region3
    $region8: #{tpu_custom_call.1} parent=1 // loop_exit
      _
    %2551 = vsyncpa [#allocation6], 1
    %s2552 = scalar_lea.sflag [#allocation6], 1
    %2553 = vsyncpa %s2552, 1
    %2554 = vsyncpa [#allocation9], 1
    %2555 = vsyncpa [#allocation12], 1
    %2556 = vsyncpa [#allocation7], 1
    %s2557 = scalar_lea.sflag [#allocation7], 1
    %2558 = vsyncpa %s2557, 1
    %2559 = vsyncpa [#allocation16], 1

</llo_original>
